<compile_context>
chip_gen: v7x
topology: tpu7x:2x2x1
jax: 0.10.0
libtpu: 0.0.40
codegen_flags: <defaults>
</compile_context>

<pallas_src>
import functools

import jax
import jax.numpy as jnp
from jax import lax
from jax.experimental import pallas as pl
from jax.experimental.pallas import tpu as pltpu

# ---- small config, structurally consistent with the torch module ----
VOCAB = 65           # vocab_size = len(chars)  (synthetic, small)
VOCAB_PAD = 128      # lane-padded vocab (lm_head output tile + token table rows)
N_EMBED = 128        # n_embed   (scaled down from 384)
BLOCK_SIZE = 32      # block_size (scaled down from 512)
N_HEAD = 4           # n_head
HEAD_SIZE = N_EMBED // N_HEAD
N_LAYER = 4          # n_layer   (scaled down from 12; same per-layer structure)
EPS = 1e-5           # torch LayerNorm default eps
NEG = -1e30          # large finite negative for the causal mask


# ---------------------------------------------------------------------------
# Pallas kernel (one grid step == one transformer block)
# ---------------------------------------------------------------------------
def _layernorm(x, g, b):
    mu = jnp.mean(x, axis=-1, keepdims=True)
    var = jnp.mean(jnp.square(x - mu), axis=-1, keepdims=True)
    return (x - mu) * lax.rsqrt(var + EPS) * g + b


def model_kernel(idx_ref, tok_ref, pos_ref,
                 ln1g_ref, ln1b_ref, wqkv_ref, wo_ref, bo_ref,
                 ln2g_ref, ln2b_ref, w1_ref, b1_ref, w2_ref, b2_ref,
                 lnfg_ref, lnfb_ref, wlm_ref, blm_ref,
                 o_ref, x_sc, *, batch, seq):
    B, T = batch, seq
    M = B * T
    D = N_EMBED
    H, hs = N_HEAD, HEAD_SIZE
    f32, bf16 = jnp.float32, jnp.bfloat16

    layer = pl.program_id(0)

    # ---- embedding (exact one-hot gather) + positional add, first step only ----
    @pl.when(layer == 0)
    def _():
        lane = lax.broadcasted_iota(jnp.int32, (M, VOCAB_PAD), 1)
        onehot = (idx_ref[...] == lane).astype(f32)                   # (M, 128)
        tok = jnp.dot(onehot, tok_ref[...],
                      preferred_element_type=f32)                     # (M, D) exact
        x0 = tok.reshape(B, T, D) + pos_ref[...][None]                # (B, T, D)
        x_sc[...] = x0.reshape(M, D)

    x = x_sc[...]                                                     # (M, D) f32

    # Causal additive bias, kept at (1, T, T) (broadcast, never per-batch).
    row = lax.broadcasted_iota(jnp.int32, (T, T), 0)
    col = lax.broadcasted_iota(jnp.int32, (T, T), 1)
    bias = jnp.where(col <= row, 0.0, NEG).astype(f32)[None]          # (1, T, T)
    scale = N_EMBED ** -0.5      # torch scales by C = n_embed (not head_size)

    # ---- multi-head causal self-attention on LN1(x), fused QKV projection ----
    h = _layernorm(x, ln1g_ref[0], ln1b_ref[0]).astype(bf16)          # (M, D)
    qkv = jnp.dot(h, wqkv_ref[0], preferred_element_type=f32)         # (M, 3D)
    q_all = qkv[:, 0 * D:1 * D]
    k_all = qkv[:, 1 * D:2 * D]
    v_all = qkv[:, 2 * D:3 * D]

    heads = []
    for hd in range(H):                       # static unroll over 4 heads
        sl = slice(hd * hs, (hd + 1) * hs)    # aligned 32-lane slice
        q3 = q_all[:, sl].reshape(B, T, hs).astype(bf16)
        k3 = k_all[:, sl].reshape(B, T, hs).astype(bf16)
        v3 = v_all[:, sl].reshape(B, T, hs).astype(bf16)
        s = jnp.einsum('bqd,bkd->bqk', q3, k3,
                       preferred_element_type=f32) * scale + bias     # (B, T, T)
        # manual softmax; reciprocal lands on the EUP slot
        m = jnp.max(s, axis=-1, keepdims=True)
        e = jnp.exp(s - m)
        p = e * pl.reciprocal(jnp.sum(e, axis=-1, keepdims=True), approx=True)
        o = jnp.einsum('bqk,bkd->bqd', p.astype(bf16), v3,
                       preferred_element_type=f32)                    # (B, T, hs)
        heads.append(o.reshape(M, hs))

    # lane-concat heads, ONE full-depth (M,128)x(128,128) output projection
    sa_in = jnp.concatenate(heads, axis=-1).astype(bf16)              # (M, D)
    sa = jnp.dot(sa_in, wo_ref[0], preferred_element_type=f32) + bo_ref[0]
    x = x + sa                                # residual (dropout = identity)

    # ---- feed-forward on LN2(x) ----
    h2 = _layernorm(x, ln2g_ref[0], ln2b_ref[0]).astype(bf16)
    f = jnp.dot(h2, w1_ref[0], preferred_element_type=f32) + b1_ref[0]
    f = jnp.maximum(f, 0.0).astype(bf16)                              # ReLU
    f = jnp.dot(f, w2_ref[0], preferred_element_type=f32) + b2_ref[0]
    x = x + f                                                         # residual
    x_sc[...] = x                             # carry residual to next grid step

    # ---- final LayerNorm + lane-padded lm_head (only on the last layer) ----
    @pl.when(layer == pl.num_programs(0) - 1)
    def _():
        hf = _layernorm(x, lnfg_ref[...], lnfb_ref[...]).astype(bf16)
        o_ref[...] = (jnp.dot(hf, wlm_ref[...], preferred_element_type=f32)
                      + blm_ref[...])


# ---------------------------------------------------------------------------
# Wrapper (weight stacking / padding + pallas_call plumbing)
# ---------------------------------------------------------------------------
def _stack(blocks, name, cast=None):
    w = jnp.stack([b[name] for b in blocks])
    return w if cast is None else w.astype(cast)


def forward(idx, params):
    """BigramLanguageModel.forward(idx, targets=None) -> (logits, None)."""
    B, T = idx.shape
    D = N_EMBED
    M = B * T
    f32, bf16 = jnp.float32, jnp.bfloat16

    blocks = params["blocks"]
    # per-layer stacks, leading L axis (blocked by the layer grid -> prefetch)
    wqkv = jnp.stack([jnp.concatenate([b["wq"], b["wk"], b["wv"]], axis=1)
                      for b in blocks]).astype(bf16)                 # (L, D, 3D)
    wo = _stack(blocks, "wo", bf16)                                  # (L, D, D)
    w1 = _stack(blocks, "w1", bf16)                                  # (L, D, 4D)
    w2 = _stack(blocks, "w2", bf16)                                  # (L, 4D, D)
    ln1g, ln1b = _stack(blocks, "ln1g"), _stack(blocks, "ln1b")      # (L, 1, D) f32
    ln2g, ln2b = _stack(blocks, "ln2g"), _stack(blocks, "ln2b")
    bo, b1, b2 = _stack(blocks, "bo"), _stack(blocks, "b1"), _stack(blocks, "b2")

    # grid-constant inputs (DMA'd once, resident in VMEM for the whole grid)
    idx2 = idx.reshape(M, 1).astype(jnp.int32)                       # (M, 1)
    tok_pad = jnp.pad(params["tok_emb"],
                      ((0, VOCAB_PAD - VOCAB), (0, 0)))              # (128, D) f32
    pos = params["pos_emb"][:T]                                      # (T, D) f32
    wlm = jnp.pad(params["wlm"], ((0, 0), (0, VOCAB_PAD - VOCAB))).astype(bf16)
    blm = jnp.pad(params["blm"], ((0, 0), (0, VOCAB_PAD - VOCAB)))

    def const(shape):
        return pl.BlockSpec(shape, lambda l, _s=shape: (0,) * len(_s))

    def per_layer(shape):
        return pl.BlockSpec((1,) + shape,
                            lambda l, _s=shape: (l,) + (0,) * len(_s))

    kernel = functools.partial(model_kernel, batch=B, seq=T)
    logits_pad = pl.pallas_call(
        kernel,
        out_shape=jax.ShapeDtypeStruct((M, VOCAB_PAD), f32),
        grid_spec=pltpu.PrefetchScalarGridSpec(
            num_scalar_prefetch=0,
            grid=(N_LAYER,),
            in_specs=[
                const((M, 1)),                # idx
                const((VOCAB_PAD, D)),        # token embedding table (padded)
                const((T, D)),                # positional embedding
                per_layer((1, D)),            # ln1 gamma
                per_layer((1, D)),            # ln1 beta
                per_layer((D, 3 * D)),        # fused QKV weight
                per_layer((D, D)),            # attention output projection
                per_layer((1, D)),            # attention output bias
                per_layer((1, D)),            # ln2 gamma
                per_layer((1, D)),            # ln2 beta
                per_layer((D, 4 * D)),        # ffn w1
                per_layer((1, 4 * D)),        # ffn b1
                per_layer((4 * D, D)),        # ffn w2
                per_layer((1, D)),            # ffn b2
                const((1, D)),                # final LN gamma
                const((1, D)),                # final LN beta
                const((D, VOCAB_PAD)),        # lm_head weight (lane-padded)
                const((1, VOCAB_PAD)),        # lm_head bias (lane-padded)
            ],
            out_specs=pl.BlockSpec((M, VOCAB_PAD), lambda l: (0, 0)),
            scratch_shapes=[pltpu.VMEM((M, D), f32)],   # residual stream carry
        ),
        compiler_params=pltpu.CompilerParams(
            dimension_semantics=("arbitrary",),
            vmem_limit_bytes=32 * 1024 * 1024,
        ),
    )(idx2, tok_pad, pos, ln1g, ln1b, wqkv, wo, bo, ln2g, ln2b,
      w1, b1, w2, b2, params["lnfg"], params["lnfb"], wlm, blm)

    logits = logits_pad[:, :VOCAB].reshape(B, T, VOCAB)
    return logits, None


# ---------------------------------------------------------------------------
# Deterministic parameter init + pure-JAX reference (bf16 matmuls mirrored)
# ---------------------------------------------------------------------------
def init_params(key):
    def normal(k, shape, scale=0.02):
        return (scale * jax.random.normal(k, shape)).astype(jnp.float32)

    keys = jax.random.split(key, N_LAYER + 3)
    params = {
        "tok_emb": normal(keys[0], (VOCAB, N_EMBED), 1.0),
        "pos_emb": normal(keys[1], (BLOCK_SIZE, N_EMBED), 1.0),
        "blocks": [],
        "lnfg": jnp.ones((1, N_EMBED), jnp.float32),
        "lnfb": jnp.zeros((1, N_EMBED), jnp.float32),
        "wlm": normal(keys[2], (N_EMBED, VOCAB)),
        "blm": jnp.zeros((1, VOCAB), jnp.float32),
    }
    for i in range(N_LAYER):
        bk = jax.random.split(keys[3 + i], 6)
        params["blocks"].append(dict(
            ln1g=jnp.ones((1, N_EMBED), jnp.float32),
            ln1b=jnp.zeros((1, N_EMBED), jnp.float32),
            wq=normal(bk[0], (N_EMBED, N_EMBED)),   # columns = concat of heads
            wk=normal(bk[1], (N_EMBED, N_EMBED)),
            wv=normal(bk[2], (N_EMBED, N_EMBED)),
            wo=normal(bk[3], (N_EMBED, N_EMBED)),
            bo=jnp.zeros((1, N_EMBED), jnp.float32),
            ln2g=jnp.ones((1, N_EMBED), jnp.float32),
            ln2b=jnp.zeros((1, N_EMBED), jnp.float32),
            w1=normal(bk[4], (N_EMBED, 4 * N_EMBED)),
            b1=jnp.zeros((1, 4 * N_EMBED), jnp.float32),
            w2=normal(bk[5], (4 * N_EMBED, N_EMBED)),
            b2=jnp.zeros((1, N_EMBED), jnp.float32),
        ))
    return params


def reference_forward(idx, params):
    """Plain-JAX mirror (matmul operands cast to bf16, like the kernel)."""
    f32, bf16 = jnp.float32, jnp.bfloat16
    B, T = idx.shape
    x = jnp.take(params["tok_emb"], idx, axis=0) + params["pos_emb"][:T][None]

    def ln(x, g, b):
        mu = x.mean(-1, keepdims=True)
        var = ((x - mu) ** 2).mean(-1, keepdims=True)
        return (x - mu) / jnp.sqrt(var + EPS) * g + b

    def mm(a, w):
        return jnp.dot(a.astype(bf16), w.astype(bf16), preferred_element_type=f32)

    causal = jnp.tril(jnp.ones((T, T), bool))
    for blk in params["blocks"]:
        h = ln(x, blk["ln1g"], blk["ln1b"])
        q, k, v = mm(h, blk["wq"]), mm(h, blk["wk"]), mm(h, blk["wv"])
        outs = []
        for hh in range(N_HEAD):
            sl = slice(hh * HEAD_SIZE, (hh + 1) * HEAD_SIZE)
            wei = jnp.einsum('bqd,bkd->bqk', q[..., sl].astype(bf16),
                             k[..., sl].astype(bf16),
                             preferred_element_type=f32) * (N_EMBED ** -0.5)
            wei = jnp.where(causal, wei, -jnp.inf)
            wei = jax.nn.softmax(wei, axis=-1)
            outs.append(jnp.einsum('bqk,bkd->bqd', wei.astype(bf16),
                                   v[..., sl].astype(bf16),
                                   preferred_element_type=f32))
        x = x + mm(jnp.concatenate(outs, -1), blk["wo"]) + blk["bo"]
        h2 = ln(x, blk["ln2g"], blk["ln2b"])
        x = x + mm(jnp.maximum(mm(h2, blk["w1"]) + blk["b1"], 0.0),
                   blk["w2"]) + blk["b2"]
    x = ln(x, params["lnfg"], params["lnfb"])
    return mm(x, params["wlm"]) + params["blm"]


# ---------------------------------------------------------------------------
if __name__ == "__main__":
    key = jax.random.PRNGKey(0)
    pkey, ikey = jax.random.split(key)
    params = init_params(pkey)

    B, T = 2, BLOCK_SIZE
    idx = jax.random.randint(ikey, (B, T), 0, VOCAB, dtype=jnp.int32)

    logits, loss = jax.jit(forward)(idx, params)
    logits = jax.block_until_ready(logits)

    assert logits.shape == (B, T, VOCAB), logits.shape
    assert loss is None
    assert bool(jnp.all(jnp.isfinite(logits)))

    ref = reference_forward(idx, params)
    max_err = float(jnp.max(jnp.abs(logits - ref)))
    assert max_err < 3e-2, f"max abs error vs reference: {max_err}"

    print("KERNEL_OK")
</pallas_src>

<mosaic_0001>
module attributes {stable_mosaic.version = 11 : i64} {
  func.func @model_kernel(%arg0: i32, %arg1: memref<64x1xi32, #tpu.memory_space<vmem>>, %arg2: memref<128x128xf32, #tpu.memory_space<vmem>>, %arg3: memref<32x128xf32, #tpu.memory_space<vmem>>, %arg4: memref<1x1x128xf32, #tpu.memory_space<vmem>>, %arg5: memref<1x1x128xf32, #tpu.memory_space<vmem>>, %arg6: memref<1x128x384xbf16, #tpu.memory_space<vmem>>, %arg7: memref<1x128x128xbf16, #tpu.memory_space<vmem>>, %arg8: memref<1x1x128xf32, #tpu.memory_space<vmem>>, %arg9: memref<1x1x128xf32, #tpu.memory_space<vmem>>, %arg10: memref<1x1x128xf32, #tpu.memory_space<vmem>>, %arg11: memref<1x128x512xbf16, #tpu.memory_space<vmem>>, %arg12: memref<1x1x512xf32, #tpu.memory_space<vmem>>, %arg13: memref<1x512x128xbf16, #tpu.memory_space<vmem>>, %arg14: memref<1x1x128xf32, #tpu.memory_space<vmem>>, %arg15: memref<1x128xf32, #tpu.memory_space<vmem>>, %arg16: memref<1x128xf32, #tpu.memory_space<vmem>>, %arg17: memref<128x128xbf16, #tpu.memory_space<vmem>>, %arg18: memref<1x128xf32, #tpu.memory_space<vmem>>, %arg19: memref<64x128xf32, #tpu.memory_space<vmem>>, %arg20: memref<64x128xf32, #tpu.memory_space<vmem>>) attributes {dimension_semantics = [#tpu.dimension_semantics<arbitrary>], iteration_bounds = array<i64: 4>, scalar_prefetch = 0 : i64, scratch_operands = 1 : i64, tpu.core_type = #tpu.core_type<tc>, window_params = [{pipeline_mode = #tpu.pipeline_mode<synchronous>, transform_indices = @transform_0, window_bounds = array<i64: 64, 1>}, {pipeline_mode = #tpu.pipeline_mode<synchronous>, transform_indices = @transform_1, window_bounds = array<i64: 128, 128>}, {pipeline_mode = #tpu.pipeline_mode<synchronous>, transform_indices = @transform_2, window_bounds = array<i64: 32, 128>}, {transform_indices = @transform_3, window_bounds = array<i64: 1, 1, 128>}, {transform_indices = @transform_4, window_bounds = array<i64: 1, 1, 128>}, {transform_indices = @transform_5, window_bounds = array<i64: 1, 128, 384>}, {transform_indices = @transform_6, window_bounds = array<i64: 1, 128, 128>}, {transform_indices = @transform_7, window_bounds = array<i64: 1, 1, 128>}, {transform_indices = @transform_8, window_bounds = array<i64: 1, 1, 128>}, {transform_indices = @transform_9, window_bounds = array<i64: 1, 1, 128>}, {transform_indices = @transform_10, window_bounds = array<i64: 1, 128, 512>}, {transform_indices = @transform_11, window_bounds = array<i64: 1, 1, 512>}, {transform_indices = @transform_12, window_bounds = array<i64: 1, 512, 128>}, {transform_indices = @transform_13, window_bounds = array<i64: 1, 1, 128>}, {pipeline_mode = #tpu.pipeline_mode<synchronous>, transform_indices = @transform_14, window_bounds = array<i64: 1, 128>}, {pipeline_mode = #tpu.pipeline_mode<synchronous>, transform_indices = @transform_15, window_bounds = array<i64: 1, 128>}, {pipeline_mode = #tpu.pipeline_mode<synchronous>, transform_indices = @transform_16, window_bounds = array<i64: 128, 128>}, {pipeline_mode = #tpu.pipeline_mode<synchronous>, transform_indices = @transform_17, window_bounds = array<i64: 1, 128>}, {pipeline_mode = #tpu.pipeline_mode<synchronous>, transform_indices = @transform_18, window_bounds = array<i64: 64, 128>}]} {
    %c0_i32 = arith.constant 0 : i32
    %0 = arith.cmpi eq, %arg0, %c0_i32 : i32
    %1 = arith.extui %0 : i1 to i32
    %c0_i32_0 = arith.constant 0 : i32
    %2 = arith.cmpi ne, %1, %c0_i32_0 : i32
    scf.if %2 {
      %211 = tpu.iota {dimensions = array<i32: 1>} : vector<64x128xi32>
      %c0_74 = arith.constant 0 : index
      %c0_75 = arith.constant 0 : index
      %212 = vector.load %arg1[%c0_74, %c0_75] : memref<64x1xi32, #tpu.memory_space<vmem>>, vector<64x1xi32>
      %213 = vector.broadcast %212 : vector<64x1xi32> to vector<64x128xi32>
      %214 = arith.cmpi eq, %213, %211 : vector<64x128xi32>
      %215 = arith.extui %214 : vector<64x128xi1> to vector<64x128xi32>
      %216 = arith.sitofp %215 : vector<64x128xi32> to vector<64x128xf32>
      %c0_76 = arith.constant 0 : index
      %c0_77 = arith.constant 0 : index
      %217 = vector.load %arg2[%c0_76, %c0_77] : memref<128x128xf32, #tpu.memory_space<vmem>>, vector<128x128xf32>
      %cst_78 = arith.constant dense<0.000000e+00> : vector<64x128xf32>
      %218 = tpu.matmul %216, %217, %cst_78 {dimension_numbers = #tpu.dot_dimension_numbers<[1], [0], [0], [1], [0, 0, 1, 1], [], []>} : vector<64x128xf32>, vector<128x128xf32>, vector<64x128xf32> -> vector<64x128xf32>
      %219 = vector.shape_cast %218 : vector<64x128xf32> to vector<2x32x128xf32>
      %c0_79 = arith.constant 0 : index
      %c0_80 = arith.constant 0 : index
      %220 = vector.load %arg3[%c0_79, %c0_80] : memref<32x128xf32, #tpu.memory_space<vmem>>, vector<32x128xf32>
      %221 = vector.shape_cast %220 : vector<32x128xf32> to vector<1x32x128xf32>
      %222 = vector.broadcast %221 : vector<1x32x128xf32> to vector<2x32x128xf32>
      %223 = arith.addf %219, %222 : vector<2x32x128xf32>
      %224 = vector.shape_cast %223 : vector<2x32x128xf32> to vector<64x128xf32>
      %c0_81 = arith.constant 0 : index
      %c0_82 = arith.constant 0 : index
      %225 = vector.load %arg20[%c0_81, %c0_82] : memref<64x128xf32, #tpu.memory_space<vmem>>, vector<64x128xf32>
      tpu.vector_store %arg20[%c0_81, %c0_82], %224 {strides = array<i32>} : memref<64x128xf32, #tpu.memory_space<vmem>>, vector<64x128xf32>,
    } else {
    }
    %c0 = arith.constant 0 : index
    %c0_1 = arith.constant 0 : index
    %3 = vector.load %arg20[%c0, %c0_1] : memref<64x128xf32, #tpu.memory_space<vmem>>, vector<64x128xf32>
    %4 = tpu.iota {dimensions = array<i32: 0>} : vector<32x32xi32>
    %5 = tpu.iota {dimensions = array<i32: 1>} : vector<32x32xi32>
    %6 = arith.cmpi sle, %5, %4 : vector<32x32xi32>
    %cst = arith.constant 0.000000e+00 : f32
    %cst_2 = arith.constant -1.000000e+30 : f32
    %7 = vector.broadcast %cst : f32 to vector<32x32xf32>
    %8 = vector.broadcast %cst_2 : f32 to vector<32x32xf32>
    %9 = arith.select %6, %7, %8 : vector<32x32xi1>, vector<32x32xf32>
    %10 = vector.shape_cast %9 : vector<32x32xf32> to vector<1x32x32xf32>
    %c0_3 = arith.constant 0 : index
    %c0_4 = arith.constant 0 : index
    %c0_5 = arith.constant 0 : index
    %11 = vector.load %arg4[%c0_3, %c0_4, %c0_5] : memref<1x1x128xf32, #tpu.memory_space<vmem>>, vector<1x1x128xf32>
    %12 = vector.shape_cast %11 : vector<1x1x128xf32> to vector<1x128xf32>
    %c0_6 = arith.constant 0 : index
    %c0_7 = arith.constant 0 : index
    %c0_8 = arith.constant 0 : index
    %13 = vector.load %arg5[%c0_6, %c0_7, %c0_8] : memref<1x1x128xf32, #tpu.memory_space<vmem>>, vector<1x1x128xf32>
    %14 = vector.shape_cast %13 : vector<1x1x128xf32> to vector<1x128xf32>
    %cst_9 = arith.constant dense<0.000000e+00> : vector<64xf32>
    %15 = vector.multi_reduction <add>, %3, %cst_9 [1] : vector<64x128xf32> to vector<64xf32>
    %16 = vector.shape_cast %15 : vector<64xf32> to vector<64x1xf32>
    %cst_10 = arith.constant 1.280000e+02 : f32
    %17 = vector.broadcast %cst_10 : f32 to vector<64x1xf32>
    %18 = arith.divf %16, %17 : vector<64x1xf32>
    %19 = vector.broadcast %18 : vector<64x1xf32> to vector<64x128xf32>
    %20 = arith.subf %3, %19 : vector<64x128xf32>
    %21 = arith.mulf %20, %20 : vector<64x128xf32>
    %cst_11 = arith.constant dense<0.000000e+00> : vector<64xf32>
    %22 = vector.multi_reduction <add>, %21, %cst_11 [1] : vector<64x128xf32> to vector<64xf32>
    %23 = vector.shape_cast %22 : vector<64xf32> to vector<64x1xf32>
    %cst_12 = arith.constant 1.280000e+02 : f32
    %24 = vector.broadcast %cst_12 : f32 to vector<64x1xf32>
    %25 = arith.divf %23, %24 : vector<64x1xf32>
    %26 = vector.broadcast %18 : vector<64x1xf32> to vector<64x128xf32>
    %27 = arith.subf %3, %26 : vector<64x128xf32>
    %cst_13 = arith.constant 9.99999974E-6 : f32
    %28 = vector.broadcast %cst_13 : f32 to vector<64x1xf32>
    %29 = arith.addf %25, %28 : vector<64x1xf32>
    %30 = math.rsqrt %29 : vector<64x1xf32>
    %31 = vector.broadcast %30 : vector<64x1xf32> to vector<64x128xf32>
    %32 = arith.mulf %27, %31 : vector<64x128xf32>
    %33 = vector.broadcast %12 : vector<1x128xf32> to vector<64x128xf32>
    %34 = arith.mulf %32, %33 : vector<64x128xf32>
    %35 = vector.broadcast %14 : vector<1x128xf32> to vector<64x128xf32>
    %36 = arith.addf %34, %35 : vector<64x128xf32>
    %37 = arith.truncf %36 : vector<64x128xf32> to vector<64x128xbf16>
    %c0_14 = arith.constant 0 : index
    %c0_15 = arith.constant 0 : index
    %c0_16 = arith.constant 0 : index
    %38 = vector.load %arg6[%c0_14, %c0_15, %c0_16] : memref<1x128x384xbf16, #tpu.memory_space<vmem>>, vector<1x128x384xbf16>
    %39 = vector.shape_cast %38 : vector<1x128x384xbf16> to vector<128x384xbf16>
    %cst_17 = arith.constant dense<0.000000e+00> : vector<64x384xf32>
    %40 = tpu.matmul %37, %39, %cst_17 {dimension_numbers = #tpu.dot_dimension_numbers<[1], [0], [0], [1], [0, 0, 1, 1], [], []>} : vector<64x128xbf16>, vector<128x384xbf16>, vector<64x384xf32> -> vector<64x384xf32>
    %41 = vector.extract_strided_slice %40 {offsets = [0, 0], sizes = [64, 128], strides = [1, 1]} : vector<64x384xf32> to vector<64x128xf32>
    %42 = vector.extract_strided_slice %40 {offsets = [0, 128], sizes = [64, 128], strides = [1, 1]} : vector<64x384xf32> to vector<64x128xf32>
    %43 = vector.extract_strided_slice %40 {offsets = [0, 256], sizes = [64, 128], strides = [1, 1]} : vector<64x384xf32> to vector<64x128xf32>
    %44 = vector.extract_strided_slice %41 {offsets = [0, 0], sizes = [64, 32], strides = [1, 1]} : vector<64x128xf32> to vector<64x32xf32>
    %45 = vector.shape_cast %44 : vector<64x32xf32> to vector<2x32x32xf32>
    %46 = arith.truncf %45 : vector<2x32x32xf32> to vector<2x32x32xbf16>
    %47 = vector.extract_strided_slice %42 {offsets = [0, 0], sizes = [64, 32], strides = [1, 1]} : vector<64x128xf32> to vector<64x32xf32>
    %48 = vector.shape_cast %47 : vector<64x32xf32> to vector<2x32x32xf32>
    %49 = arith.truncf %48 : vector<2x32x32xf32> to vector<2x32x32xbf16>
    %50 = vector.extract_strided_slice %43 {offsets = [0, 0], sizes = [64, 32], strides = [1, 1]} : vector<64x128xf32> to vector<64x32xf32>
    %51 = vector.shape_cast %50 : vector<64x32xf32> to vector<2x32x32xf32>
    %52 = arith.truncf %51 : vector<2x32x32xf32> to vector<2x32x32xbf16>
    "tpu.trace_start"() <{level = 10 : i32, message = "bqd,bkd->bqk"}> : () -> ()
    %cst_18 = arith.constant dense<0.000000e+00> : vector<2x32x32xf32>
    %53 = tpu.matmul %46, %49, %cst_18 {dimension_numbers = #tpu.dot_dimension_numbers<[2], [2], [1], [1], [0, 0, 0, 1, 1, 1], [0], [0]>} : vector<2x32x32xbf16>, vector<2x32x32xbf16>, vector<2x32x32xf32> -> vector<2x32x32xf32>
    "tpu.trace_stop"() : () -> ()
    %cst_19 = arith.constant 0.0883883461 : f32
    %54 = vector.broadcast %cst_19 : f32 to vector<2x32x32xf32>
    %55 = arith.mulf %53, %54 : vector<2x32x32xf32>
    %56 = vector.broadcast %10 : vector<1x32x32xf32> to vector<2x32x32xf32>
    %57 = arith.addf %55, %56 : vector<2x32x32xf32>
    %cst_20 = arith.constant dense<0xFF800000> : vector<2x32xf32>
    %58 = vector.multi_reduction <maximumf>, %57, %cst_20 [2] : vector<2x32x32xf32> to vector<2x32xf32>
    %59 = vector.shape_cast %58 : vector<2x32xf32> to vector<2x32x1xf32>
    %60 = vector.broadcast %59 : vector<2x32x1xf32> to vector<2x32x32xf32>
    %61 = arith.subf %57, %60 : vector<2x32x32xf32>
    %62 = math.exp %61 : vector<2x32x32xf32>
    %cst_21 = arith.constant dense<0.000000e+00> : vector<2x32xf32>
    %63 = vector.multi_reduction <add>, %62, %cst_21 [2] : vector<2x32x32xf32> to vector<2x32xf32>
    %64 = vector.shape_cast %63 : vector<2x32xf32> to vector<2x32x1xf32>
    %65 = tpu.reciprocal %64 {approx = true} : vector<2x32x1xf32> -> vector<2x32x1xf32>
    %66 = vector.broadcast %65 : vector<2x32x1xf32> to vector<2x32x32xf32>
    %67 = arith.mulf %62, %66 : vector<2x32x32xf32>
    %68 = arith.truncf %67 : vector<2x32x32xf32> to vector<2x32x32xbf16>
    "tpu.trace_start"() <{level = 10 : i32, message = "bqk,bkd->bqd"}> : () -> ()
    %cst_22 = arith.constant dense<0.000000e+00> : vector<2x32x32xf32>
    %69 = tpu.matmul %68, %52, %cst_22 {dimension_numbers = #tpu.dot_dimension_numbers<[2], [1], [1], [2], [0, 0, 0, 1, 1, 2], [0], [0]>} : vector<2x32x32xbf16>, vector<2x32x32xbf16>, vector<2x32x32xf32> -> vector<2x32x32xf32>
    "tpu.trace_stop"() : () -> ()
    %70 = vector.shape_cast %69 : vector<2x32x32xf32> to vector<64x32xf32>
    %71 = vector.extract_strided_slice %41 {offsets = [0, 32], sizes = [64, 32], strides = [1, 1]} : vector<64x128xf32> to vector<64x32xf32>
    %72 = vector.shape_cast %71 : vector<64x32xf32> to vector<2x32x32xf32>
    %73 = arith.truncf %72 : vector<2x32x32xf32> to vector<2x32x32xbf16>
    %74 = vector.extract_strided_slice %42 {offsets = [0, 32], sizes = [64, 32], strides = [1, 1]} : vector<64x128xf32> to vector<64x32xf32>
    %75 = vector.shape_cast %74 : vector<64x32xf32> to vector<2x32x32xf32>
    %76 = arith.truncf %75 : vector<2x32x32xf32> to vector<2x32x32xbf16>
    %77 = vector.extract_strided_slice %43 {offsets = [0, 32], sizes = [64, 32], strides = [1, 1]} : vector<64x128xf32> to vector<64x32xf32>
    %78 = vector.shape_cast %77 : vector<64x32xf32> to vector<2x32x32xf32>
    %79 = arith.truncf %78 : vector<2x32x32xf32> to vector<2x32x32xbf16>
    "tpu.trace_start"() <{level = 10 : i32, message = "bqd,bkd->bqk"}> : () -> ()
    %cst_23 = arith.constant dense<0.000000e+00> : vector<2x32x32xf32>
    %80 = tpu.matmul %73, %76, %cst_23 {dimension_numbers = #tpu.dot_dimension_numbers<[2], [2], [1], [1], [0, 0, 0, 1, 1, 1], [0], [0]>} : vector<2x32x32xbf16>, vector<2x32x32xbf16>, vector<2x32x32xf32> -> vector<2x32x32xf32>
    "tpu.trace_stop"() : () -> ()
    %cst_24 = arith.constant 0.0883883461 : f32
    %81 = vector.broadcast %cst_24 : f32 to vector<2x32x32xf32>
    %82 = arith.mulf %80, %81 : vector<2x32x32xf32>
    %83 = vector.broadcast %10 : vector<1x32x32xf32> to vector<2x32x32xf32>
    %84 = arith.addf %82, %83 : vector<2x32x32xf32>
    %cst_25 = arith.constant dense<0xFF800000> : vector<2x32xf32>
    %85 = vector.multi_reduction <maximumf>, %84, %cst_25 [2] : vector<2x32x32xf32> to vector<2x32xf32>
    %86 = vector.shape_cast %85 : vector<2x32xf32> to vector<2x32x1xf32>
    %87 = vector.broadcast %86 : vector<2x32x1xf32> to vector<2x32x32xf32>
    %88 = arith.subf %84, %87 : vector<2x32x32xf32>
    %89 = math.exp %88 : vector<2x32x32xf32>
    %cst_26 = arith.constant dense<0.000000e+00> : vector<2x32xf32>
    %90 = vector.multi_reduction <add>, %89, %cst_26 [2] : vector<2x32x32xf32> to vector<2x32xf32>
    %91 = vector.shape_cast %90 : vector<2x32xf32> to vector<2x32x1xf32>
    %92 = tpu.reciprocal %91 {approx = true} : vector<2x32x1xf32> -> vector<2x32x1xf32>
    %93 = vector.broadcast %92 : vector<2x32x1xf32> to vector<2x32x32xf32>
    %94 = arith.mulf %89, %93 : vector<2x32x32xf32>
    %95 = arith.truncf %94 : vector<2x32x32xf32> to vector<2x32x32xbf16>
    "tpu.trace_start"() <{level = 10 : i32, message = "bqk,bkd->bqd"}> : () -> ()
    %cst_27 = arith.constant dense<0.000000e+00> : vector<2x32x32xf32>
    %96 = tpu.matmul %95, %79, %cst_27 {dimension_numbers = #tpu.dot_dimension_numbers<[2], [1], [1], [2], [0, 0, 0, 1, 1, 2], [0], [0]>} : vector<2x32x32xbf16>, vector<2x32x32xbf16>, vector<2x32x32xf32> -> vector<2x32x32xf32>
    "tpu.trace_stop"() : () -> ()
    %97 = vector.shape_cast %96 : vector<2x32x32xf32> to vector<64x32xf32>
    %98 = vector.extract_strided_slice %41 {offsets = [0, 64], sizes = [64, 32], strides = [1, 1]} : vector<64x128xf32> to vector<64x32xf32>
    %99 = vector.shape_cast %98 : vector<64x32xf32> to vector<2x32x32xf32>
    %100 = arith.truncf %99 : vector<2x32x32xf32> to vector<2x32x32xbf16>
    %101 = vector.extract_strided_slice %42 {offsets = [0, 64], sizes = [64, 32], strides = [1, 1]} : vector<64x128xf32> to vector<64x32xf32>
    %102 = vector.shape_cast %101 : vector<64x32xf32> to vector<2x32x32xf32>
    %103 = arith.truncf %102 : vector<2x32x32xf32> to vector<2x32x32xbf16>
    %104 = vector.extract_strided_slice %43 {offsets = [0, 64], sizes = [64, 32], strides = [1, 1]} : vector<64x128xf32> to vector<64x32xf32>
    %105 = vector.shape_cast %104 : vector<64x32xf32> to vector<2x32x32xf32>
    %106 = arith.truncf %105 : vector<2x32x32xf32> to vector<2x32x32xbf16>
    "tpu.trace_start"() <{level = 10 : i32, message = "bqd,bkd->bqk"}> : () -> ()
    %cst_28 = arith.constant dense<0.000000e+00> : vector<2x32x32xf32>
    %107 = tpu.matmul %100, %103, %cst_28 {dimension_numbers = #tpu.dot_dimension_numbers<[2], [2], [1], [1], [0, 0, 0, 1, 1, 1], [0], [0]>} : vector<2x32x32xbf16>, vector<2x32x32xbf16>, vector<2x32x32xf32> -> vector<2x32x32xf32>
    "tpu.trace_stop"() : () -> ()
    %cst_29 = arith.constant 0.0883883461 : f32
    %108 = vector.broadcast %cst_29 : f32 to vector<2x32x32xf32>
    %109 = arith.mulf %107, %108 : vector<2x32x32xf32>
    %110 = vector.broadcast %10 : vector<1x32x32xf32> to vector<2x32x32xf32>
    %111 = arith.addf %109, %110 : vector<2x32x32xf32>
    %cst_30 = arith.constant dense<0xFF800000> : vector<2x32xf32>
    %112 = vector.multi_reduction <maximumf>, %111, %cst_30 [2] : vector<2x32x32xf32> to vector<2x32xf32>
    %113 = vector.shape_cast %112 : vector<2x32xf32> to vector<2x32x1xf32>
    %114 = vector.broadcast %113 : vector<2x32x1xf32> to vector<2x32x32xf32>
    %115 = arith.subf %111, %114 : vector<2x32x32xf32>
    %116 = math.exp %115 : vector<2x32x32xf32>
    %cst_31 = arith.constant dense<0.000000e+00> : vector<2x32xf32>
    %117 = vector.multi_reduction <add>, %116, %cst_31 [2] : vector<2x32x32xf32> to vector<2x32xf32>
    %118 = vector.shape_cast %117 : vector<2x32xf32> to vector<2x32x1xf32>
    %119 = tpu.reciprocal %118 {approx = true} : vector<2x32x1xf32> -> vector<2x32x1xf32>
    %120 = vector.broadcast %119 : vector<2x32x1xf32> to vector<2x32x32xf32>
    %121 = arith.mulf %116, %120 : vector<2x32x32xf32>
    %122 = arith.truncf %121 : vector<2x32x32xf32> to vector<2x32x32xbf16>
    "tpu.trace_start"() <{level = 10 : i32, message = "bqk,bkd->bqd"}> : () -> ()
    %cst_32 = arith.constant dense<0.000000e+00> : vector<2x32x32xf32>
    %123 = tpu.matmul %122, %106, %cst_32 {dimension_numbers = #tpu.dot_dimension_numbers<[2], [1], [1], [2], [0, 0, 0, 1, 1, 2], [0], [0]>} : vector<2x32x32xbf16>, vector<2x32x32xbf16>, vector<2x32x32xf32> -> vector<2x32x32xf32>
    "tpu.trace_stop"() : () -> ()
    %124 = vector.shape_cast %123 : vector<2x32x32xf32> to vector<64x32xf32>
    %125 = vector.extract_strided_slice %41 {offsets = [0, 96], sizes = [64, 32], strides = [1, 1]} : vector<64x128xf32> to vector<64x32xf32>
    %126 = vector.shape_cast %125 : vector<64x32xf32> to vector<2x32x32xf32>
    %127 = arith.truncf %126 : vector<2x32x32xf32> to vector<2x32x32xbf16>
    %128 = vector.extract_strided_slice %42 {offsets = [0, 96], sizes = [64, 32], strides = [1, 1]} : vector<64x128xf32> to vector<64x32xf32>
    %129 = vector.shape_cast %128 : vector<64x32xf32> to vector<2x32x32xf32>
    %130 = arith.truncf %129 : vector<2x32x32xf32> to vector<2x32x32xbf16>
    %131 = vector.extract_strided_slice %43 {offsets = [0, 96], sizes = [64, 32], strides = [1, 1]} : vector<64x128xf32> to vector<64x32xf32>
    %132 = vector.shape_cast %131 : vector<64x32xf32> to vector<2x32x32xf32>
    %133 = arith.truncf %132 : vector<2x32x32xf32> to vector<2x32x32xbf16>
    "tpu.trace_start"() <{level = 10 : i32, message = "bqd,bkd->bqk"}> : () -> ()
    %cst_33 = arith.constant dense<0.000000e+00> : vector<2x32x32xf32>
    %134 = tpu.matmul %127, %130, %cst_33 {dimension_numbers = #tpu.dot_dimension_numbers<[2], [2], [1], [1], [0, 0, 0, 1, 1, 1], [0], [0]>} : vector<2x32x32xbf16>, vector<2x32x32xbf16>, vector<2x32x32xf32> -> vector<2x32x32xf32>
    "tpu.trace_stop"() : () -> ()
    %cst_34 = arith.constant 0.0883883461 : f32
    %135 = vector.broadcast %cst_34 : f32 to vector<2x32x32xf32>
    %136 = arith.mulf %134, %135 : vector<2x32x32xf32>
    %137 = vector.broadcast %10 : vector<1x32x32xf32> to vector<2x32x32xf32>
    %138 = arith.addf %136, %137 : vector<2x32x32xf32>
    %cst_35 = arith.constant dense<0xFF800000> : vector<2x32xf32>
    %139 = vector.multi_reduction <maximumf>, %138, %cst_35 [2] : vector<2x32x32xf32> to vector<2x32xf32>
    %140 = vector.shape_cast %139 : vector<2x32xf32> to vector<2x32x1xf32>
    %141 = vector.broadcast %140 : vector<2x32x1xf32> to vector<2x32x32xf32>
    %142 = arith.subf %138, %141 : vector<2x32x32xf32>
    %143 = math.exp %142 : vector<2x32x32xf32>
    %cst_36 = arith.constant dense<0.000000e+00> : vector<2x32xf32>
    %144 = vector.multi_reduction <add>, %143, %cst_36 [2] : vector<2x32x32xf32> to vector<2x32xf32>
    %145 = vector.shape_cast %144 : vector<2x32xf32> to vector<2x32x1xf32>
    %146 = tpu.reciprocal %145 {approx = true} : vector<2x32x1xf32> -> vector<2x32x1xf32>
    %147 = vector.broadcast %146 : vector<2x32x1xf32> to vector<2x32x32xf32>
    %148 = arith.mulf %143, %147 : vector<2x32x32xf32>
    %149 = arith.truncf %148 : vector<2x32x32xf32> to vector<2x32x32xbf16>
    "tpu.trace_start"() <{level = 10 : i32, message = "bqk,bkd->bqd"}> : () -> ()
    %cst_37 = arith.constant dense<0.000000e+00> : vector<2x32x32xf32>
    %150 = tpu.matmul %149, %133, %cst_37 {dimension_numbers = #tpu.dot_dimension_numbers<[2], [1], [1], [2], [0, 0, 0, 1, 1, 2], [0], [0]>} : vector<2x32x32xbf16>, vector<2x32x32xbf16>, vector<2x32x32xf32> -> vector<2x32x32xf32>
    "tpu.trace_stop"() : () -> ()
    %151 = vector.shape_cast %150 : vector<2x32x32xf32> to vector<64x32xf32>
    %152 = tpu.concatenate %70, %97, %124, %151 in 1 : vector<64x32xf32>, vector<64x32xf32>, vector<64x32xf32>, vector<64x32xf32> -> vector<64x128xf32>
    %153 = arith.truncf %152 : vector<64x128xf32> to vector<64x128xbf16>
    %c0_38 = arith.constant 0 : index
    %c0_39 = arith.constant 0 : index
    %c0_40 = arith.constant 0 : index
    %154 = vector.load %arg7[%c0_38, %c0_39, %c0_40] : memref<1x128x128xbf16, #tpu.memory_space<vmem>>, vector<1x128x128xbf16>
    %155 = vector.shape_cast %154 : vector<1x128x128xbf16> to vector<128x128xbf16>
    %cst_41 = arith.constant dense<0.000000e+00> : vector<64x128xf32>
    %156 = tpu.matmul %153, %155, %cst_41 {dimension_numbers = #tpu.dot_dimension_numbers<[1], [0], [0], [1], [0, 0, 1, 1], [], []>} : vector<64x128xbf16>, vector<128x128xbf16>, vector<64x128xf32> -> vector<64x128xf32>
    %c0_42 = arith.constant 0 : index
    %c0_43 = arith.constant 0 : index
    %c0_44 = arith.constant 0 : index
    %157 = vector.load %arg8[%c0_42, %c0_43, %c0_44] : memref<1x1x128xf32, #tpu.memory_space<vmem>>, vector<1x1x128xf32>
    %158 = vector.shape_cast %157 : vector<1x1x128xf32> to vector<1x128xf32>
    %159 = vector.broadcast %158 : vector<1x128xf32> to vector<64x128xf32>
    %160 = arith.addf %156, %159 : vector<64x128xf32>
    %161 = arith.addf %3, %160 : vector<64x128xf32>
    %c0_45 = arith.constant 0 : index
    %c0_46 = arith.constant 0 : index
    %c0_47 = arith.constant 0 : index
    %162 = vector.load %arg9[%c0_45, %c0_46, %c0_47] : memref<1x1x128xf32, #tpu.memory_space<vmem>>, vector<1x1x128xf32>
    %163 = vector.shape_cast %162 : vector<1x1x128xf32> to vector<1x128xf32>
    %c0_48 = arith.constant 0 : index
    %c0_49 = arith.constant 0 : index
    %c0_50 = arith.constant 0 : index
    %164 = vector.load %arg10[%c0_48, %c0_49, %c0_50] : memref<1x1x128xf32, #tpu.memory_space<vmem>>, vector<1x1x128xf32>
    %165 = vector.shape_cast %164 : vector<1x1x128xf32> to vector<1x128xf32>
    %cst_51 = arith.constant dense<0.000000e+00> : vector<64xf32>
    %166 = vector.multi_reduction <add>, %161, %cst_51 [1] : vector<64x128xf32> to vector<64xf32>
    %167 = vector.shape_cast %166 : vector<64xf32> to vector<64x1xf32>
    %cst_52 = arith.constant 1.280000e+02 : f32
    %168 = vector.broadcast %cst_52 : f32 to vector<64x1xf32>
    %169 = arith.divf %167, %168 : vector<64x1xf32>
    %170 = vector.broadcast %169 : vector<64x1xf32> to vector<64x128xf32>
    %171 = arith.subf %161, %170 : vector<64x128xf32>
    %172 = arith.mulf %171, %171 : vector<64x128xf32>
    %cst_53 = arith.constant dense<0.000000e+00> : vector<64xf32>
    %173 = vector.multi_reduction <add>, %172, %cst_53 [1] : vector<64x128xf32> to vector<64xf32>
    %174 = vector.shape_cast %173 : vector<64xf32> to vector<64x1xf32>
    %cst_54 = arith.constant 1.280000e+02 : f32
    %175 = vector.broadcast %cst_54 : f32 to vector<64x1xf32>
    %176 = arith.divf %174, %175 : vector<64x1xf32>
    %177 = vector.broadcast %169 : vector<64x1xf32> to vector<64x128xf32>
    %178 = arith.subf %161, %177 : vector<64x128xf32>
    %cst_55 = arith.constant 9.99999974E-6 : f32
    %179 = vector.broadcast %cst_55 : f32 to vector<64x1xf32>
    %180 = arith.addf %176, %179 : vector<64x1xf32>
    %181 = math.rsqrt %180 : vector<64x1xf32>
    %182 = vector.broadcast %181 : vector<64x1xf32> to vector<64x128xf32>
    %183 = arith.mulf %178, %182 : vector<64x128xf32>
    %184 = vector.broadcast %163 : vector<1x128xf32> to vector<64x128xf32>
    %185 = arith.mulf %183, %184 : vector<64x128xf32>
    %186 = vector.broadcast %165 : vector<1x128xf32> to vector<64x128xf32>
    %187 = arith.addf %185, %186 : vector<64x128xf32>
    %188 = arith.truncf %187 : vector<64x128xf32> to vector<64x128xbf16>
    %c0_56 = arith.constant 0 : index
    %c0_57 = arith.constant 0 : index
    %c0_58 = arith.constant 0 : index
    %189 = vector.load %arg11[%c0_56, %c0_57, %c0_58] : memref<1x128x512xbf16, #tpu.memory_space<vmem>>, vector<1x128x512xbf16>
    %190 = vector.shape_cast %189 : vector<1x128x512xbf16> to vector<128x512xbf16>
    %cst_59 = arith.constant dense<0.000000e+00> : vector<64x512xf32>
    %191 = tpu.matmul %188, %190, %cst_59 {dimension_numbers = #tpu.dot_dimension_numbers<[1], [0], [0], [1], [0, 0, 1, 1], [], []>} : vector<64x128xbf16>, vector<128x512xbf16>, vector<64x512xf32> -> vector<64x512xf32>
    %c0_60 = arith.constant 0 : index
    %c0_61 = arith.constant 0 : index
    %c0_62 = arith.constant 0 : index
    %192 = vector.load %arg12[%c0_60, %c0_61, %c0_62] : memref<1x1x512xf32, #tpu.memory_space<vmem>>, vector<1x1x512xf32>
    %193 = vector.shape_cast %192 : vector<1x1x512xf32> to vector<1x512xf32>
    %194 = vector.broadcast %193 : vector<1x512xf32> to vector<64x512xf32>
    %195 = arith.addf %191, %194 : vector<64x512xf32>
    %cst_63 = arith.constant 0.000000e+00 : f32
    %196 = vector.broadcast %cst_63 : f32 to vector<64x512xf32>
    %197 = arith.maximumf %195, %196 : vector<64x512xf32>
    %198 = arith.truncf %197 : vector<64x512xf32> to vector<64x512xbf16>
    %c0_64 = arith.constant 0 : index
    %c0_65 = arith.constant 0 : index
    %c0_66 = arith.constant 0 : index
    %199 = vector.load %arg13[%c0_64, %c0_65, %c0_66] : memref<1x512x128xbf16, #tpu.memory_space<vmem>>, vector<1x512x128xbf16>
    %200 = vector.shape_cast %199 : vector<1x512x128xbf16> to vector<512x128xbf16>
    %cst_67 = arith.constant dense<0.000000e+00> : vector<64x128xf32>
    %201 = tpu.matmul %198, %200, %cst_67 {dimension_numbers = #tpu.dot_dimension_numbers<[1], [0], [0], [1], [0, 0, 1, 1], [], []>} : vector<64x512xbf16>, vector<512x128xbf16>, vector<64x128xf32> -> vector<64x128xf32>
    %c0_68 = arith.constant 0 : index
    %c0_69 = arith.constant 0 : index
    %c0_70 = arith.constant 0 : index
    %202 = vector.load %arg14[%c0_68, %c0_69, %c0_70] : memref<1x1x128xf32, #tpu.memory_space<vmem>>, vector<1x1x128xf32>
    %203 = vector.shape_cast %202 : vector<1x1x128xf32> to vector<1x128xf32>
    %204 = vector.broadcast %203 : vector<1x128xf32> to vector<64x128xf32>
    %205 = arith.addf %201, %204 : vector<64x128xf32>
    %206 = arith.addf %161, %205 : vector<64x128xf32>
    %c0_71 = arith.constant 0 : index
    %c0_72 = arith.constant 0 : index
    %207 = vector.load %arg20[%c0_71, %c0_72] : memref<64x128xf32, #tpu.memory_space<vmem>>, vector<64x128xf32>
    tpu.vector_store %arg20[%c0_71, %c0_72], %206 {strides = array<i32>} : memref<64x128xf32, #tpu.memory_space<vmem>>, vector<64x128xf32>,
    %c3_i32 = arith.constant 3 : i32
    %208 = arith.cmpi eq, %arg0, %c3_i32 : i32
    %209 = arith.extui %208 : i1 to i32
    %c0_i32_73 = arith.constant 0 : i32
    %210 = arith.cmpi ne, %209, %c0_i32_73 : i32
    scf.if %210 {
      %c0_74 = arith.constant 0 : index
      %c0_75 = arith.constant 0 : index
      %211 = vector.load %arg15[%c0_74, %c0_75] : memref<1x128xf32, #tpu.memory_space<vmem>>, vector<1x128xf32>
      %c0_76 = arith.constant 0 : index
      %c0_77 = arith.constant 0 : index
      %212 = vector.load %arg16[%c0_76, %c0_77] : memref<1x128xf32, #tpu.memory_space<vmem>>, vector<1x128xf32>
      %cst_78 = arith.constant dense<0.000000e+00> : vector<64xf32>
      %213 = vector.multi_reduction <add>, %206, %cst_78 [1] : vector<64x128xf32> to vector<64xf32>
      %214 = vector.shape_cast %213 : vector<64xf32> to vector<64x1xf32>
      %cst_79 = arith.constant 1.280000e+02 : f32
      %215 = vector.broadcast %cst_79 : f32 to vector<64x1xf32>
      %216 = arith.divf %214, %215 : vector<64x1xf32>
      %217 = vector.broadcast %216 : vector<64x1xf32> to vector<64x128xf32>
      %218 = arith.subf %206, %217 : vector<64x128xf32>
      %219 = arith.mulf %218, %218 : vector<64x128xf32>
      %cst_80 = arith.constant dense<0.000000e+00> : vector<64xf32>
      %220 = vector.multi_reduction <add>, %219, %cst_80 [1] : vector<64x128xf32> to vector<64xf32>
      %221 = vector.shape_cast %220 : vector<64xf32> to vector<64x1xf32>
      %cst_81 = arith.constant 1.280000e+02 : f32
      %222 = vector.broadcast %cst_81 : f32 to vector<64x1xf32>
      %223 = arith.divf %221, %222 : vector<64x1xf32>
      %224 = vector.broadcast %216 : vector<64x1xf32> to vector<64x128xf32>
      %225 = arith.subf %206, %224 : vector<64x128xf32>
      %cst_82 = arith.constant 9.99999974E-6 : f32
      %226 = vector.broadcast %cst_82 : f32 to vector<64x1xf32>
      %227 = arith.addf %223, %226 : vector<64x1xf32>
      %228 = math.rsqrt %227 : vector<64x1xf32>
      %229 = vector.broadcast %228 : vector<64x1xf32> to vector<64x128xf32>
      %230 = arith.mulf %225, %229 : vector<64x128xf32>
      %231 = vector.broadcast %211 : vector<1x128xf32> to vector<64x128xf32>
      %232 = arith.mulf %230, %231 : vector<64x128xf32>
      %233 = vector.broadcast %212 : vector<1x128xf32> to vector<64x128xf32>
      %234 = arith.addf %232, %233 : vector<64x128xf32>
      %235 = arith.truncf %234 : vector<64x128xf32> to vector<64x128xbf16>
      %c0_83 = arith.constant 0 : index
      %c0_84 = arith.constant 0 : index
      %236 = vector.load %arg17[%c0_83, %c0_84] : memref<128x128xbf16, #tpu.memory_space<vmem>>, vector<128x128xbf16>
      %cst_85 = arith.constant dense<0.000000e+00> : vector<64x128xf32>
      %237 = tpu.matmul %235, %236, %cst_85 {dimension_numbers = #tpu.dot_dimension_numbers<[1], [0], [0], [1], [0, 0, 1, 1], [], []>} : vector<64x128xbf16>, vector<128x128xbf16>, vector<64x128xf32> -> vector<64x128xf32>
      %c0_86 = arith.constant 0 : index
      %c0_87 = arith.constant 0 : index
      %238 = vector.load %arg18[%c0_86, %c0_87] : memref<1x128xf32, #tpu.memory_space<vmem>>, vector<1x128xf32>
      %239 = vector.broadcast %238 : vector<1x128xf32> to vector<64x128xf32>
      %240 = arith.addf %237, %239 : vector<64x128xf32>
      %c0_88 = arith.constant 0 : index
      %c0_89 = arith.constant 0 : index
      %241 = vector.load %arg19[%c0_88, %c0_89] : memref<64x128xf32, #tpu.memory_space<vmem>>, vector<64x128xf32>
      tpu.vector_store %arg19[%c0_88, %c0_89], %240 {strides = array<i32>} : memref<64x128xf32, #tpu.memory_space<vmem>>, vector<64x128xf32>,
    } else {
    }
    return
  }
  func.func @transform_0(%arg0: i32) -> (i32, i32) {
    %c0_i32 = arith.constant 0 : i32
    %c0_i32_0 = arith.constant 0 : i32
    %c0_i32_1 = arith.constant 0 : i32
    return %c0_i32, %c0_i32_0 : i32, i32
  }
  func.func @transform_1(%arg0: i32) -> (i32, i32) {
    %c0_i32 = arith.constant 0 : i32
    %c0_i32_0 = arith.constant 0 : i32
    %c0_i32_1 = arith.constant 0 : i32
    return %c0_i32, %c0_i32_0 : i32, i32
  }
  func.func @transform_2(%arg0: i32) -> (i32, i32) {
    %c0_i32 = arith.constant 0 : i32
    %c0_i32_0 = arith.constant 0 : i32
    %c0_i32_1 = arith.constant 0 : i32
    return %c0_i32, %c0_i32_0 : i32, i32
  }
  func.func @transform_3(%arg0: i32) -> (i32, i32, i32) {
    %c0_i32 = arith.constant 0 : i32
    %c0_i32_0 = arith.constant 0 : i32
    %c0_i32_1 = arith.constant 0 : i32
    return %arg0, %c0_i32, %c0_i32_0 : i32, i32, i32
  }
  func.func @transform_4(%arg0: i32) -> (i32, i32, i32) {
    %c0_i32 = arith.constant 0 : i32
    %c0_i32_0 = arith.constant 0 : i32
    %c0_i32_1 = arith.constant 0 : i32
    return %arg0, %c0_i32, %c0_i32_0 : i32, i32, i32
  }
  func.func @transform_5(%arg0: i32) -> (i32, i32, i32) {
    %c0_i32 = arith.constant 0 : i32
    %c0_i32_0 = arith.constant 0 : i32
    %c0_i32_1 = arith.constant 0 : i32
    return %arg0, %c0_i32, %c0_i32_0 : i32, i32, i32
  }
  func.func @transform_6(%arg0: i32) -> (i32, i32, i32) {
    %c0_i32 = arith.constant 0 : i32
    %c0_i32_0 = arith.constant 0 : i32
    %c0_i32_1 = arith.constant 0 : i32
    return %arg0, %c0_i32, %c0_i32_0 : i32, i32, i32
  }
  func.func @transform_7(%arg0: i32) -> (i32, i32, i32) {
    %c0_i32 = arith.constant 0 : i32
    %c0_i32_0 = arith.constant 0 : i32
    %c0_i32_1 = arith.constant 0 : i32
    return %arg0, %c0_i32, %c0_i32_0 : i32, i32, i32
  }
  func.func @transform_8(%arg0: i32) -> (i32, i32, i32) {
    %c0_i32 = arith.constant 0 : i32
    %c0_i32_0 = arith.constant 0 : i32
    %c0_i32_1 = arith.constant 0 : i32
    return %arg0, %c0_i32, %c0_i32_0 : i32, i32, i32
  }
  func.func @transform_9(%arg0: i32) -> (i32, i32, i32) {
    %c0_i32 = arith.constant 0 : i32
    %c0_i32_0 = arith.constant 0 : i32
    %c0_i32_1 = arith.constant 0 : i32
    return %arg0, %c0_i32, %c0_i32_0 : i32, i32, i32
  }
  func.func @transform_10(%arg0: i32) -> (i32, i32, i32) {
    %c0_i32 = arith.constant 0 : i32
    %c0_i32_0 = arith.constant 0 : i32
    %c0_i32_1 = arith.constant 0 : i32
    return %arg0, %c0_i32, %c0_i32_0 : i32, i32, i32
  }
  func.func @transform_11(%arg0: i32) -> (i32, i32, i32) {
    %c0_i32 = arith.constant 0 : i32
    %c0_i32_0 = arith.constant 0 : i32
    %c0_i32_1 = arith.constant 0 : i32
    return %arg0, %c0_i32, %c0_i32_0 : i32, i32, i32
  }
  func.func @transform_12(%arg0: i32) -> (i32, i32, i32) {
    %c0_i32 = arith.constant 0 : i32
    %c0_i32_0 = arith.constant 0 : i32
    %c0_i32_1 = arith.constant 0 : i32
    return %arg0, %c0_i32, %c0_i32_0 : i32, i32, i32
  }
  func.func @transform_13(%arg0: i32) -> (i32, i32, i32) {
    %c0_i32 = arith.constant 0 : i32
    %c0_i32_0 = arith.constant 0 : i32
    %c0_i32_1 = arith.constant 0 : i32
    return %arg0, %c0_i32, %c0_i32_0 : i32, i32, i32
  }
  func.func @transform_14(%arg0: i32) -> (i32, i32) {
    %c0_i32 = arith.constant 0 : i32
    %c0_i32_0 = arith.constant 0 : i32
    %c0_i32_1 = arith.constant 0 : i32
    return %c0_i32, %c0_i32_0 : i32, i32
  }
  func.func @transform_15(%arg0: i32) -> (i32, i32) {
    %c0_i32 = arith.constant 0 : i32
    %c0_i32_0 = arith.constant 0 : i32
    %c0_i32_1 = arith.constant 0 : i32
    return %c0_i32, %c0_i32_0 : i32, i32
  }
  func.func @transform_16(%arg0: i32) -> (i32, i32) {
    %c0_i32 = arith.constant 0 : i32
    %c0_i32_0 = arith.constant 0 : i32
    %c0_i32_1 = arith.constant 0 : i32
    return %c0_i32, %c0_i32_0 : i32, i32
  }
  func.func @transform_17(%arg0: i32) -> (i32, i32) {
    %c0_i32 = arith.constant 0 : i32
    %c0_i32_0 = arith.constant 0 : i32
    %c0_i32_1 = arith.constant 0 : i32
    return %c0_i32, %c0_i32_0 : i32, i32
  }
  func.func @transform_18(%arg0: i32) -> (i32, i32) {
    %c0_i32 = arith.constant 0 : i32
    %c0_i32_0 = arith.constant 0 : i32
    %c0_i32_1 = arith.constant 0 : i32
    return %c0_i32, %c0_i32_0 : i32, i32
  }
}

</mosaic_0001>

<llo_original>
// kernel: forward.1
$region0: #{forward.1}
  #allocation0 [shape = 'u32[]', space=smem, size = 0x4, offset = 0x4, fixed_abs, tag = 'smem constant byte address 0x4 - core index']
  #allocation1 [shape = 'u32[144,128]{1,0:T(1,128)}', space=vmem, size = 0x12000, scoped, tag = 'internal scratch']
  #allocation2 [shape = 'f32[64,128]{1,0:T(8,128)}', space=vmem, size = 0x8000, scoped, tag = 'scratch operand']
  %s0 = inlined_call_operand.vmem [shape: s32[64,1], index: 0, kind: input, shape index: {}]
  %s1 = inlined_call_operand.vmem [shape: f32[128,128], index: 1, kind: input, shape index: {}]
  %s2 = inlined_call_operand.vmem [shape: f32[32,128], index: 2, kind: input, shape index: {}]
  %s3 = inlined_call_operand.vmem [shape: f32[4,1,128], index: 3, kind: input, shape index: {}]
  %s4 = inlined_call_operand.vmem [shape: f32[4,1,128], index: 4, kind: input, shape index: {}]
  %s5 = inlined_call_operand.vmem [shape: bf16[4,128,384], index: 5, kind: input, shape index: {}]
  %s6 = inlined_call_operand.vmem [shape: bf16[4,128,128], index: 6, kind: input, shape index: {}]
  %s7 = inlined_call_operand.vmem [shape: f32[4,1,128], index: 7, kind: input, shape index: {}]
  %s8 = inlined_call_operand.vmem [shape: f32[4,1,128], index: 8, kind: input, shape index: {}]
  %s9 = inlined_call_operand.vmem [shape: f32[4,1,128], index: 9, kind: input, shape index: {}]
  %s10 = inlined_call_operand.vmem [shape: bf16[4,128,512], index: 10, kind: input, shape index: {}]
  %s11 = inlined_call_operand.vmem [shape: f32[4,1,512], index: 11, kind: input, shape index: {}]
  %s12 = inlined_call_operand.vmem [shape: bf16[4,512,128], index: 12, kind: input, shape index: {}]
  %s13 = inlined_call_operand.vmem [shape: f32[4,1,128], index: 13, kind: input, shape index: {}]
  %s14 = inlined_call_operand.vmem [shape: f32[1,128], index: 14, kind: input, shape index: {}]
  %s15 = inlined_call_operand.vmem [shape: f32[1,128], index: 15, kind: input, shape index: {}]
  %s16 = inlined_call_operand.vmem [shape: bf16[128,128], index: 16, kind: input, shape index: {}]
  %s17 = inlined_call_operand.vmem [shape: f32[1,128], index: 17, kind: input, shape index: {}]
  %s18 = inlined_call_operand.hbm [shape: f32[64,128], index: 18, kind: output, shape index: {}]
  %s19 = sld [smem:[#allocation0]]
  $region113: #{forward.1} parent=0
    _
  %s21 = ssub.s32 1, %s19
  %s22 = scalar_select 0, %s21, %s19
  $region1: #{forward.1} parent=0
    #allocation3 [shape = 'u8[32768]{0}', space=vmem, size = 0x8000, scoped, tag = 'output window, operand 0, single buffered']
    #allocation4 [shape = 's32[2]{0}', space=sflag, size = 0x8, scoped, tag = 'scoped memory for forward.1']
    %23 = vsyncpa [#allocation4], 0
    loop: start=0, step=1, limit=6
    $region2: #{forward.1} parent=1 // loop_pre_header
      _
    $region3: #{forward.1} parent=1 // loop_header
      %s25 = sphi 0, %s29
      %p26 = scmp.ge.s32.totalorder %s25, 6
      %s33 = sphi 0, %s33
      %s35 = sphi 0, %s33
      %s36 = sphi 0, %s35
      %s50 = sphi 0, %s36
      %s54 = sphi 0, %s54
      %s56 = sphi 0, %s54
      %s57 = sphi 0, %s56
      %s71 = sphi 0, %s57
      %s75 = sphi 0, %s75
      %s77 = sphi 0, %s75
      %s78 = sphi 0, %s77
      %s92 = sphi 0, %s78
      %s98 = sphi 0, %s100
      %s101 = sphi 0, %s98
      %s102 = sphi 0, %s101
      %s118 = sphi 0, %s102
      %s124 = sphi 0, %s126
      %s127 = sphi 0, %s124
      %s128 = sphi 0, %s127
      %s144 = sphi 0, %s128
      %s150 = sphi 0, %s152
      %s153 = sphi 0, %s150
      %s154 = sphi 0, %s153
      %s170 = sphi 0, %s154
      %s176 = sphi 0, %s178
      %s179 = sphi 0, %s176
      %s180 = sphi 0, %s179
      %s196 = sphi 0, %s180
      %s202 = sphi 0, %s204
      %s205 = sphi 0, %s202
      %s206 = sphi 0, %s205
      %s222 = sphi 0, %s206
      %s228 = sphi 0, %s230
      %s231 = sphi 0, %s228
      %s232 = sphi 0, %s231
      %s248 = sphi 0, %s232
      %s254 = sphi 0, %s256
      %s257 = sphi 0, %s254
      %s258 = sphi 0, %s257
      %s274 = sphi 0, %s258
      %s280 = sphi 0, %s282
      %s283 = sphi 0, %s280
      %s284 = sphi 0, %s283
      %s300 = sphi 0, %s284
      %s306 = sphi 0, %s308
      %s309 = sphi 0, %s306
      %s310 = sphi 0, %s309
      %s326 = sphi 0, %s310
      %s332 = sphi 0, %s334
      %s335 = sphi 0, %s332
      %s336 = sphi 0, %s335
      %s352 = sphi 0, %s336
      %s358 = sphi 0, %s360
      %s361 = sphi 0, %s358
      %s362 = sphi 0, %s361
      %s378 = sphi 0, %s362
      %s382 = sphi 0, %s382
      %s384 = sphi 0, %s382
      %s385 = sphi 0, %s384
      %s399 = sphi 0, %s385
      %s403 = sphi 0, %s403
      %s405 = sphi 0, %s403
      %s406 = sphi 0, %s405
      %s420 = sphi 0, %s406
      %s424 = sphi 0, %s424
      %s426 = sphi 0, %s424
      %s427 = sphi 0, %s426
      %s441 = sphi 0, %s427
      %s445 = sphi 0, %s445
      %s447 = sphi 0, %s445
      %s448 = sphi 0, %s447
      %s462 = sphi 0, %s448
      %s466 = sphi 0, %s466
      %s468 = sphi 0, %s466
      %s469 = sphi 0, %s468
      %s483 = sphi 0, %s469
    $region4: #{forward.1} parent=1 // loop_header_branch
      %28 = sbr.rel (%p26) target = $region8
    $region5: #{forward.1} parent=1 // loop_body
      %s30 = ssub.s32 %s25, 1
      %s31 = ssub.s32 %s25, 2
      %s32 = sadd.s32 %s25, 1
      %s34 = sadd.s32 %s33, 1
      %p37 = scmp.eq.s32.totalorder %s25, 3
      %p38 = scmp.ne.s32.totalorder %s33, %s35
      %p39 = scmp.eq.s32.totalorder %s25, 0
      %p40 = por %p38, %p39
      %p41 = scmp.ne.s32.totalorder %s33, %s35
      %p42 = scmp.eq.s32.totalorder %s30, 3
      %p43 = por %p41, %p42
      %p44 = scmp.ne.s32.totalorder %s35, %s36
      %p45 = scmp.eq.s32.totalorder %s30, 0
      %p46 = por %p44, %p45
      %p47 = scmp.ne.s32.totalorder %s35, %s36
      %p48 = scmp.eq.s32.totalorder %s31, 3
      %p49 = por %p47, %p48
      %p51 = scmp.ne.s32.totalorder %s36, %s50
      %p52 = scmp.eq.s32.totalorder %s31, 0
      %p53 = por %p51, %p52
      %s55 = sadd.s32 %s54, 1
      %p58 = scmp.eq.s32.totalorder %s25, 3
      %p59 = scmp.ne.s32.totalorder %s54, %s56
      %p60 = scmp.eq.s32.totalorder %s25, 0
      %p61 = por %p59, %p60
      %p62 = scmp.ne.s32.totalorder %s54, %s56
      %p63 = scmp.eq.s32.totalorder %s30, 3
      %p64 = por %p62, %p63
      %p65 = scmp.ne.s32.totalorder %s56, %s57
      %p66 = scmp.eq.s32.totalorder %s30, 0
      %p67 = por %p65, %p66
      %p68 = scmp.ne.s32.totalorder %s56, %s57
      %p69 = scmp.eq.s32.totalorder %s31, 3
      %p70 = por %p68, %p69
      %p72 = scmp.ne.s32.totalorder %s57, %s71
      %p73 = scmp.eq.s32.totalorder %s31, 0
      %p74 = por %p72, %p73
      %s76 = sadd.s32 %s75, 1
      %p79 = scmp.eq.s32.totalorder %s25, 3
      %p80 = scmp.ne.s32.totalorder %s75, %s77
      %p81 = scmp.eq.s32.totalorder %s25, 0
      %p82 = por %p80, %p81
      %p83 = scmp.ne.s32.totalorder %s75, %s77
      %p84 = scmp.eq.s32.totalorder %s30, 3
      %p85 = por %p83, %p84
      %p86 = scmp.ne.s32.totalorder %s77, %s78
      %p87 = scmp.eq.s32.totalorder %s30, 0
      %p88 = por %p86, %p87
      %p89 = scmp.ne.s32.totalorder %s77, %s78
      %p90 = scmp.eq.s32.totalorder %s31, 3
      %p91 = por %p89, %p90
      %p93 = scmp.ne.s32.totalorder %s78, %s92
      %p94 = scmp.eq.s32.totalorder %s31, 0
      %p95 = por %p93, %p94
      %s96 = ssub.s32 %s25, %s32
      %p97 = scmp.eq.s32.totalorder %s96, 0
      %s99 = sadd.s32 %s98, 1
      %s100 = scalar_select %p97, %s98, %s99
      %p103 = pneg %p97
      %p104 = scmp.eq.s32.totalorder %s25, 3
      %p105 = por %p103, %p104
      %p106 = scmp.ne.s32.totalorder %s98, %s101
      %p107 = scmp.eq.s32.totalorder %s25, 0
      %p108 = por %p106, %p107
      %p109 = scmp.ne.s32.totalorder %s98, %s101
      %p110 = scmp.eq.s32.totalorder %s30, 3
      %p111 = por %p109, %p110
      %p112 = scmp.ne.s32.totalorder %s101, %s102
      %p113 = scmp.eq.s32.totalorder %s30, 0
      %p114 = por %p112, %p113
      %p115 = scmp.ne.s32.totalorder %s101, %s102
      %p116 = scmp.eq.s32.totalorder %s31, 3
      %p117 = por %p115, %p116
      %p119 = scmp.ne.s32.totalorder %s102, %s118
      %p120 = scmp.eq.s32.totalorder %s31, 0
      %p121 = por %p119, %p120
      %s122 = ssub.s32 %s25, %s32
      %p123 = scmp.eq.s32.totalorder %s122, 0
      %s125 = sadd.s32 %s124, 1
      %s126 = scalar_select %p123, %s124, %s125
      %p129 = pneg %p123
      %p130 = scmp.eq.s32.totalorder %s25, 3
      %p131 = por %p129, %p130
      %p132 = scmp.ne.s32.totalorder %s124, %s127
      %p133 = scmp.eq.s32.totalorder %s25, 0
      %p134 = por %p132, %p133
      %p135 = scmp.ne.s32.totalorder %s124, %s127
      %p136 = scmp.eq.s32.totalorder %s30, 3
      %p137 = por %p135, %p136
      %p138 = scmp.ne.s32.totalorder %s127, %s128
      %p139 = scmp.eq.s32.totalorder %s30, 0
      %p140 = por %p138, %p139
      %p141 = scmp.ne.s32.totalorder %s127, %s128
      %p142 = scmp.eq.s32.totalorder %s31, 3
      %p143 = por %p141, %p142
      %p145 = scmp.ne.s32.totalorder %s128, %s144
      %p146 = scmp.eq.s32.totalorder %s31, 0
      %p147 = por %p145, %p146
      %s148 = ssub.s32 %s25, %s32
      %p149 = scmp.eq.s32.totalorder %s148, 0
      %s151 = sadd.s32 %s150, 1
      %s152 = scalar_select %p149, %s150, %s151
      %p155 = pneg %p149
      %p156 = scmp.eq.s32.totalorder %s25, 3
      %p157 = por %p155, %p156
      %p158 = scmp.ne.s32.totalorder %s150, %s153
      %p159 = scmp.eq.s32.totalorder %s25, 0
      %p160 = por %p158, %p159
      %p161 = scmp.ne.s32.totalorder %s150, %s153
      %p162 = scmp.eq.s32.totalorder %s30, 3
      %p163 = por %p161, %p162
      %p164 = scmp.ne.s32.totalorder %s153, %s154
      %p165 = scmp.eq.s32.totalorder %s30, 0
      %p166 = por %p164, %p165
      %p167 = scmp.ne.s32.totalorder %s153, %s154
      %p168 = scmp.eq.s32.totalorder %s31, 3
      %p169 = por %p167, %p168
      %p171 = scmp.ne.s32.totalorder %s154, %s170
      %p172 = scmp.eq.s32.totalorder %s31, 0
      %p173 = por %p171, %p172
      %s174 = ssub.s32 %s25, %s32
      %p175 = scmp.eq.s32.totalorder %s174, 0
      %s177 = sadd.s32 %s176, 1
      %s178 = scalar_select %p175, %s176, %s177
      %p181 = pneg %p175
      %p182 = scmp.eq.s32.totalorder %s25, 3
      %p183 = por %p181, %p182
      %p184 = scmp.ne.s32.totalorder %s176, %s179
      %p185 = scmp.eq.s32.totalorder %s25, 0
      %p186 = por %p184, %p185
      %p187 = scmp.ne.s32.totalorder %s176, %s179
      %p188 = scmp.eq.s32.totalorder %s30, 3
      %p189 = por %p187, %p188
      %p190 = scmp.ne.s32.totalorder %s179, %s180
      %p191 = scmp.eq.s32.totalorder %s30, 0
      %p192 = por %p190, %p191
      %p193 = scmp.ne.s32.totalorder %s179, %s180
      %p194 = scmp.eq.s32.totalorder %s31, 3
      %p195 = por %p193, %p194
      %p197 = scmp.ne.s32.totalorder %s180, %s196
      %p198 = scmp.eq.s32.totalorder %s31, 0
      %p199 = por %p197, %p198
      %s200 = ssub.s32 %s25, %s32
      %p201 = scmp.eq.s32.totalorder %s200, 0
      %s203 = sadd.s32 %s202, 1
      %s204 = scalar_select %p201, %s202, %s203
      %p207 = pneg %p201
      %p208 = scmp.eq.s32.totalorder %s25, 3
      %p209 = por %p207, %p208
      %p210 = scmp.ne.s32.totalorder %s202, %s205
      %p211 = scmp.eq.s32.totalorder %s25, 0
      %p212 = por %p210, %p211
      %p213 = scmp.ne.s32.totalorder %s202, %s205
      %p214 = scmp.eq.s32.totalorder %s30, 3
      %p215 = por %p213, %p214
      %p216 = scmp.ne.s32.totalorder %s205, %s206
      %p217 = scmp.eq.s32.totalorder %s30, 0
      %p218 = por %p216, %p217
      %p219 = scmp.ne.s32.totalorder %s205, %s206
      %p220 = scmp.eq.s32.totalorder %s31, 3
      %p221 = por %p219, %p220
      %p223 = scmp.ne.s32.totalorder %s206, %s222
      %p224 = scmp.eq.s32.totalorder %s31, 0
      %p225 = por %p223, %p224
      %s226 = ssub.s32 %s25, %s32
      %p227 = scmp.eq.s32.totalorder %s226, 0
      %s229 = sadd.s32 %s228, 1
      %s230 = scalar_select %p227, %s228, %s229
      %p233 = pneg %p227
      %p234 = scmp.eq.s32.totalorder %s25, 3
      %p235 = por %p233, %p234
      %p236 = scmp.ne.s32.totalorder %s228, %s231
      %p237 = scmp.eq.s32.totalorder %s25, 0
      %p238 = por %p236, %p237
      %p239 = scmp.ne.s32.totalorder %s228, %s231
      %p240 = scmp.eq.s32.totalorder %s30, 3
      %p241 = por %p239, %p240
      %p242 = scmp.ne.s32.totalorder %s231, %s232
      %p243 = scmp.eq.s32.totalorder %s30, 0
      %p244 = por %p242, %p243
      %p245 = scmp.ne.s32.totalorder %s231, %s232
      %p246 = scmp.eq.s32.totalorder %s31, 3
      %p247 = por %p245, %p246
      %p249 = scmp.ne.s32.totalorder %s232, %s248
      %p250 = scmp.eq.s32.totalorder %s31, 0
      %p251 = por %p249, %p250
      %s252 = ssub.s32 %s25, %s32
      %p253 = scmp.eq.s32.totalorder %s252, 0
      %s255 = sadd.s32 %s254, 1
      %s256 = scalar_select %p253, %s254, %s255
      %p259 = pneg %p253
      %p260 = scmp.eq.s32.totalorder %s25, 3
      %p261 = por %p259, %p260
      %p262 = scmp.ne.s32.totalorder %s254, %s257
      %p263 = scmp.eq.s32.totalorder %s25, 0
      %p264 = por %p262, %p263
      %p265 = scmp.ne.s32.totalorder %s254, %s257
      %p266 = scmp.eq.s32.totalorder %s30, 3
      %p267 = por %p265, %p266
      %p268 = scmp.ne.s32.totalorder %s257, %s258
      %p269 = scmp.eq.s32.totalorder %s30, 0
      %p270 = por %p268, %p269
      %p271 = scmp.ne.s32.totalorder %s257, %s258
      %p272 = scmp.eq.s32.totalorder %s31, 3
      %p273 = por %p271, %p272
      %p275 = scmp.ne.s32.totalorder %s258, %s274
      %p276 = scmp.eq.s32.totalorder %s31, 0
      %p277 = por %p275, %p276
      %s278 = ssub.s32 %s25, %s32
      %p279 = scmp.eq.s32.totalorder %s278, 0
      %s281 = sadd.s32 %s280, 1
      %s282 = scalar_select %p279, %s280, %s281
      %p285 = pneg %p279
      %p286 = scmp.eq.s32.totalorder %s25, 3
      %p287 = por %p285, %p286
      %p288 = scmp.ne.s32.totalorder %s280, %s283
      %p289 = scmp.eq.s32.totalorder %s25, 0
      %p290 = por %p288, %p289
      %p291 = scmp.ne.s32.totalorder %s280, %s283
      %p292 = scmp.eq.s32.totalorder %s30, 3
      %p293 = por %p291, %p292
      %p294 = scmp.ne.s32.totalorder %s283, %s284
      %p295 = scmp.eq.s32.totalorder %s30, 0
      %p296 = por %p294, %p295
      %p297 = scmp.ne.s32.totalorder %s283, %s284
      %p298 = scmp.eq.s32.totalorder %s31, 3
      %p299 = por %p297, %p298
      %p301 = scmp.ne.s32.totalorder %s284, %s300
      %p302 = scmp.eq.s32.totalorder %s31, 0
      %p303 = por %p301, %p302
      %s304 = ssub.s32 %s25, %s32
      %p305 = scmp.eq.s32.totalorder %s304, 0
      %s307 = sadd.s32 %s306, 1
      %s308 = scalar_select %p305, %s306, %s307
      %p311 = pneg %p305
      %p312 = scmp.eq.s32.totalorder %s25, 3
      %p313 = por %p311, %p312
      %p314 = scmp.ne.s32.totalorder %s306, %s309
      %p315 = scmp.eq.s32.totalorder %s25, 0
      %p316 = por %p314, %p315
      %p317 = scmp.ne.s32.totalorder %s306, %s309
      %p318 = scmp.eq.s32.totalorder %s30, 3
      %p319 = por %p317, %p318
      %p320 = scmp.ne.s32.totalorder %s309, %s310
      %p321 = scmp.eq.s32.totalorder %s30, 0
      %p322 = por %p320, %p321
      %p323 = scmp.ne.s32.totalorder %s309, %s310
      %p324 = scmp.eq.s32.totalorder %s31, 3
      %p325 = por %p323, %p324
      %p327 = scmp.ne.s32.totalorder %s310, %s326
      %p328 = scmp.eq.s32.totalorder %s31, 0
      %p329 = por %p327, %p328
      %s330 = ssub.s32 %s25, %s32
      %p331 = scmp.eq.s32.totalorder %s330, 0
      %s333 = sadd.s32 %s332, 1
      %s334 = scalar_select %p331, %s332, %s333
      %p337 = pneg %p331
      %p338 = scmp.eq.s32.totalorder %s25, 3
      %p339 = por %p337, %p338
      %p340 = scmp.ne.s32.totalorder %s332, %s335
      %p341 = scmp.eq.s32.totalorder %s25, 0
      %p342 = por %p340, %p341
      %p343 = scmp.ne.s32.totalorder %s332, %s335
      %p344 = scmp.eq.s32.totalorder %s30, 3
      %p345 = por %p343, %p344
      %p346 = scmp.ne.s32.totalorder %s335, %s336
      %p347 = scmp.eq.s32.totalorder %s30, 0
      %p348 = por %p346, %p347
      %p349 = scmp.ne.s32.totalorder %s335, %s336
      %p350 = scmp.eq.s32.totalorder %s31, 3
      %p351 = por %p349, %p350
      %p353 = scmp.ne.s32.totalorder %s336, %s352
      %p354 = scmp.eq.s32.totalorder %s31, 0
      %p355 = por %p353, %p354
      %s356 = ssub.s32 %s25, %s32
      %p357 = scmp.eq.s32.totalorder %s356, 0
      %s359 = sadd.s32 %s358, 1
      %s360 = scalar_select %p357, %s358, %s359
      %p363 = pneg %p357
      %p364 = scmp.eq.s32.totalorder %s25, 3
      %p365 = por %p363, %p364
      %p366 = scmp.ne.s32.totalorder %s358, %s361
      %p367 = scmp.eq.s32.totalorder %s25, 0
      %p368 = por %p366, %p367
      %p369 = scmp.ne.s32.totalorder %s358, %s361
      %p370 = scmp.eq.s32.totalorder %s30, 3
      %p371 = por %p369, %p370
      %p372 = scmp.ne.s32.totalorder %s361, %s362
      %p373 = scmp.eq.s32.totalorder %s30, 0
      %p374 = por %p372, %p373
      %p375 = scmp.ne.s32.totalorder %s361, %s362
      %p376 = scmp.eq.s32.totalorder %s31, 3
      %p377 = por %p375, %p376
      %p379 = scmp.ne.s32.totalorder %s362, %s378
      %p380 = scmp.eq.s32.totalorder %s31, 0
      %p381 = por %p379, %p380
      %s383 = sadd.s32 %s382, 1
      %p386 = scmp.eq.s32.totalorder %s25, 3
      %p387 = scmp.ne.s32.totalorder %s382, %s384
      %p388 = scmp.eq.s32.totalorder %s25, 0
      %p389 = por %p387, %p388
      %p390 = scmp.ne.s32.totalorder %s382, %s384
      %p391 = scmp.eq.s32.totalorder %s30, 3
      %p392 = por %p390, %p391
      %p393 = scmp.ne.s32.totalorder %s384, %s385
      %p394 = scmp.eq.s32.totalorder %s30, 0
      %p395 = por %p393, %p394
      %p396 = scmp.ne.s32.totalorder %s384, %s385
      %p397 = scmp.eq.s32.totalorder %s31, 3
      %p398 = por %p396, %p397
      %p400 = scmp.ne.s32.totalorder %s385, %s399
      %p401 = scmp.eq.s32.totalorder %s31, 0
      %p402 = por %p400, %p401
      %s404 = sadd.s32 %s403, 1
      %p407 = scmp.eq.s32.totalorder %s25, 3
      %p408 = scmp.ne.s32.totalorder %s403, %s405
      %p409 = scmp.eq.s32.totalorder %s25, 0
      %p410 = por %p408, %p409
      %p411 = scmp.ne.s32.totalorder %s403, %s405
      %p412 = scmp.eq.s32.totalorder %s30, 3
      %p413 = por %p411, %p412
      %p414 = scmp.ne.s32.totalorder %s405, %s406
      %p415 = scmp.eq.s32.totalorder %s30, 0
      %p416 = por %p414, %p415
      %p417 = scmp.ne.s32.totalorder %s405, %s406
      %p418 = scmp.eq.s32.totalorder %s31, 3
      %p419 = por %p417, %p418
      %p421 = scmp.ne.s32.totalorder %s406, %s420
      %p422 = scmp.eq.s32.totalorder %s31, 0
      %p423 = por %p421, %p422
      %s425 = sadd.s32 %s424, 1
      %p428 = scmp.eq.s32.totalorder %s25, 3
      %p429 = scmp.ne.s32.totalorder %s424, %s426
      %p430 = scmp.eq.s32.totalorder %s25, 0
      %p431 = por %p429, %p430
      %p432 = scmp.ne.s32.totalorder %s424, %s426
      %p433 = scmp.eq.s32.totalorder %s30, 3
      %p434 = por %p432, %p433
      %p435 = scmp.ne.s32.totalorder %s426, %s427
      %p436 = scmp.eq.s32.totalorder %s30, 0
      %p437 = por %p435, %p436
      %p438 = scmp.ne.s32.totalorder %s426, %s427
      %p439 = scmp.eq.s32.totalorder %s31, 3
      %p440 = por %p438, %p439
      %p442 = scmp.ne.s32.totalorder %s427, %s441
      %p443 = scmp.eq.s32.totalorder %s31, 0
      %p444 = por %p442, %p443
      %s446 = sadd.s32 %s445, 1
      %p449 = scmp.eq.s32.totalorder %s25, 3
      %p450 = scmp.ne.s32.totalorder %s445, %s447
      %p451 = scmp.eq.s32.totalorder %s25, 0
      %p452 = por %p450, %p451
      %p453 = scmp.ne.s32.totalorder %s445, %s447
      %p454 = scmp.eq.s32.totalorder %s30, 3
      %p455 = por %p453, %p454
      %p456 = scmp.ne.s32.totalorder %s447, %s448
      %p457 = scmp.eq.s32.totalorder %s30, 0
      %p458 = por %p456, %p457
      %p459 = scmp.ne.s32.totalorder %s447, %s448
      %p460 = scmp.eq.s32.totalorder %s31, 3
      %p461 = por %p459, %p460
      %p463 = scmp.ne.s32.totalorder %s448, %s462
      %p464 = scmp.eq.s32.totalorder %s31, 0
      %p465 = por %p463, %p464
      %s467 = sadd.s32 %s466, 1
      %p470 = scmp.eq.s32.totalorder %s25, 3
      %p471 = scmp.ne.s32.totalorder %s466, %s468
      %p472 = scmp.eq.s32.totalorder %s25, 0
      %p473 = por %p471, %p472
      %p474 = scmp.ne.s32.totalorder %s466, %s468
      %p475 = scmp.eq.s32.totalorder %s30, 3
      %p476 = por %p474, %p475
      %p477 = scmp.ne.s32.totalorder %s468, %s469
      %p478 = scmp.eq.s32.totalorder %s30, 0
      %p479 = por %p477, %p478
      %p480 = scmp.ne.s32.totalorder %s468, %s469
      %p481 = scmp.eq.s32.totalorder %s31, 3
      %p482 = por %p480, %p481
      %p484 = scmp.ne.s32.totalorder %s469, %s483
      %p485 = scmp.eq.s32.totalorder %s31, 0
      %p486 = por %p484, %p485
      %p487 = scmp.le.s32.totalorder 1, %s25
      %p488 = scmp.lt.s32.totalorder %s25, 5
      %p489 = pnand %p487, %p488
      %p490 = pneg %p489
      // Predicated region
      $region9: #{forward.1} parent=5 // pred_check
        _
      $region10: #{forward.1} parent=5 // pred_check_branch
        %492 = sbr.rel (%p489) target = $region12
      $region11: #{forward.1} parent=5 // pred_region
        %s493 = ssub.s32 %s25, 1
        // Predicated region
        $region13: #{forward.1} parent=11 // pred_check
          %p494 = pneg %p46
        $region14: #{forward.1} parent=11 // pred_check_branch
          %496 = sbr.rel (%p494) target = $region16
        $region15: #{forward.1} parent=11 // pred_region
          _
        $region16: #{forward.1} parent=11 // pred_fallthru
          _
        // Predicated region
        $region17: #{forward.1} parent=11 // pred_check
          %p497 = pneg %p67
        $region18: #{forward.1} parent=11 // pred_check_branch
          %499 = sbr.rel (%p497) target = $region20
        $region19: #{forward.1} parent=11 // pred_region
          _
        $region20: #{forward.1} parent=11 // pred_fallthru
          _
        // Predicated region
        $region21: #{forward.1} parent=11 // pred_check
          %p500 = pneg %p88
        $region22: #{forward.1} parent=11 // pred_check_branch
          %502 = sbr.rel (%p500) target = $region24
        $region23: #{forward.1} parent=11 // pred_region
          _
        $region24: #{forward.1} parent=11 // pred_fallthru
          _
        // Predicated region
        $region25: #{forward.1} parent=11 // pred_check
          %p503 = pneg %p395
        $region26: #{forward.1} parent=11 // pred_check_branch
          %505 = sbr.rel (%p503) target = $region28
        $region27: #{forward.1} parent=11 // pred_region
          _
        $region28: #{forward.1} parent=11 // pred_fallthru
          _
        // Predicated region
        $region29: #{forward.1} parent=11 // pred_check
          %p506 = pneg %p416
        $region30: #{forward.1} parent=11 // pred_check_branch
          %508 = sbr.rel (%p506) target = $region32
        $region31: #{forward.1} parent=11 // pred_region
          _
        $region32: #{forward.1} parent=11 // pred_fallthru
          _
        // Predicated region
        $region33: #{forward.1} parent=11 // pred_check
          %p509 = pneg %p437
        $region34: #{forward.1} parent=11 // pred_check_branch
          %511 = sbr.rel (%p509) target = $region36
        $region35: #{forward.1} parent=11 // pred_region
          _
        $region36: #{forward.1} parent=11 // pred_fallthru
          _
        // Predicated region
        $region37: #{forward.1} parent=11 // pred_check
          %p512 = pneg %p458
        $region38: #{forward.1} parent=11 // pred_check_branch
          %514 = sbr.rel (%p512) target = $region40
        $region39: #{forward.1} parent=11 // pred_region
          _
        $region40: #{forward.1} parent=11 // pred_fallthru
          _
      $region12: #{forward.1} parent=5 // pred_fallthru
        _
      %p515 = scmp.lt.s32.totalorder %s25, 4
      // Predicated region
      $region41: #{forward.1} parent=5 // pred_check
        %p516 = pneg %p515
      $region42: #{forward.1} parent=5 // pred_check_branch
        %518 = sbr.rel (%p516) target = $region44
      $region43: #{forward.1} parent=5 // pred_region
        // Predicated region
        $region45: #{forward.1} parent=43 // pred_check
          %p519 = pneg %p108
        $region46: #{forward.1} parent=43 // pred_check_branch
          %521 = sbr.rel (%p519) target = $region48
        $region47: #{forward.1} parent=43 // pred_region
          %p522 = scmp.lt.s32.totalorder %s25, 3
          %s523 = scalar_select %p522, %s25, 3
          %s524 = scalar_lea.vmem %s3, %s523
        $region48: #{forward.1} parent=43 // pred_fallthru
          _
        // Predicated region
        $region49: #{forward.1} parent=43 // pred_check
          %p525 = pneg %p134
        $region50: #{forward.1} parent=43 // pred_check_branch
          %527 = sbr.rel (%p525) target = $region52
        $region51: #{forward.1} parent=43 // pred_region
          %p528 = scmp.lt.s32.totalorder %s25, 3
          %s529 = scalar_select %p528, %s25, 3
          %s530 = scalar_lea.vmem %s4, %s529
        $region52: #{forward.1} parent=43 // pred_fallthru
          _
        // Predicated region
        $region53: #{forward.1} parent=43 // pred_check
          %p531 = pneg %p160
        $region54: #{forward.1} parent=43 // pred_check_branch
          %533 = sbr.rel (%p531) target = $region56
        $region55: #{forward.1} parent=43 // pred_region
          %p534 = scmp.lt.s32.totalorder %s25, 3
          %s535 = scalar_select %p534, %s25, 3
          %s536 = smul.addr %s535, 48
          %s537 = smul.addr %s536, 4
          %s538 = scalar_lea.vmem %s5, %s537
        $region56: #{forward.1} parent=43 // pred_fallthru
          _
        // Predicated region
        $region57: #{forward.1} parent=43 // pred_check
          %p539 = pneg %p186
        $region58: #{forward.1} parent=43 // pred_check_branch
          %541 = sbr.rel (%p539) target = $region60
        $region59: #{forward.1} parent=43 // pred_region
          %p542 = scmp.lt.s32.totalorder %s25, 3
          %s543 = scalar_select %p542, %s25, 3
          %s544 = smul.addr %s543, 16
          %s545 = smul.addr %s544, 4
          %s546 = scalar_lea.vmem %s6, %s545
        $region60: #{forward.1} parent=43 // pred_fallthru
          _
        // Predicated region
        $region61: #{forward.1} parent=43 // pred_check
          %p547 = pneg %p212
        $region62: #{forward.1} parent=43 // pred_check_branch
          %549 = sbr.rel (%p547) target = $region64
        $region63: #{forward.1} parent=43 // pred_region
          %p550 = scmp.lt.s32.totalorder %s25, 3
          %s551 = scalar_select %p550, %s25, 3
          %s552 = scalar_lea.vmem %s7, %s551
        $region64: #{forward.1} parent=43 // pred_fallthru
          _
        // Predicated region
        $region65: #{forward.1} parent=43 // pred_check
          %p553 = pneg %p238
        $region66: #{forward.1} parent=43 // pred_check_branch
          %555 = sbr.rel (%p553) target = $region68
        $region67: #{forward.1} parent=43 // pred_region
          %p556 = scmp.lt.s32.totalorder %s25, 3
          %s557 = scalar_select %p556, %s25, 3
          %s558 = scalar_lea.vmem %s8, %s557
        $region68: #{forward.1} parent=43 // pred_fallthru
          _
        // Predicated region
        $region69: #{forward.1} parent=43 // pred_check
          %p559 = pneg %p264
        $region70: #{forward.1} parent=43 // pred_check_branch
          %561 = sbr.rel (%p559) target = $region72
        $region71: #{forward.1} parent=43 // pred_region
          %p562 = scmp.lt.s32.totalorder %s25, 3
          %s563 = scalar_select %p562, %s25, 3
          %s564 = scalar_lea.vmem %s9, %s563
        $region72: #{forward.1} parent=43 // pred_fallthru
          _
        // Predicated region
        $region73: #{forward.1} parent=43 // pred_check
          %p565 = pneg %p290
        $region74: #{forward.1} parent=43 // pred_check_branch
          %567 = sbr.rel (%p565) target = $region76
        $region75: #{forward.1} parent=43 // pred_region
          %p568 = scmp.lt.s32.totalorder %s25, 3
          %s569 = scalar_select %p568, %s25, 3
          %s570 = smul.addr %s569, 64
          %s571 = smul.addr %s570, 4
          %s572 = scalar_lea.vmem %s10, %s571
        $region76: #{forward.1} parent=43 // pred_fallthru
          _
        // Predicated region
        $region77: #{forward.1} parent=43 // pred_check
          %p573 = pneg %p316
        $region78: #{forward.1} parent=43 // pred_check_branch
          %575 = sbr.rel (%p573) target = $region80
        $region79: #{forward.1} parent=43 // pred_region
          %p576 = scmp.lt.s32.totalorder %s25, 3
          %s577 = scalar_select %p576, %s25, 3
          %s578 = smul.addr %s577, 4
          %s579 = scalar_lea.vmem %s11, %s578
        $region80: #{forward.1} parent=43 // pred_fallthru
          _
        // Predicated region
        $region81: #{forward.1} parent=43 // pred_check
          %p580 = pneg %p342
        $region82: #{forward.1} parent=43 // pred_check_branch
          %582 = sbr.rel (%p580) target = $region84
        $region83: #{forward.1} parent=43 // pred_region
          %p583 = scmp.lt.s32.totalorder %s25, 3
          %s584 = scalar_select %p583, %s25, 3
          %s585 = smul.addr %s584, 64
          %s586 = smul.addr %s585, 4
          %s587 = scalar_lea.vmem %s12, %s586
        $region84: #{forward.1} parent=43 // pred_fallthru
          _
        // Predicated region
        $region85: #{forward.1} parent=43 // pred_check
          %p588 = pneg %p368
        $region86: #{forward.1} parent=43 // pred_check_branch
          %590 = sbr.rel (%p588) target = $region88
        $region87: #{forward.1} parent=43 // pred_region
          %p591 = scmp.lt.s32.totalorder %s25, 3
          %s592 = scalar_select %p591, %s25, 3
          %s593 = scalar_lea.vmem %s13, %s592
        $region88: #{forward.1} parent=43 // pred_fallthru
          _
      $region44: #{forward.1} parent=5 // pred_fallthru
        _
      %p594 = scmp.le.s32.totalorder 1, %s25
      %p595 = scmp.lt.s32.totalorder %s25, 5
      %p596 = pnand %p594, %p595
      %p597 = pneg %p596
      // Predicated region
      $region89: #{forward.1} parent=5 // pred_check
        _
      $region90: #{forward.1} parent=5 // pred_check_branch
        %599 = sbr.rel (%p596) target = $region92
      $region91: #{forward.1} parent=5 // pred_region
        %s600 = ssub.s32 %s25, 1
        %p601 = pneg %p46
        %p602 = pneg %p43
        %p603 = pneg %p67
        %p604 = pneg %p64
        %p605 = pneg %p88
        %p606 = pneg %p85
        %p607 = scmp.lt.s32.totalorder %s30, 3
        %s608 = scalar_select %p607, %s30, 3
        %s609 = scalar_lea.vmem %s3, %s608
        %p610 = pneg %p114
        %p611 = pneg %p111
        %p612 = scmp.lt.s32.totalorder %s30, 3
        %s613 = scalar_select %p612, %s30, 3
        %s614 = scalar_lea.vmem %s4, %s613
        %p615 = pneg %p140
        %p616 = pneg %p137
        %p617 = scmp.lt.s32.totalorder %s30, 3
        %s618 = scalar_select %p617, %s30, 3
        %s619 = smul.addr %s618, 48
        %s620 = smul.addr %s619, 4
        %s621 = scalar_lea.vmem %s5, %s620
        %p622 = pneg %p166
        %p623 = pneg %p163
        %p624 = scmp.lt.s32.totalorder %s30, 3
        %s625 = scalar_select %p624, %s30, 3
        %s626 = smul.addr %s625, 16
        %s627 = smul.addr %s626, 4
        %s628 = scalar_lea.vmem %s6, %s627
        %p629 = pneg %p192
        %p630 = pneg %p189
        %p631 = scmp.lt.s32.totalorder %s30, 3
        %s632 = scalar_select %p631, %s30, 3
        %s633 = scalar_lea.vmem %s7, %s632
        %p634 = pneg %p218
        %p635 = pneg %p215
        %p636 = scmp.lt.s32.totalorder %s30, 3
        %s637 = scalar_select %p636, %s30, 3
        %s638 = scalar_lea.vmem %s8, %s637
        %p639 = pneg %p244
        %p640 = pneg %p241
        %p641 = scmp.lt.s32.totalorder %s30, 3
        %s642 = scalar_select %p641, %s30, 3
        %s643 = scalar_lea.vmem %s9, %s642
        %p644 = pneg %p270
        %p645 = pneg %p267
        %p646 = scmp.lt.s32.totalorder %s30, 3
        %s647 = scalar_select %p646, %s30, 3
        %s648 = smul.addr %s647, 64
        %s649 = smul.addr %s648, 4
        %s650 = scalar_lea.vmem %s10, %s649
        %p651 = pneg %p296
        %p652 = pneg %p293
        %p653 = scmp.lt.s32.totalorder %s30, 3
        %s654 = scalar_select %p653, %s30, 3
        %s655 = smul.addr %s654, 4
        %s656 = scalar_lea.vmem %s11, %s655
        %p657 = pneg %p322
        %p658 = pneg %p319
        %p659 = scmp.lt.s32.totalorder %s30, 3
        %s660 = scalar_select %p659, %s30, 3
        %s661 = smul.addr %s660, 64
        %s662 = smul.addr %s661, 4
        %s663 = scalar_lea.vmem %s12, %s662
        %p664 = pneg %p348
        %p665 = pneg %p345
        %p666 = scmp.lt.s32.totalorder %s30, 3
        %s667 = scalar_select %p666, %s30, 3
        %s668 = scalar_lea.vmem %s13, %s667
        %p669 = pneg %p374
        %p670 = pneg %p371
        %p671 = pneg %p395
        %p672 = pneg %p392
        %p673 = pneg %p416
        %p674 = pneg %p413
        %p675 = pneg %p437
        %p676 = pneg %p434
        %p677 = pneg %p458
        %p678 = pneg %p455
        %p679 = pneg %p479
        %p680 = pneg %p476
        %p681 = scmp.lt.s32.totalorder %s30, 3
        %s682 = scalar_select %p681, %s30, 3
        %s683 = scalar_lea.vmem %s3, %s682
        %p684 = scmp.lt.s32.totalorder %s30, 3
        %s685 = scalar_select %p684, %s30, 3
        %s686 = scalar_lea.vmem %s4, %s685
        %p687 = scmp.lt.s32.totalorder %s30, 3
        %s688 = scalar_select %p687, %s30, 3
        %s689 = smul.addr %s688, 48
        %s690 = smul.addr %s689, 4
        %s691 = scalar_lea.vmem %s5, %s690
        %p692 = scmp.lt.s32.totalorder %s30, 3
        %s693 = scalar_select %p692, %s30, 3
        %s694 = smul.addr %s693, 16
        %s695 = smul.addr %s694, 4
        %s696 = scalar_lea.vmem %s6, %s695
        %p697 = scmp.lt.s32.totalorder %s30, 3
        %s698 = scalar_select %p697, %s30, 3
        %s699 = scalar_lea.vmem %s7, %s698
        %p700 = scmp.lt.s32.totalorder %s30, 3
        %s701 = scalar_select %p700, %s30, 3
        %s702 = scalar_lea.vmem %s8, %s701
        %p703 = scmp.lt.s32.totalorder %s30, 3
        %s704 = scalar_select %p703, %s30, 3
        %s705 = scalar_lea.vmem %s9, %s704
        %p706 = scmp.lt.s32.totalorder %s30, 3
        %s707 = scalar_select %p706, %s30, 3
        %s708 = smul.addr %s707, 64
        %s709 = smul.addr %s708, 4
        %s710 = scalar_lea.vmem %s10, %s709
        %p711 = scmp.lt.s32.totalorder %s30, 3
        %s712 = scalar_select %p711, %s30, 3
        %s713 = smul.addr %s712, 4
        %s714 = scalar_lea.vmem %s11, %s713
        %p715 = scmp.lt.s32.totalorder %s30, 3
        %s716 = scalar_select %p715, %s30, 3
        %s717 = smul.addr %s716, 64
        %s718 = smul.addr %s717, 4
        %s719 = scalar_lea.vmem %s12, %s718
        %p720 = scmp.lt.s32.totalorder %s30, 3
        %s721 = scalar_select %p720, %s30, 3
        %s722 = scalar_lea.vmem %s13, %s721
        %p724 = scmp.eq.s32.totalorder %s30, 0
        // Predicated region
        $region93: #{forward.1} parent=91 // pred_check
          %p725 = pneg %p724
        $region94: #{forward.1} parent=91 // pred_check_branch
          %727 = sbr.rel (%p725) target = $region96
        $region95: #{forward.1} parent=91 // pred_region
          %v728 = vlaneseq
          %v729 = vand.u32 %v728, 127
          %v730 = vld [vmem:[%s0] sm:$0xff]
          %v731 = vld [vmem:[%s0 + $0x8] sm:$0xff]
          %v732 = vld [vmem:[%s0 + $0x10] sm:$0xff]
          %v733 = vld [vmem:[%s0 + $0x18] sm:$0xff]
          %v734 = vld [vmem:[%s0 + $0x20] sm:$0xff]
          %v735 = vld [vmem:[%s0 + $0x28] sm:$0xff]
          %v736 = vld [vmem:[%s0 + $0x30] sm:$0xff]
          %v737 = vld [vmem:[%s0 + $0x38] sm:$0xff]
          %738 = vset.pattern.permute.xlu0 0
          %739 = vperm.xlu0 %738, %v730
          %v740 = vpop.permute.xlu0 %739
          %741 = vset.pattern.permute.xlu0 0
          %742 = vperm.xlu0 %741, %v731
          %v743 = vpop.permute.xlu0 %742
          %744 = vset.pattern.permute.xlu0 0
          %745 = vperm.xlu0 %744, %v732
          %v746 = vpop.permute.xlu0 %745
          %747 = vset.pattern.permute.xlu0 0
          %748 = vperm.xlu0 %747, %v733
          %v749 = vpop.permute.xlu0 %748
          %750 = vset.pattern.permute.xlu0 0
          %751 = vperm.xlu0 %750, %v734
          %v752 = vpop.permute.xlu0 %751
          %753 = vset.pattern.permute.xlu0 0
          %754 = vperm.xlu0 %753, %v735
          %v755 = vpop.permute.xlu0 %754
          %756 = vset.pattern.permute.xlu0 0
          %757 = vperm.xlu0 %756, %v736
          %v758 = vpop.permute.xlu0 %757
          %759 = vset.pattern.permute.xlu0 0
          %760 = vperm.xlu0 %759, %v737
          %v761 = vpop.permute.xlu0 %760
          %vm762 = vcmp.eq.s32.totalorder %v740, %v729
          %vm763 = vcmp.eq.s32.totalorder %v743, %v729
          %vm764 = vcmp.eq.s32.totalorder %v746, %v729
          %vm765 = vcmp.eq.s32.totalorder %v749, %v729
          %vm766 = vcmp.eq.s32.totalorder %v752, %v729
          %vm767 = vcmp.eq.s32.totalorder %v755, %v729
          %vm768 = vcmp.eq.s32.totalorder %v758, %v729
          %vm769 = vcmp.eq.s32.totalorder %v761, %v729
          %v770 = vsel %vm762, 1, 0
          %v771 = vsel %vm763, 1, 0
          %v772 = vsel %vm764, 1, 0
          %v773 = vsel %vm765, 1, 0
          %v774 = vsel %vm766, 1, 0
          %v775 = vsel %vm767, 1, 0
          %v776 = vsel %vm768, 1, 0
          %v777 = vsel %vm769, 1, 0
          %v778 = vcvt.s32.f32 %v770
          %v779 = vcvt.s32.f32 %v771
          %v780 = vcvt.s32.f32 %v772
          %v781 = vcvt.s32.f32 %v773
          %v782 = vcvt.s32.f32 %v774
          %v783 = vcvt.s32.f32 %v775
          %v784 = vcvt.s32.f32 %v776
          %v785 = vcvt.s32.f32 %v777
          %v786 = vld [vmem:[%s1] sm:$0xff]
          %v787 = vld [vmem:[%s1 + $0x8] sm:$0xff]
          %v788 = vld [vmem:[%s1 + $0x10] sm:$0xff]
          %v789 = vld [vmem:[%s1 + $0x18] sm:$0xff]
          %v790 = vld [vmem:[%s1 + $0x20] sm:$0xff]
          %v791 = vld [vmem:[%s1 + $0x28] sm:$0xff]
          %v792 = vld [vmem:[%s1 + $0x30] sm:$0xff]
          %v793 = vld [vmem:[%s1 + $0x38] sm:$0xff]
          %v794 = vld [vmem:[%s1 + $0x40] sm:$0xff]
          %v795 = vld [vmem:[%s1 + $0x48] sm:$0xff]
          %v796 = vld [vmem:[%s1 + $0x50] sm:$0xff]
          %v797 = vld [vmem:[%s1 + $0x58] sm:$0xff]
          %v798 = vld [vmem:[%s1 + $0x60] sm:$0xff]
          %v799 = vld [vmem:[%s1 + $0x68] sm:$0xff]
          %v800 = vld [vmem:[%s1 + $0x70] sm:$0xff]
          %v801 = vld [vmem:[%s1 + $0x78] sm:$0xff]
          %802 = vmatprep.subr.mxu0 0.0
          %803 = vmatpush1.msra.mxu0 %v786
          %804 = vmatprep.subr.mxu0 0.0
          %805 = vmatpush1.msra.mxu0 %v787
          %806 = vmatprep.subr.mxu0 0.0
          %807 = vmatpush1.msra.mxu0 %v788
          %808 = vmatprep.subr.mxu0 0.0
          %809 = vmatpush1.msra.mxu0 %v789
          %810 = vmatprep.subr.mxu0 0.0
          %811 = vmatpush1.msra.mxu0 %v790
          %812 = vmatprep.subr.mxu0 0.0
          %813 = vmatpush1.msra.mxu0 %v791
          %814 = vmatprep.subr.mxu0 0.0
          %815 = vmatpush1.msra.mxu0 %v792
          %816 = vmatprep.subr.mxu0 0.0
          %817 = vmatpush1.msra.mxu0 %v793
          %818 = vmatprep.subr.mxu0 0.0
          %819 = vmatpush1.msra.mxu0 %v794
          %820 = vmatprep.subr.mxu0 0.0
          %821 = vmatpush1.msra.mxu0 %v795
          %822 = vmatprep.subr.mxu0 0.0
          %823 = vmatpush1.msra.mxu0 %v796
          %824 = vmatprep.subr.mxu0 0.0
          %825 = vmatpush1.msra.mxu0 %v797
          %826 = vmatprep.subr.mxu0 0.0
          %827 = vmatpush1.msra.mxu0 %v798
          %828 = vmatprep.subr.mxu0 0.0
          %829 = vmatpush1.msra.mxu0 %v799
          %830 = vmatprep.subr.mxu0 0.0
          %831 = vmatpush1.msra.mxu0 %v800
          %832 = vmatprep.subr.mxu0 0.0
          %833 = vmatpush1.msra.mxu0 %v801
          %834 = vmatprep.subr.mxu0 0.0
          %835 = vmatpush1.msra.mxu0 0.0
          %836 = vmatprep.subr.mxu0 0.0
          %837 = vmatpush1.msra.mxu0 0.0
          %838 = vmatprep.subr.mxu0 0.0
          %839 = vmatpush1.msra.mxu0 0.0
          %840 = vmatprep.subr.mxu0 0.0
          %841 = vmatpush1.msra.mxu0 0.0
          %842 = vmatprep.subr.mxu0 0.0
          %843 = vmatpush1.msra.mxu0 0.0
          %844 = vmatprep.subr.mxu0 0.0
          %845 = vmatpush1.msra.mxu0 0.0
          %846 = vmatprep.subr.mxu0 0.0
          %847 = vmatpush1.msra.mxu0 0.0
          %848 = vmatprep.subr.mxu0 0.0
          %849 = vmatpush1.msra.mxu0 0.0
          %850 = vmatprep.subr.mxu0 0.0
          %851 = vmatpush1.msra.mxu0 0.0
          %852 = vmatprep.subr.mxu0 0.0
          %853 = vmatpush1.msra.mxu0 0.0
          %854 = vmatprep.subr.mxu0 0.0
          %855 = vmatpush1.msra.mxu0 0.0
          %856 = vmatprep.subr.mxu0 0.0
          %857 = vmatpush1.msra.mxu0 0.0
          %858 = vmatprep.subr.mxu0 0.0
          %859 = vmatpush1.msra.mxu0 0.0
          %860 = vmatprep.subr.mxu0 0.0
          %861 = vmatpush1.msra.mxu0 0.0
          %862 = vmatprep.subr.mxu0 0.0
          %863 = vmatpush1.msra.mxu0 0.0
          %864 = vmatprep.subr.mxu0 0.0
          %865 = vmatpush1.msra.mxu0 0.0
          %866 = vmatprep.mubr.f32.mxu0 0.0
          %867 = vmatmul.mubr.f32.gmra.mrb[0].mxu0 %v778
          %v868 = vpop.f32.mrb[0].mxu0
          %v869 = vadd.f32 0.0, %v868
          %v870 = vpop.f32.mrb[0].mxu0
          %871 = vmatprep.mubr.f32.mxu0 0.0
          %872 = vmatmul.mubr.f32.gmra.mrb[0].mxu0 %v779
          %v873 = vpop.f32.mrb[0].mxu0
          %v874 = vadd.f32 0.0, %v873
          %v875 = vpop.f32.mrb[0].mxu0
          %876 = vmatprep.mubr.f32.mxu0 0.0
          %877 = vmatmul.mubr.f32.gmra.mrb[0].mxu0 %v780
          %v878 = vpop.f32.mrb[0].mxu0
          %v879 = vadd.f32 0.0, %v878
          %v880 = vpop.f32.mrb[0].mxu0
          %881 = vmatprep.mubr.f32.mxu0 0.0
          %882 = vmatmul.mubr.f32.gmra.mrb[0].mxu0 %v781
          %v883 = vpop.f32.mrb[0].mxu0
          %v884 = vadd.f32 0.0, %v883
          %v885 = vpop.f32.mrb[0].mxu0
          %886 = vmatprep.mubr.f32.mxu0 0.0
          %887 = vmatmul.mubr.f32.gmra.mrb[0].mxu0 %v782
          %v888 = vpop.f32.mrb[0].mxu0
          %v889 = vadd.f32 0.0, %v888
          %v890 = vpop.f32.mrb[0].mxu0
          %891 = vmatprep.mubr.f32.mxu0 0.0
          %892 = vmatmul.mubr.f32.gmra.mrb[0].mxu0 %v783
          %v893 = vpop.f32.mrb[0].mxu0
          %v894 = vadd.f32 0.0, %v893
          %v895 = vpop.f32.mrb[0].mxu0
          %896 = vmatprep.mubr.f32.mxu0 0.0
          %897 = vmatmul.mubr.f32.gmra.mrb[0].mxu0 %v784
          %v898 = vpop.f32.mrb[0].mxu0
          %v899 = vadd.f32 0.0, %v898
          %v900 = vpop.f32.mrb[0].mxu0
          %901 = vmatprep.mubr.f32.mxu0 0.0
          %902 = vmatmul.mubr.f32.gmra.mrb[0].mxu0 %v785
          %v903 = vpop.f32.mrb[0].mxu0
          %v904 = vadd.f32 0.0, %v903
          %v905 = vpop.f32.mrb[0].mxu0
          %906 = vdwg.mxu0
          %v907 = vld [vmem:[%s2] sm:$0xff]
          %v908 = vld [vmem:[%s2 + $0x8] sm:$0xff]
          %v909 = vld [vmem:[%s2 + $0x10] sm:$0xff]
          %v910 = vld [vmem:[%s2 + $0x18] sm:$0xff]
          %v911 = vadd.f32 %v869, %v907
          %v912 = vadd.f32 %v874, %v908
          %v913 = vadd.f32 %v879, %v909
          %v914 = vadd.f32 %v884, %v910
          %v915 = vadd.f32 %v889, %v907
          %v916 = vadd.f32 %v894, %v908
          %v917 = vadd.f32 %v899, %v909
          %v918 = vadd.f32 %v904, %v910
          %919 = vst [vmem:[#allocation2] sm:$0xff] %v911
          %920 = vst [vmem:[#allocation2 + $0x8] sm:$0xff] %v912
          %921 = vst [vmem:[#allocation2 + $0x10] sm:$0xff] %v913
          %922 = vst [vmem:[#allocation2 + $0x18] sm:$0xff] %v914
          %923 = vst [vmem:[#allocation2 + $0x20] sm:$0xff] %v915
          %924 = vst [vmem:[#allocation2 + $0x28] sm:$0xff] %v916
          %925 = vst [vmem:[#allocation2 + $0x30] sm:$0xff] %v917
          %926 = vst [vmem:[#allocation2 + $0x38] sm:$0xff] %v918
        $region96: #{forward.1} parent=91 // pred_fallthru
          _
        %v927 = vld [vmem:[#allocation2] sm:$0xff]
        %v928 = vld [vmem:[#allocation2 + $0x8] sm:$0xff]
        %v929 = vld [vmem:[#allocation2 + $0x10] sm:$0xff]
        %v930 = vld [vmem:[#allocation2 + $0x18] sm:$0xff]
        %v931 = vld [vmem:[#allocation2 + $0x20] sm:$0xff]
        %v932 = vld [vmem:[#allocation2 + $0x28] sm:$0xff]
        %v933 = vld [vmem:[#allocation2 + $0x30] sm:$0xff]
        %v934 = vld [vmem:[#allocation2 + $0x38] sm:$0xff]
        %v935 = vlaneseq
        %v936 = vshrl.u32 %v935, 7
        %v937 = vadd.s32 %v936, 8
        %v938 = vadd.s32 %v936, 16
        %v939 = vadd.s32 %v936, 24
        %v940 = vlaneseq
        %v941 = vand.u32 %v940, 127
        %vm942 = vcmp.le.s32.totalorder %v941, %v936
        %vm943 = vcmp.le.s32.totalorder %v941, %v937
        %vm944 = vcmp.le.s32.totalorder %v941, %v938
        %vm945 = vcmp.le.s32.totalorder %v941, %v939
        %v946 = vsel %vm942, 0.0, -1e+30
        %v947 = vsel %vm943, 0.0, -1e+30
        %v948 = vsel %vm944, 0.0, -1e+30
        %v949 = vsel %vm945, 0.0, -1e+30
        %v950 = vld [vmem:[%s683] sm:$0x1]
        %v951 = vld [vmem:[%s686] sm:$0x1]
        %952 = vadd.xlane.f32.xlu0 %v927
        %v953 = vpop.xlane.xlu0 %952
        %954 = vadd.xlane.f32.xlu0 %v928
        %v955 = vpop.xlane.xlu0 %954
        %956 = vadd.xlane.f32.xlu0 %v929
        %v957 = vpop.xlane.xlu0 %956
        %958 = vadd.xlane.f32.xlu0 %v930
        %v959 = vpop.xlane.xlu0 %958
        %960 = vadd.xlane.f32.xlu0 %v931
        %v961 = vpop.xlane.xlu0 %960
        %962 = vadd.xlane.f32.xlu0 %v932
        %v963 = vpop.xlane.xlu0 %962
        %964 = vadd.xlane.f32.xlu0 %v933
        %v965 = vpop.xlane.xlu0 %964
        %966 = vadd.xlane.f32.xlu0 %v934
        %v967 = vpop.xlane.xlu0 %966
        %v968 = vrcp.pop 128.0
        %v969 = vmul.f32 %v953, %v968
        %v970 = vmul.f32 %v955, %v968
        %v971 = vmul.f32 %v957, %v968
        %v972 = vmul.f32 %v959, %v968
        %v973 = vmul.f32 %v961, %v968
        %v974 = vmul.f32 %v963, %v968
        %v975 = vmul.f32 %v965, %v968
        %v976 = vmul.f32 %v967, %v968
        %v977 = vsub.f32 %v927, %v969
        %v978 = vsub.f32 %v928, %v970
        %v979 = vsub.f32 %v929, %v971
        %v980 = vsub.f32 %v930, %v972
        %v981 = vsub.f32 %v931, %v973
        %v982 = vsub.f32 %v932, %v974
        %v983 = vsub.f32 %v933, %v975
        %v984 = vsub.f32 %v934, %v976
        %v985 = vmul.f32 %v977, %v977
        %v986 = vmul.f32 %v978, %v978
        %v987 = vmul.f32 %v979, %v979
        %v988 = vmul.f32 %v980, %v980
        %v989 = vmul.f32 %v981, %v981
        %v990 = vmul.f32 %v982, %v982
        %v991 = vmul.f32 %v983, %v983
        %v992 = vmul.f32 %v984, %v984
        %993 = vadd.xlane.f32.xlu0 %v985
        %v994 = vpop.xlane.xlu0 %993
        %995 = vadd.xlane.f32.xlu0 %v986
        %v996 = vpop.xlane.xlu0 %995
        %997 = vadd.xlane.f32.xlu0 %v987
        %v998 = vpop.xlane.xlu0 %997
        %999 = vadd.xlane.f32.xlu0 %v988
        %v1000 = vpop.xlane.xlu0 %999
        %1001 = vadd.xlane.f32.xlu0 %v989
        %v1002 = vpop.xlane.xlu0 %1001
        %1003 = vadd.xlane.f32.xlu0 %v990
        %v1004 = vpop.xlane.xlu0 %1003
        %1005 = vadd.xlane.f32.xlu0 %v991
        %v1006 = vpop.xlane.xlu0 %1005
        %1007 = vadd.xlane.f32.xlu0 %v992
        %v1008 = vpop.xlane.xlu0 %1007
        %v1009 = vmul.f32 %v994, %v968
        %v1010 = vmul.f32 %v996, %v968
        %v1011 = vmul.f32 %v998, %v968
        %v1012 = vmul.f32 %v1000, %v968
        %v1013 = vmul.f32 %v1002, %v968
        %v1014 = vmul.f32 %v1004, %v968
        %v1015 = vmul.f32 %v1006, %v968
        %v1016 = vmul.f32 %v1008, %v968
        %v1017 = vadd.f32 %v1009, 1e-05
        %v1018 = vadd.f32 %v1010, 1e-05
        %v1019 = vadd.f32 %v1011, 1e-05
        %v1020 = vadd.f32 %v1012, 1e-05
        %v1021 = vadd.f32 %v1013, 1e-05
        %v1022 = vadd.f32 %v1014, 1e-05
        %v1023 = vadd.f32 %v1015, 1e-05
        %v1024 = vadd.f32 %v1016, 1e-05
        %v1025 = vrsqrt.pop %v1017
        %v1026 = vrsqrt.pop %v1018
        %v1027 = vrsqrt.pop %v1019
        %v1028 = vrsqrt.pop %v1020
        %v1029 = vrsqrt.pop %v1021
        %v1030 = vrsqrt.pop %v1022
        %v1031 = vrsqrt.pop %v1023
        %v1032 = vrsqrt.pop %v1024
        %v1033 = vmul.f32 %v977, %v1025
        %v1034 = vmul.f32 %v978, %v1026
        %v1035 = vmul.f32 %v979, %v1027
        %v1036 = vmul.f32 %v980, %v1028
        %v1037 = vmul.f32 %v981, %v1029
        %v1038 = vmul.f32 %v982, %v1030
        %v1039 = vmul.f32 %v983, %v1031
        %v1040 = vmul.f32 %v984, %v1032
        %v1042 = vlaneseq
        %v1043 = vshrl.u32 %v1042, 7
        %v1044 = vsub.s32 0, %v1043
        %v1045 = vrot.slane %v950, %v1044
        %v1047 = vmul.f32 %v1033, %v1045
        %v1048 = vmul.f32 %v1034, %v1045
        %v1049 = vmul.f32 %v1035, %v1045
        %v1050 = vmul.f32 %v1036, %v1045
        %v1051 = vmul.f32 %v1037, %v1045
        %v1052 = vmul.f32 %v1038, %v1045
        %v1053 = vmul.f32 %v1039, %v1045
        %v1054 = vmul.f32 %v1040, %v1045
        %v1056 = vlaneseq
        %v1057 = vshrl.u32 %v1056, 7
        %v1058 = vsub.s32 0, %v1057
        %v1059 = vrot.slane %v951, %v1058
        %v1061 = vadd.f32 %v1047, %v1059
        %v1062 = vadd.f32 %v1048, %v1059
        %v1063 = vadd.f32 %v1049, %v1059
        %v1064 = vadd.f32 %v1050, %v1059
        %v1065 = vadd.f32 %v1051, %v1059
        %v1066 = vadd.f32 %v1052, %v1059
        %v1067 = vadd.f32 %v1053, %v1059
        %v1068 = vadd.f32 %v1054, %v1059
        %v1069 = vpack.c.bf16 %v1062, %v1061
        %v1070 = vpack.c.bf16 %v1064, %v1063
        %v1071 = vpack.c.bf16 %v1066, %v1065
        %v1072 = vpack.c.bf16 %v1068, %v1067
        %v1073 = vld [vmem:[%s691] sm:$0xff]
        %v1074 = vld [vmem:[%s691 + $0x8] sm:$0xf]
        %v1075 = vld [vmem:[%s691 + $0xc] sm:$0xff]
        %v1076 = vld [vmem:[%s691 + $0x14] sm:$0xf]
        %v1077 = vld [vmem:[%s691 + $0x18] sm:$0xff]
        %v1078 = vld [vmem:[%s691 + $0x20] sm:$0xf]
        %v1079 = vld [vmem:[%s691 + $0x24] sm:$0xff]
        %v1080 = vld [vmem:[%s691 + $0x2c] sm:$0xf]
        %v1081 = vld [vmem:[%s691 + $0x30] sm:$0xff]
        %v1082 = vld [vmem:[%s691 + $0x38] sm:$0xf]
        %v1083 = vld [vmem:[%s691 + $0x3c] sm:$0xff]
        %v1084 = vld [vmem:[%s691 + $0x44] sm:$0xf]
        %v1085 = vld [vmem:[%s691 + $0x48] sm:$0xff]
        %v1086 = vld [vmem:[%s691 + $0x50] sm:$0xf]
        %v1087 = vld [vmem:[%s691 + $0x54] sm:$0xff]
        %v1088 = vld [vmem:[%s691 + $0x5c] sm:$0xf]
        %v1089 = vld [vmem:[%s691 + $0x60] sm:$0xff]
        %v1090 = vld [vmem:[%s691 + $0x68] sm:$0xf]
        %v1091 = vld [vmem:[%s691 + $0x6c] sm:$0xff]
        %v1092 = vld [vmem:[%s691 + $0x74] sm:$0xf]
        %v1093 = vld [vmem:[%s691 + $0x78] sm:$0xff]
        %v1094 = vld [vmem:[%s691 + $0x80] sm:$0xf]
        %v1095 = vld [vmem:[%s691 + $0x84] sm:$0xff]
        %v1096 = vld [vmem:[%s691 + $0x8c] sm:$0xf]
        %v1097 = vld [vmem:[%s691 + $0x90] sm:$0xff]
        %v1098 = vld [vmem:[%s691 + $0x98] sm:$0xf]
        %v1099 = vld [vmem:[%s691 + $0x9c] sm:$0xff]
        %v1100 = vld [vmem:[%s691 + $0xa4] sm:$0xf]
        %v1101 = vld [vmem:[%s691 + $0xa8] sm:$0xff]
        %v1102 = vld [vmem:[%s691 + $0xb0] sm:$0xf]
        %v1103 = vld [vmem:[%s691 + $0xb4] sm:$0xff]
        %v1104 = vld [vmem:[%s691 + $0xbc] sm:$0xf]
        %v1137 = vunpack.c.l.b16 %v1073
        %v1138 = vunpack.c.h.b16 %v1073
        %v1139 = vunpack.c.l.b16 %v1074
        %v1140 = vunpack.c.l.b16 %v1075
        %v1141 = vunpack.c.h.b16 %v1075
        %v1142 = vunpack.c.l.b16 %v1076
        %v1143 = vunpack.c.l.b16 %v1077
        %v1144 = vunpack.c.h.b16 %v1077
        %v1145 = vunpack.c.l.b16 %v1078
        %v1146 = vunpack.c.l.b16 %v1079
        %v1147 = vunpack.c.h.b16 %v1079
        %v1148 = vunpack.c.l.b16 %v1080
        %v1149 = vunpack.c.l.b16 %v1081
        %v1150 = vunpack.c.h.b16 %v1081
        %v1151 = vunpack.c.l.b16 %v1082
        %v1152 = vunpack.c.l.b16 %v1083
        %v1153 = vunpack.c.h.b16 %v1083
        %v1154 = vunpack.c.l.b16 %v1084
        %v1155 = vunpack.c.l.b16 %v1085
        %v1156 = vunpack.c.h.b16 %v1085
        %v1157 = vunpack.c.l.b16 %v1086
        %v1158 = vunpack.c.l.b16 %v1087
        %v1159 = vunpack.c.h.b16 %v1087
        %v1160 = vunpack.c.l.b16 %v1088
        %v1161 = vunpack.c.l.b16 %v1089
        %v1162 = vunpack.c.h.b16 %v1089
        %v1163 = vunpack.c.l.b16 %v1090
        %v1164 = vunpack.c.l.b16 %v1091
        %v1165 = vunpack.c.h.b16 %v1091
        %v1166 = vunpack.c.l.b16 %v1092
        %v1167 = vunpack.c.l.b16 %v1093
        %v1168 = vunpack.c.h.b16 %v1093
        %v1169 = vunpack.c.l.b16 %v1094
        %v1170 = vunpack.c.l.b16 %v1095
        %v1171 = vunpack.c.h.b16 %v1095
        %v1172 = vunpack.c.l.b16 %v1096
        %v1173 = vunpack.c.l.b16 %v1097
        %v1174 = vunpack.c.h.b16 %v1097
        %v1175 = vunpack.c.l.b16 %v1098
        %v1176 = vunpack.c.l.b16 %v1099
        %v1177 = vunpack.c.h.b16 %v1099
        %v1178 = vunpack.c.l.b16 %v1100
        %v1179 = vunpack.c.l.b16 %v1101
        %v1180 = vunpack.c.h.b16 %v1101
        %v1181 = vunpack.c.l.b16 %v1102
        %v1182 = vunpack.c.l.b16 %v1103
        %v1183 = vunpack.c.h.b16 %v1103
        %v1184 = vunpack.c.l.b16 %v1104
        %v1185 = vpack.c.b16 %v1140, %v1137
        %v1186 = vpack.c.b16 %v1141, %v1138
        %v1187 = vpack.c.b16 %v1142, %v1139
        %v1188 = vpack.c.b16 %v1146, %v1143
        %v1189 = vpack.c.b16 %v1147, %v1144
        %v1190 = vpack.c.b16 %v1148, %v1145
        %v1191 = vpack.c.b16 %v1152, %v1149
        %v1192 = vpack.c.b16 %v1153, %v1150
        %v1193 = vpack.c.b16 %v1154, %v1151
        %v1194 = vpack.c.b16 %v1158, %v1155
        %v1195 = vpack.c.b16 %v1159, %v1156
        %v1196 = vpack.c.b16 %v1160, %v1157
        %v1197 = vpack.c.b16 %v1164, %v1161
        %v1198 = vpack.c.b16 %v1165, %v1162
        %v1199 = vpack.c.b16 %v1166, %v1163
        %v1200 = vpack.c.b16 %v1170, %v1167
        %v1201 = vpack.c.b16 %v1171, %v1168
        %v1202 = vpack.c.b16 %v1172, %v1169
        %v1203 = vpack.c.b16 %v1176, %v1173
        %v1204 = vpack.c.b16 %v1177, %v1174
        %v1205 = vpack.c.b16 %v1178, %v1175
        %v1206 = vpack.c.b16 %v1182, %v1179
        %v1207 = vpack.c.b16 %v1183, %v1180
        %v1208 = vpack.c.b16 %v1184, %v1181
        %1233 = vmatprep.subr.bf16.mxu0 %v1186
        %1234 = vmatpush1.bf16.msra.mxu0 %v1185
        %1235 = vmatprep.subr.bf16.mxu0 %v1189
        %1236 = vmatpush1.bf16.msra.mxu0 %v1188
        %1237 = vmatprep.subr.bf16.mxu0 %v1192
        %1238 = vmatpush1.bf16.msra.mxu0 %v1191
        %1239 = vmatprep.subr.bf16.mxu0 %v1195
        %1240 = vmatpush1.bf16.msra.mxu0 %v1194
        %1241 = vmatprep.subr.bf16.mxu0 %v1198
        %1242 = vmatpush1.bf16.msra.mxu0 %v1197
        %1243 = vmatprep.subr.bf16.mxu0 %v1201
        %1244 = vmatpush1.bf16.msra.mxu0 %v1200
        %1245 = vmatprep.subr.bf16.mxu0 %v1204
        %1246 = vmatpush1.bf16.msra.mxu0 %v1203
        %1247 = vmatprep.subr.bf16.mxu0 %v1207
        %1248 = vmatpush1.bf16.msra.mxu0 %v1206
        %1249 = vmatprep.subr.bf16.mxu0 0
        %1250 = vmatpush1.bf16.msra.mxu0 0
        %1251 = vmatprep.subr.bf16.mxu0 0
        %1252 = vmatpush1.bf16.msra.mxu0 0
        %1253 = vmatprep.subr.bf16.mxu0 0
        %1254 = vmatpush1.bf16.msra.mxu0 0
        %1255 = vmatprep.subr.bf16.mxu0 0
        %1256 = vmatpush1.bf16.msra.mxu0 0
        %1257 = vmatprep.subr.bf16.mxu0 0
        %1258 = vmatpush1.bf16.msra.mxu0 0
        %1259 = vmatprep.subr.bf16.mxu0 0
        %1260 = vmatpush1.bf16.msra.mxu0 0
        %1261 = vmatprep.subr.bf16.mxu0 0
        %1262 = vmatpush1.bf16.msra.mxu0 0
        %1263 = vmatprep.subr.bf16.mxu0 0
        %1264 = vmatpush1.bf16.msra.mxu0 0
        %1265 = vmatprep.mubr.bf16.mxu0 0
        %1266 = vmatmul.mubr.bf16.gmra.mrb[0].mxu0 %v1069
        %v1267 = vpop.f32.mrb[0].mxu0
        %v1268 = vadd.f32 0.0, %v1267
        %v1269 = vpop.f32.mrb[0].mxu0
        %v1270 = vadd.f32 0.0, %v1269
        %v1271 = vpop.f32.mrb[0].mxu0
        %v1272 = vadd.f32 0.0, %v1271
        %v1273 = vpop.f32.mrb[0].mxu0
        %v1274 = vadd.f32 0.0, %v1273
        %1275 = vmatprep.mubr.bf16.mxu0 0
        %1276 = vmatmul.mubr.bf16.gmra.mrb[0].mxu0 %v1070
        %v1277 = vpop.f32.mrb[0].mxu0
        %v1278 = vadd.f32 0.0, %v1277
        %v1279 = vpop.f32.mrb[0].mxu0
        %v1280 = vadd.f32 0.0, %v1279
        %v1281 = vpop.f32.mrb[0].mxu0
        %v1282 = vadd.f32 0.0, %v1281
        %v1283 = vpop.f32.mrb[0].mxu0
        %v1284 = vadd.f32 0.0, %v1283
        %1285 = vmatprep.mubr.bf16.mxu0 0
        %1286 = vmatmul.mubr.bf16.gmra.mrb[0].mxu0 %v1071
        %v1287 = vpop.f32.mrb[0].mxu0
        %v1288 = vadd.f32 0.0, %v1287
        %v1289 = vpop.f32.mrb[0].mxu0
        %v1290 = vadd.f32 0.0, %v1289
        %v1291 = vpop.f32.mrb[0].mxu0
        %v1292 = vadd.f32 0.0, %v1291
        %v1293 = vpop.f32.mrb[0].mxu0
        %v1294 = vadd.f32 0.0, %v1293
        %1295 = vmatprep.mubr.bf16.mxu0 0
        %1296 = vmatmul.mubr.bf16.gmra.mrb[0].mxu0 %v1072
        %v1297 = vpop.f32.mrb[0].mxu0
        %v1298 = vadd.f32 0.0, %v1297
        %v1299 = vpop.f32.mrb[0].mxu0
        %v1300 = vadd.f32 0.0, %v1299
        %v1301 = vpop.f32.mrb[0].mxu0
        %v1302 = vadd.f32 0.0, %v1301
        %v1303 = vpop.f32.mrb[0].mxu0
        %v1304 = vadd.f32 0.0, %v1303
        %1305 = vdwg.mxu0
        %1306 = vmatprep.subr.bf16.mxu0 0
        %1307 = vmatpush1.bf16.msra.mxu0 %v1187
        %1308 = vmatprep.subr.bf16.mxu0 0
        %1309 = vmatpush1.bf16.msra.mxu0 %v1190
        %1310 = vmatprep.subr.bf16.mxu0 0
        %1311 = vmatpush1.bf16.msra.mxu0 %v1193
        %1312 = vmatprep.subr.bf16.mxu0 0
        %1313 = vmatpush1.bf16.msra.mxu0 %v1196
        %1314 = vmatprep.subr.bf16.mxu0 0
        %1315 = vmatpush1.bf16.msra.mxu0 %v1199
        %1316 = vmatprep.subr.bf16.mxu0 0
        %1317 = vmatpush1.bf16.msra.mxu0 %v1202
        %1318 = vmatprep.subr.bf16.mxu0 0
        %1319 = vmatpush1.bf16.msra.mxu0 %v1205
        %1320 = vmatprep.subr.bf16.mxu0 0
        %1321 = vmatpush1.bf16.msra.mxu0 %v1208
        %1322 = vmatprep.subr.bf16.mxu0 0
        %1323 = vmatpush1.bf16.msra.mxu0 0
        %1324 = vmatprep.subr.bf16.mxu0 0
        %1325 = vmatpush1.bf16.msra.mxu0 0
        %1326 = vmatprep.subr.bf16.mxu0 0
        %1327 = vmatpush1.bf16.msra.mxu0 0
        %1328 = vmatprep.subr.bf16.mxu0 0
        %1329 = vmatpush1.bf16.msra.mxu0 0
        %1330 = vmatprep.subr.bf16.mxu0 0
        %1331 = vmatpush1.bf16.msra.mxu0 0
        %1332 = vmatprep.subr.bf16.mxu0 0
        %1333 = vmatpush1.bf16.msra.mxu0 0
        %1334 = vmatprep.subr.bf16.mxu0 0
        %1335 = vmatpush1.bf16.msra.mxu0 0
        %1336 = vmatprep.subr.bf16.mxu0 0
        %1337 = vmatpush1.bf16.msra.mxu0 0
        %1338 = vmatprep.mubr.bf16.mxu0 0
        %1339 = vmatmul.mubr.bf16.gmra.mrb[0].mxu0 %v1069
        %v1340 = vpop.f32.mrb[0].mxu0
        %v1341 = vadd.f32 0.0, %v1340
        %v1342 = vpop.f32.mrb[0].mxu0
        %v1343 = vpop.f32.mrb[0].mxu0
        %v1344 = vadd.f32 0.0, %v1343
        %v1345 = vpop.f32.mrb[0].mxu0
        %1346 = vmatprep.mubr.bf16.mxu0 0
        %1347 = vmatmul.mubr.bf16.gmra.mrb[0].mxu0 %v1070
        %v1348 = vpop.f32.mrb[0].mxu0
        %v1349 = vadd.f32 0.0, %v1348
        %v1350 = vpop.f32.mrb[0].mxu0
        %v1351 = vpop.f32.mrb[0].mxu0
        %v1352 = vadd.f32 0.0, %v1351
        %v1353 = vpop.f32.mrb[0].mxu0
        %1354 = vmatprep.mubr.bf16.mxu0 0
        %1355 = vmatmul.mubr.bf16.gmra.mrb[0].mxu0 %v1071
        %v1356 = vpop.f32.mrb[0].mxu0
        %v1357 = vadd.f32 0.0, %v1356
        %v1358 = vpop.f32.mrb[0].mxu0
        %v1359 = vpop.f32.mrb[0].mxu0
        %v1360 = vadd.f32 0.0, %v1359
        %v1361 = vpop.f32.mrb[0].mxu0
        %1362 = vmatprep.mubr.bf16.mxu0 0
        %1363 = vmatmul.mubr.bf16.gmra.mrb[0].mxu0 %v1072
        %v1364 = vpop.f32.mrb[0].mxu0
        %v1365 = vadd.f32 0.0, %v1364
        %v1366 = vpop.f32.mrb[0].mxu0
        %v1367 = vpop.f32.mrb[0].mxu0
        %v1368 = vadd.f32 0.0, %v1367
        %v1369 = vpop.f32.mrb[0].mxu0
        %1370 = vdwg.mxu0
        %v1371 = vpack.c.bf16 %v1272, %v1268
        %v1372 = vpack.c.bf16 %v1282, %v1278
        %v1373 = vpack.c.bf16 %v1292, %v1288
        %v1374 = vpack.c.bf16 %v1302, %v1298
        %v1375 = vpack.c.bf16 %v1274, %v1270
        %v1376 = vpack.c.bf16 %v1284, %v1280
        %v1377 = vpack.c.bf16 %v1294, %v1290
        %v1378 = vpack.c.bf16 %v1304, %v1300
        %v1379 = vpack.c.bf16 %v1344, %v1341
        %v1380 = vpack.c.bf16 %v1352, %v1349
        %v1381 = vpack.c.bf16 %v1360, %v1357
        %v1382 = vpack.c.bf16 %v1368, %v1365
        %vm1383 = vcmask 261120
        %v1385 = vsel %vm1383, %v1371, 0
        %v1388 = vsel %vm1383, %v1372, 0
        %v1391 = vsel %vm1383, %v1375, 0
        %v1394 = vsel %vm1383, %v1376, 0
        %1396 = vmatprep.subr.bf16.mxu0 0
        %1397 = vmatpush1.bf16.xpose.msra.mxu0 %v1391
        %1398 = vmatprep.subr.bf16.mxu0 0
        %1399 = vmatpush1.bf16.xpose.msra.mxu0 %v1394
        %1400 = vmatprep.subr.bf16.mxu0 0
        %1401 = vmatpush1.bf16.xpose.msra.mxu0 0
        %1402 = vmatprep.subr.bf16.mxu0 0
        %1403 = vmatpush1.bf16.xpose.msra.mxu0 0
        %1404 = vmatprep.subr.bf16.mxu0 0
        %1405 = vmatpush1.bf16.xpose.msra.mxu0 0
        %1406 = vmatprep.subr.bf16.mxu0 0
        %1407 = vmatpush1.bf16.xpose.msra.mxu0 0
        %1408 = vmatprep.subr.bf16.mxu0 0
        %1409 = vmatpush1.bf16.xpose.msra.mxu0 0
        %1410 = vmatprep.subr.bf16.mxu0 0
        %1411 = vmatpush1.bf16.xpose.msra.mxu0 0
        %1412 = vmatprep.subr.bf16.mxu0 0
        %1413 = vmatpush1.bf16.xpose.msra.mxu0 0
        %1414 = vmatprep.subr.bf16.mxu0 0
        %1415 = vmatpush1.bf16.xpose.msra.mxu0 0
        %1416 = vmatprep.subr.bf16.mxu0 0
        %1417 = vmatpush1.bf16.xpose.msra.mxu0 0
        %1418 = vmatprep.subr.bf16.mxu0 0
        %1419 = vmatpush1.bf16.xpose.msra.mxu0 0
        %1420 = vmatprep.subr.bf16.mxu0 0
        %1421 = vmatpush1.bf16.xpose.msra.mxu0 0
        %1422 = vmatprep.subr.bf16.mxu0 0
        %1423 = vmatpush1.bf16.xpose.msra.mxu0 0
        %1424 = vmatprep.subr.bf16.mxu0 0
        %1425 = vmatpush1.bf16.xpose.msra.mxu0 0
        %1426 = vmatprep.subr.bf16.mxu0 0
        %1427 = vmatpush1.bf16.xpose.msra.mxu0 0
        %1428 = vmatprep.mubr.bf16.mxu0 0
        %1429 = vmatmul.mubr.bf16.gmra.mrb[0].mxu0 %v1385
        %v1430 = vpop.f32.mrb[0].mxu0
        %v1431 = vadd.f32 0.0, %v1430
        %v1432 = vpop.f32.mrb[0].mxu0
        %v1433 = vpop.f32.mrb[0].mxu0
        %v1434 = vadd.f32 0.0, %v1433
        %v1435 = vpop.f32.mrb[0].mxu0
        %1436 = vmatprep.mubr.bf16.mxu0 0
        %1437 = vmatmul.mubr.bf16.gmra.mrb[0].mxu0 %v1388
        %v1438 = vpop.f32.mrb[0].mxu0
        %v1439 = vadd.f32 0.0, %v1438
        %v1440 = vpop.f32.mrb[0].mxu0
        %v1441 = vpop.f32.mrb[0].mxu0
        %v1442 = vadd.f32 0.0, %v1441
        %v1443 = vpop.f32.mrb[0].mxu0
        %1444 = vdwg.mxu0
        %v1446 = vsel %vm1383, %v1373, 0
        %v1449 = vsel %vm1383, %v1374, 0
        %v1452 = vsel %vm1383, %v1377, 0
        %v1455 = vsel %vm1383, %v1378, 0
        %1457 = vmatprep.subr.bf16.mxu0 0
        %1458 = vmatpush1.bf16.xpose.msra.mxu0 %v1452
        %1459 = vmatprep.subr.bf16.mxu0 0
        %1460 = vmatpush1.bf16.xpose.msra.mxu0 %v1455
        %1461 = vmatprep.subr.bf16.mxu0 0
        %1462 = vmatpush1.bf16.xpose.msra.mxu0 0
        %1463 = vmatprep.subr.bf16.mxu0 0
        %1464 = vmatpush1.bf16.xpose.msra.mxu0 0
        %1465 = vmatprep.subr.bf16.mxu0 0
        %1466 = vmatpush1.bf16.xpose.msra.mxu0 0
        %1467 = vmatprep.subr.bf16.mxu0 0
        %1468 = vmatpush1.bf16.xpose.msra.mxu0 0
        %1469 = vmatprep.subr.bf16.mxu0 0
        %1470 = vmatpush1.bf16.xpose.msra.mxu0 0
        %1471 = vmatprep.subr.bf16.mxu0 0
        %1472 = vmatpush1.bf16.xpose.msra.mxu0 0
        %1473 = vmatprep.subr.bf16.mxu0 0
        %1474 = vmatpush1.bf16.xpose.msra.mxu0 0
        %1475 = vmatprep.subr.bf16.mxu0 0
        %1476 = vmatpush1.bf16.xpose.msra.mxu0 0
        %1477 = vmatprep.subr.bf16.mxu0 0
        %1478 = vmatpush1.bf16.xpose.msra.mxu0 0
        %1479 = vmatprep.subr.bf16.mxu0 0
        %1480 = vmatpush1.bf16.xpose.msra.mxu0 0
        %1481 = vmatprep.subr.bf16.mxu0 0
        %1482 = vmatpush1.bf16.xpose.msra.mxu0 0
        %1483 = vmatprep.subr.bf16.mxu0 0
        %1484 = vmatpush1.bf16.xpose.msra.mxu0 0
        %1485 = vmatprep.subr.bf16.mxu0 0
        %1486 = vmatpush1.bf16.xpose.msra.mxu0 0
        %1487 = vmatprep.subr.bf16.mxu0 0
        %1488 = vmatpush1.bf16.xpose.msra.mxu0 0
        %1489 = vmatprep.mubr.bf16.mxu0 0
        %1490 = vmatmul.mubr.bf16.gmra.mrb[0].mxu0 %v1446
        %v1491 = vpop.f32.mrb[0].mxu0
        %v1492 = vadd.f32 0.0, %v1491
        %v1493 = vpop.f32.mrb[0].mxu0
        %v1494 = vpop.f32.mrb[0].mxu0
        %v1495 = vadd.f32 0.0, %v1494
        %v1496 = vpop.f32.mrb[0].mxu0
        %1497 = vmatprep.mubr.bf16.mxu0 0
        %1498 = vmatmul.mubr.bf16.gmra.mrb[0].mxu0 %v1449
        %v1499 = vpop.f32.mrb[0].mxu0
        %v1500 = vadd.f32 0.0, %v1499
        %v1501 = vpop.f32.mrb[0].mxu0
        %v1502 = vpop.f32.mrb[0].mxu0
        %v1503 = vadd.f32 0.0, %v1502
        %v1504 = vpop.f32.mrb[0].mxu0
        %1505 = vdwg.mxu0
        %v1506 = vmul.f32 %v1431, 0.088388346
        %v1507 = vmul.f32 %v1434, 0.088388346
        %v1508 = vmul.f32 %v1439, 0.088388346
        %v1509 = vmul.f32 %v1442, 0.088388346
        %v1510 = vmul.f32 %v1492, 0.088388346
        %v1511 = vmul.f32 %v1495, 0.088388346
        %v1512 = vmul.f32 %v1500, 0.088388346
        %v1513 = vmul.f32 %v1503, 0.088388346
        %v1514 = vadd.f32 %v1506, %v946
        %v1515 = vadd.f32 %v1507, %v947
        %v1516 = vadd.f32 %v1508, %v948
        %v1517 = vadd.f32 %v1509, %v949
        %v1518 = vadd.f32 %v1510, %v946
        %v1519 = vadd.f32 %v1511, %v947
        %v1520 = vadd.f32 %v1512, %v948
        %v1521 = vadd.f32 %v1513, %v949
        %v1522 = vsel %vm1383, %v1514, -inf
        %1523 = vmax.xlane.f32.xlu0 %v1522
        %v1524 = vpop.xlane.xlu0 %1523
        %v1525 = vsel %vm1383, %v1515, -inf
        %1526 = vmax.xlane.f32.xlu0 %v1525
        %v1527 = vpop.xlane.xlu0 %1526
        %v1528 = vsel %vm1383, %v1516, -inf
        %1529 = vmax.xlane.f32.xlu0 %v1528
        %v1530 = vpop.xlane.xlu0 %1529
        %v1531 = vsel %vm1383, %v1517, -inf
        %1532 = vmax.xlane.f32.xlu0 %v1531
        %v1533 = vpop.xlane.xlu0 %1532
        %v1534 = vsel %vm1383, %v1518, -inf
        %1535 = vmax.xlane.f32.xlu0 %v1534
        %v1536 = vpop.xlane.xlu0 %1535
        %v1537 = vsel %vm1383, %v1519, -inf
        %1538 = vmax.xlane.f32.xlu0 %v1537
        %v1539 = vpop.xlane.xlu0 %1538
        %v1540 = vsel %vm1383, %v1520, -inf
        %1541 = vmax.xlane.f32.xlu0 %v1540
        %v1542 = vpop.xlane.xlu0 %1541
        %v1543 = vsel %vm1383, %v1521, -inf
        %1544 = vmax.xlane.f32.xlu0 %v1543
        %v1545 = vpop.xlane.xlu0 %1544
        %v1546 = vsub.f32 %v1514, %v1524
        %v1547 = vsub.f32 %v1515, %v1527
        %v1548 = vsub.f32 %v1516, %v1530
        %v1549 = vsub.f32 %v1517, %v1533
        %v1550 = vsub.f32 %v1518, %v1536
        %v1551 = vsub.f32 %v1519, %v1539
        %v1552 = vsub.f32 %v1520, %v1542
        %v1553 = vsub.f32 %v1521, %v1545
        %v1554 = vmul.f32 %v1546, 1.442695
        %v1555 = vpow.pop %v1554
        %v1556 = vmul.f32 %v1547, 1.442695
        %v1557 = vpow.pop %v1556
        %v1558 = vmul.f32 %v1548, 1.442695
        %v1559 = vpow.pop %v1558
        %v1560 = vmul.f32 %v1549, 1.442695
        %v1561 = vpow.pop %v1560
        %v1562 = vmul.f32 %v1550, 1.442695
        %v1563 = vpow.pop %v1562
        %v1564 = vmul.f32 %v1551, 1.442695
        %v1565 = vpow.pop %v1564
        %v1566 = vmul.f32 %v1552, 1.442695
        %v1567 = vpow.pop %v1566
        %v1568 = vmul.f32 %v1553, 1.442695
        %v1569 = vpow.pop %v1568
        %v1570 = vsel %vm1383, %v1555, 0.0
        %1571 = vadd.xlane.f32.xlu0 %v1570
        %v1572 = vpop.xlane.xlu0 %1571
        %v1573 = vsel %vm1383, %v1557, 0.0
        %1574 = vadd.xlane.f32.xlu0 %v1573
        %v1575 = vpop.xlane.xlu0 %1574
        %v1576 = vsel %vm1383, %v1559, 0.0
        %1577 = vadd.xlane.f32.xlu0 %v1576
        %v1578 = vpop.xlane.xlu0 %1577
        %v1579 = vsel %vm1383, %v1561, 0.0
        %1580 = vadd.xlane.f32.xlu0 %v1579
        %v1581 = vpop.xlane.xlu0 %1580
        %v1582 = vsel %vm1383, %v1563, 0.0
        %1583 = vadd.xlane.f32.xlu0 %v1582
        %v1584 = vpop.xlane.xlu0 %1583
        %v1585 = vsel %vm1383, %v1565, 0.0
        %1586 = vadd.xlane.f32.xlu0 %v1585
        %v1587 = vpop.xlane.xlu0 %1586
        %v1588 = vsel %vm1383, %v1567, 0.0
        %1589 = vadd.xlane.f32.xlu0 %v1588
        %v1590 = vpop.xlane.xlu0 %1589
        %v1591 = vsel %vm1383, %v1569, 0.0
        %1592 = vadd.xlane.f32.xlu0 %v1591
        %v1593 = vpop.xlane.xlu0 %1592
        %v1594 = vrcp.pop %v1572
        %v1595 = vrcp.pop %v1575
        %v1596 = vrcp.pop %v1578
        %v1597 = vrcp.pop %v1581
        %v1598 = vrcp.pop %v1584
        %v1599 = vrcp.pop %v1587
        %v1600 = vrcp.pop %v1590
        %v1601 = vrcp.pop %v1593
        %v1602 = vmul.f32 %v1555, %v1594
        %v1603 = vmul.f32 %v1557, %v1595
        %v1604 = vmul.f32 %v1559, %v1596
        %v1605 = vmul.f32 %v1561, %v1597
        %v1606 = vmul.f32 %v1563, %v1598
        %v1607 = vmul.f32 %v1565, %v1599
        %v1608 = vmul.f32 %v1567, %v1600
        %v1609 = vmul.f32 %v1569, %v1601
        %v1610 = vpack.c.bf16 %v1603, %v1602
        %v1611 = vpack.c.bf16 %v1605, %v1604
        %v1612 = vpack.c.bf16 %v1607, %v1606
        %v1613 = vpack.c.bf16 %v1609, %v1608
        %v1615 = vsel %vm1383, %v1610, 0
        %v1618 = vsel %vm1383, %v1611, 0
        %1620 = vmatprep.subr.bf16.mxu0 0
        %1621 = vmatpush1.bf16.msra.mxu0 %v1379
        %1622 = vmatprep.subr.bf16.mxu0 0
        %1623 = vmatpush1.bf16.msra.mxu0 %v1380
        %1624 = vmatprep.subr.bf16.mxu0 0
        %1625 = vmatpush1.bf16.msra.mxu0 0
        %1626 = vmatprep.subr.bf16.mxu0 0
        %1627 = vmatpush1.bf16.msra.mxu0 0
        %1628 = vmatprep.subr.bf16.mxu0 0
        %1629 = vmatpush1.bf16.msra.mxu0 0
        %1630 = vmatprep.subr.bf16.mxu0 0
        %1631 = vmatpush1.bf16.msra.mxu0 0
        %1632 = vmatprep.subr.bf16.mxu0 0
        %1633 = vmatpush1.bf16.msra.mxu0 0
        %1634 = vmatprep.subr.bf16.mxu0 0
        %1635 = vmatpush1.bf16.msra.mxu0 0
        %1636 = vmatprep.subr.bf16.mxu0 0
        %1637 = vmatpush1.bf16.msra.mxu0 0
        %1638 = vmatprep.subr.bf16.mxu0 0
        %1639 = vmatpush1.bf16.msra.mxu0 0
        %1640 = vmatprep.subr.bf16.mxu0 0
        %1641 = vmatpush1.bf16.msra.mxu0 0
        %1642 = vmatprep.subr.bf16.mxu0 0
        %1643 = vmatpush1.bf16.msra.mxu0 0
        %1644 = vmatprep.subr.bf16.mxu0 0
        %1645 = vmatpush1.bf16.msra.mxu0 0
        %1646 = vmatprep.subr.bf16.mxu0 0
        %1647 = vmatpush1.bf16.msra.mxu0 0
        %1648 = vmatprep.subr.bf16.mxu0 0
        %1649 = vmatpush1.bf16.msra.mxu0 0
        %1650 = vmatprep.subr.bf16.mxu0 0
        %1651 = vmatpush1.bf16.msra.mxu0 0
        %1652 = vmatprep.mubr.bf16.mxu0 0
        %1653 = vmatmul.mubr.bf16.gmra.mrb[0].mxu0 %v1615
        %v1654 = vpop.f32.mrb[0].mxu0
        %v1655 = vadd.f32 0.0, %v1654
        %v1656 = vpop.f32.mrb[0].mxu0
        %v1657 = vpop.f32.mrb[0].mxu0
        %v1658 = vadd.f32 0.0, %v1657
        %v1659 = vpop.f32.mrb[0].mxu0
        %1660 = vmatprep.mubr.bf16.mxu0 0
        %1661 = vmatmul.mubr.bf16.gmra.mrb[0].mxu0 %v1618
        %v1662 = vpop.f32.mrb[0].mxu0
        %v1663 = vadd.f32 0.0, %v1662
        %v1664 = vpop.f32.mrb[0].mxu0
        %v1665 = vpop.f32.mrb[0].mxu0
        %v1666 = vadd.f32 0.0, %v1665
        %v1667 = vpop.f32.mrb[0].mxu0
        %1668 = vdwg.mxu0
        %v1670 = vsel %vm1383, %v1612, 0
        %v1673 = vsel %vm1383, %v1613, 0
        %1675 = vmatprep.subr.bf16.mxu0 0
        %1676 = vmatpush1.bf16.msra.mxu0 %v1381
        %1677 = vmatprep.subr.bf16.mxu0 0
        %1678 = vmatpush1.bf16.msra.mxu0 %v1382
        %1679 = vmatprep.subr.bf16.mxu0 0
        %1680 = vmatpush1.bf16.msra.mxu0 0
        %1681 = vmatprep.subr.bf16.mxu0 0
        %1682 = vmatpush1.bf16.msra.mxu0 0
        %1683 = vmatprep.subr.bf16.mxu0 0
        %1684 = vmatpush1.bf16.msra.mxu0 0
        %1685 = vmatprep.subr.bf16.mxu0 0
        %1686 = vmatpush1.bf16.msra.mxu0 0
        %1687 = vmatprep.subr.bf16.mxu0 0
        %1688 = vmatpush1.bf16.msra.mxu0 0
        %1689 = vmatprep.subr.bf16.mxu0 0
        %1690 = vmatpush1.bf16.msra.mxu0 0
        %1691 = vmatprep.subr.bf16.mxu0 0
        %1692 = vmatpush1.bf16.msra.mxu0 0
        %1693 = vmatprep.subr.bf16.mxu0 0
        %1694 = vmatpush1.bf16.msra.mxu0 0
        %1695 = vmatprep.subr.bf16.mxu0 0
        %1696 = vmatpush1.bf16.msra.mxu0 0
        %1697 = vmatprep.subr.bf16.mxu0 0
        %1698 = vmatpush1.bf16.msra.mxu0 0
        %1699 = vmatprep.subr.bf16.mxu0 0
        %1700 = vmatpush1.bf16.msra.mxu0 0
        %1701 = vmatprep.subr.bf16.mxu0 0
        %1702 = vmatpush1.bf16.msra.mxu0 0
        %1703 = vmatprep.subr.bf16.mxu0 0
        %1704 = vmatpush1.bf16.msra.mxu0 0
        %1705 = vmatprep.subr.bf16.mxu0 0
        %1706 = vmatpush1.bf16.msra.mxu0 0
        %1707 = vmatprep.mubr.bf16.mxu0 0
        %1708 = vmatmul.mubr.bf16.gmra.mrb[0].mxu0 %v1670
        %v1709 = vpop.f32.mrb[0].mxu0
        %v1710 = vadd.f32 0.0, %v1709
        %v1711 = vpop.f32.mrb[0].mxu0
        %v1712 = vpop.f32.mrb[0].mxu0
        %v1713 = vadd.f32 0.0, %v1712
        %v1714 = vpop.f32.mrb[0].mxu0
        %1715 = vmatprep.mubr.bf16.mxu0 0
        %1716 = vmatmul.mubr.bf16.gmra.mrb[0].mxu0 %v1673
        %v1717 = vpop.f32.mrb[0].mxu0
        %v1718 = vadd.f32 0.0, %v1717
        %v1719 = vpop.f32.mrb[0].mxu0
        %v1720 = vpop.f32.mrb[0].mxu0
        %v1721 = vadd.f32 0.0, %v1720
        %v1722 = vpop.f32.mrb[0].mxu0
        %1723 = vdwg.mxu0
        %1726 = vrot.lane.b32.xlu0 %v1371, 96
        %v1727 = vpop.permute.xlu0 %1726
        %1728 = vrot.lane.b32.xlu0 %v1372, 96
        %v1729 = vpop.permute.xlu0 %1728
        %1732 = vrot.lane.b32.xlu0 %v1375, 96
        %v1733 = vpop.permute.xlu0 %1732
        %1734 = vrot.lane.b32.xlu0 %v1376, 96
        %v1735 = vpop.permute.xlu0 %1734
        %v1737 = vsel %vm1383, %v1727, 0
        %v1740 = vsel %vm1383, %v1729, 0
        %v1743 = vsel %vm1383, %v1733, 0
        %v1746 = vsel %vm1383, %v1735, 0
        %1748 = vmatprep.subr.bf16.mxu0 0
        %1749 = vmatpush1.bf16.xpose.msra.mxu0 %v1743
        %1750 = vmatprep.subr.bf16.mxu0 0
        %1751 = vmatpush1.bf16.xpose.msra.mxu0 %v1746
        %1752 = vmatprep.subr.bf16.mxu0 0
        %1753 = vmatpush1.bf16.xpose.msra.mxu0 0
        %1754 = vmatprep.subr.bf16.mxu0 0
        %1755 = vmatpush1.bf16.xpose.msra.mxu0 0
        %1756 = vmatprep.subr.bf16.mxu0 0
        %1757 = vmatpush1.bf16.xpose.msra.mxu0 0
        %1758 = vmatprep.subr.bf16.mxu0 0
        %1759 = vmatpush1.bf16.xpose.msra.mxu0 0
        %1760 = vmatprep.subr.bf16.mxu0 0
        %1761 = vmatpush1.bf16.xpose.msra.mxu0 0
        %1762 = vmatprep.subr.bf16.mxu0 0
        %1763 = vmatpush1.bf16.xpose.msra.mxu0 0
        %1764 = vmatprep.subr.bf16.mxu0 0
        %1765 = vmatpush1.bf16.xpose.msra.mxu0 0
        %1766 = vmatprep.subr.bf16.mxu0 0
        %1767 = vmatpush1.bf16.xpose.msra.mxu0 0
        %1768 = vmatprep.subr.bf16.mxu0 0
        %1769 = vmatpush1.bf16.xpose.msra.mxu0 0
        %1770 = vmatprep.subr.bf16.mxu0 0
        %1771 = vmatpush1.bf16.xpose.msra.mxu0 0
        %1772 = vmatprep.subr.bf16.mxu0 0
        %1773 = vmatpush1.bf16.xpose.msra.mxu0 0
        %1774 = vmatprep.subr.bf16.mxu0 0
        %1775 = vmatpush1.bf16.xpose.msra.mxu0 0
        %1776 = vmatprep.subr.bf16.mxu0 0
        %1777 = vmatpush1.bf16.xpose.msra.mxu0 0
        %1778 = vmatprep.subr.bf16.mxu0 0
        %1779 = vmatpush1.bf16.xpose.msra.mxu0 0
        %1780 = vmatprep.mubr.bf16.mxu0 0
        %1781 = vmatmul.mubr.bf16.gmra.mrb[0].mxu0 %v1737
        %v1782 = vpop.f32.mrb[0].mxu0
        %v1783 = vadd.f32 0.0, %v1782
        %v1784 = vpop.f32.mrb[0].mxu0
        %v1785 = vpop.f32.mrb[0].mxu0
        %v1786 = vadd.f32 0.0, %v1785
        %v1787 = vpop.f32.mrb[0].mxu0
        %1788 = vmatprep.mubr.bf16.mxu0 0
        %1789 = vmatmul.mubr.bf16.gmra.mrb[0].mxu0 %v1740
        %v1790 = vpop.f32.mrb[0].mxu0
        %v1791 = vadd.f32 0.0, %v1790
        %v1792 = vpop.f32.mrb[0].mxu0
        %v1793 = vpop.f32.mrb[0].mxu0
        %v1794 = vadd.f32 0.0, %v1793
        %v1795 = vpop.f32.mrb[0].mxu0
        %1796 = vdwg.mxu0
        %1799 = vrot.lane.b32.xlu0 %v1373, 96
        %v1800 = vpop.permute.xlu0 %1799
        %1801 = vrot.lane.b32.xlu0 %v1374, 96
        %v1802 = vpop.permute.xlu0 %1801
        %1805 = vrot.lane.b32.xlu0 %v1377, 96
        %v1806 = vpop.permute.xlu0 %1805
        %1807 = vrot.lane.b32.xlu0 %v1378, 96
        %v1808 = vpop.permute.xlu0 %1807
        %v1810 = vsel %vm1383, %v1800, 0
        %v1813 = vsel %vm1383, %v1802, 0
        %v1816 = vsel %vm1383, %v1806, 0
        %v1819 = vsel %vm1383, %v1808, 0
        %1821 = vmatprep.subr.bf16.mxu0 0
        %1822 = vmatpush1.bf16.xpose.msra.mxu0 %v1816
        %1823 = vmatprep.subr.bf16.mxu0 0
        %1824 = vmatpush1.bf16.xpose.msra.mxu0 %v1819
        %1825 = vmatprep.subr.bf16.mxu0 0
        %1826 = vmatpush1.bf16.xpose.msra.mxu0 0
        %1827 = vmatprep.subr.bf16.mxu0 0
        %1828 = vmatpush1.bf16.xpose.msra.mxu0 0
        %1829 = vmatprep.subr.bf16.mxu0 0
        %1830 = vmatpush1.bf16.xpose.msra.mxu0 0
        %1831 = vmatprep.subr.bf16.mxu0 0
        %1832 = vmatpush1.bf16.xpose.msra.mxu0 0
        %1833 = vmatprep.subr.bf16.mxu0 0
        %1834 = vmatpush1.bf16.xpose.msra.mxu0 0
        %1835 = vmatprep.subr.bf16.mxu0 0
        %1836 = vmatpush1.bf16.xpose.msra.mxu0 0
        %1837 = vmatprep.subr.bf16.mxu0 0
        %1838 = vmatpush1.bf16.xpose.msra.mxu0 0
        %1839 = vmatprep.subr.bf16.mxu0 0
        %1840 = vmatpush1.bf16.xpose.msra.mxu0 0
        %1841 = vmatprep.subr.bf16.mxu0 0
        %1842 = vmatpush1.bf16.xpose.msra.mxu0 0
        %1843 = vmatprep.subr.bf16.mxu0 0
        %1844 = vmatpush1.bf16.xpose.msra.mxu0 0
        %1845 = vmatprep.subr.bf16.mxu0 0
        %1846 = vmatpush1.bf16.xpose.msra.mxu0 0
        %1847 = vmatprep.subr.bf16.mxu0 0
        %1848 = vmatpush1.bf16.xpose.msra.mxu0 0
        %1849 = vmatprep.subr.bf16.mxu0 0
        %1850 = vmatpush1.bf16.xpose.msra.mxu0 0
        %1851 = vmatprep.subr.bf16.mxu0 0
        %1852 = vmatpush1.bf16.xpose.msra.mxu0 0
        %1853 = vmatprep.mubr.bf16.mxu0 0
        %1854 = vmatmul.mubr.bf16.gmra.mrb[0].mxu0 %v1810
        %v1855 = vpop.f32.mrb[0].mxu0
        %v1856 = vadd.f32 0.0, %v1855
        %v1857 = vpop.f32.mrb[0].mxu0
        %v1858 = vpop.f32.mrb[0].mxu0
        %v1859 = vadd.f32 0.0, %v1858
        %v1860 = vpop.f32.mrb[0].mxu0
        %1861 = vmatprep.mubr.bf16.mxu0 0
        %1862 = vmatmul.mubr.bf16.gmra.mrb[0].mxu0 %v1813
        %v1863 = vpop.f32.mrb[0].mxu0
        %v1864 = vadd.f32 0.0, %v1863
        %v1865 = vpop.f32.mrb[0].mxu0
        %v1866 = vpop.f32.mrb[0].mxu0
        %v1867 = vadd.f32 0.0, %v1866
        %v1868 = vpop.f32.mrb[0].mxu0
        %1869 = vdwg.mxu0
        %v1870 = vmul.f32 %v1783, 0.088388346
        %v1871 = vmul.f32 %v1786, 0.088388346
        %v1872 = vmul.f32 %v1791, 0.088388346
        %v1873 = vmul.f32 %v1794, 0.088388346
        %v1874 = vmul.f32 %v1856, 0.088388346
        %v1875 = vmul.f32 %v1859, 0.088388346
        %v1876 = vmul.f32 %v1864, 0.088388346
        %v1877 = vmul.f32 %v1867, 0.088388346
        %v1878 = vadd.f32 %v1870, %v946
        %v1879 = vadd.f32 %v1871, %v947
        %v1880 = vadd.f32 %v1872, %v948
        %v1881 = vadd.f32 %v1873, %v949
        %v1882 = vadd.f32 %v1874, %v946
        %v1883 = vadd.f32 %v1875, %v947
        %v1884 = vadd.f32 %v1876, %v948
        %v1885 = vadd.f32 %v1877, %v949
        %v1886 = vsel %vm1383, %v1878, -inf
        %1887 = vmax.xlane.f32.xlu0 %v1886
        %v1888 = vpop.xlane.xlu0 %1887
        %v1889 = vsel %vm1383, %v1879, -inf
        %1890 = vmax.xlane.f32.xlu0 %v1889
        %v1891 = vpop.xlane.xlu0 %1890
        %v1892 = vsel %vm1383, %v1880, -inf
        %1893 = vmax.xlane.f32.xlu0 %v1892
        %v1894 = vpop.xlane.xlu0 %1893
        %v1895 = vsel %vm1383, %v1881, -inf
        %1896 = vmax.xlane.f32.xlu0 %v1895
        %v1897 = vpop.xlane.xlu0 %1896
        %v1898 = vsel %vm1383, %v1882, -inf
        %1899 = vmax.xlane.f32.xlu0 %v1898
        %v1900 = vpop.xlane.xlu0 %1899
        %v1901 = vsel %vm1383, %v1883, -inf
        %1902 = vmax.xlane.f32.xlu0 %v1901
        %v1903 = vpop.xlane.xlu0 %1902
        %v1904 = vsel %vm1383, %v1884, -inf
        %1905 = vmax.xlane.f32.xlu0 %v1904
        %v1906 = vpop.xlane.xlu0 %1905
        %v1907 = vsel %vm1383, %v1885, -inf
        %1908 = vmax.xlane.f32.xlu0 %v1907
        %v1909 = vpop.xlane.xlu0 %1908
        %v1910 = vsub.f32 %v1878, %v1888
        %v1911 = vsub.f32 %v1879, %v1891
        %v1912 = vsub.f32 %v1880, %v1894
        %v1913 = vsub.f32 %v1881, %v1897
        %v1914 = vsub.f32 %v1882, %v1900
        %v1915 = vsub.f32 %v1883, %v1903
        %v1916 = vsub.f32 %v1884, %v1906
        %v1917 = vsub.f32 %v1885, %v1909
        %v1918 = vmul.f32 %v1910, 1.442695
        %v1919 = vpow.pop %v1918
        %v1920 = vmul.f32 %v1911, 1.442695
        %v1921 = vpow.pop %v1920
        %v1922 = vmul.f32 %v1912, 1.442695
        %v1923 = vpow.pop %v1922
        %v1924 = vmul.f32 %v1913, 1.442695
        %v1925 = vpow.pop %v1924
        %v1926 = vmul.f32 %v1914, 1.442695
        %v1927 = vpow.pop %v1926
        %v1928 = vmul.f32 %v1915, 1.442695
        %v1929 = vpow.pop %v1928
        %v1930 = vmul.f32 %v1916, 1.442695
        %v1931 = vpow.pop %v1930
        %v1932 = vmul.f32 %v1917, 1.442695
        %v1933 = vpow.pop %v1932
        %v1934 = vsel %vm1383, %v1919, 0.0
        %1935 = vadd.xlane.f32.xlu0 %v1934
        %v1936 = vpop.xlane.xlu0 %1935
        %v1937 = vsel %vm1383, %v1921, 0.0
        %1938 = vadd.xlane.f32.xlu0 %v1937
        %v1939 = vpop.xlane.xlu0 %1938
        %v1940 = vsel %vm1383, %v1923, 0.0
        %1941 = vadd.xlane.f32.xlu0 %v1940
        %v1942 = vpop.xlane.xlu0 %1941
        %v1943 = vsel %vm1383, %v1925, 0.0
        %1944 = vadd.xlane.f32.xlu0 %v1943
        %v1945 = vpop.xlane.xlu0 %1944
        %v1946 = vsel %vm1383, %v1927, 0.0
        %1947 = vadd.xlane.f32.xlu0 %v1946
        %v1948 = vpop.xlane.xlu0 %1947
        %v1949 = vsel %vm1383, %v1929, 0.0
        %1950 = vadd.xlane.f32.xlu0 %v1949
        %v1951 = vpop.xlane.xlu0 %1950
        %v1952 = vsel %vm1383, %v1931, 0.0
        %1953 = vadd.xlane.f32.xlu0 %v1952
        %v1954 = vpop.xlane.xlu0 %1953
        %v1955 = vsel %vm1383, %v1933, 0.0
        %1956 = vadd.xlane.f32.xlu0 %v1955
        %v1957 = vpop.xlane.xlu0 %1956
        %v1958 = vrcp.pop %v1936
        %v1959 = vrcp.pop %v1939
        %v1960 = vrcp.pop %v1942
        %v1961 = vrcp.pop %v1945
        %v1962 = vrcp.pop %v1948
        %v1963 = vrcp.pop %v1951
        %v1964 = vrcp.pop %v1954
        %v1965 = vrcp.pop %v1957
        %v1966 = vmul.f32 %v1919, %v1958
        %v1967 = vmul.f32 %v1921, %v1959
        %v1968 = vmul.f32 %v1923, %v1960
        %v1969 = vmul.f32 %v1925, %v1961
        %v1970 = vmul.f32 %v1927, %v1962
        %v1971 = vmul.f32 %v1929, %v1963
        %v1972 = vmul.f32 %v1931, %v1964
        %v1973 = vmul.f32 %v1933, %v1965
        %v1974 = vpack.c.bf16 %v1967, %v1966
        %v1975 = vpack.c.bf16 %v1969, %v1968
        %v1976 = vpack.c.bf16 %v1971, %v1970
        %v1977 = vpack.c.bf16 %v1973, %v1972
        %1980 = vrot.lane.b32.xlu0 %v1379, 96
        %v1981 = vpop.permute.xlu0 %1980
        %1982 = vrot.lane.b32.xlu0 %v1380, 96
        %v1983 = vpop.permute.xlu0 %1982
        %v1987 = vsel %vm1383, %v1974, 0
        %v1990 = vsel %vm1383, %v1975, 0
        %1992 = vmatprep.subr.bf16.mxu0 0
        %1993 = vmatpush1.bf16.msra.mxu0 %v1981
        %1994 = vmatprep.subr.bf16.mxu0 0
        %1995 = vmatpush1.bf16.msra.mxu0 %v1983
        %1996 = vmatprep.subr.bf16.mxu0 0
        %1997 = vmatpush1.bf16.msra.mxu0 0
        %1998 = vmatprep.subr.bf16.mxu0 0
        %1999 = vmatpush1.bf16.msra.mxu0 0
        %2000 = vmatprep.subr.bf16.mxu0 0
        %2001 = vmatpush1.bf16.msra.mxu0 0
        %2002 = vmatprep.subr.bf16.mxu0 0
        %2003 = vmatpush1.bf16.msra.mxu0 0
        %2004 = vmatprep.subr.bf16.mxu0 0
        %2005 = vmatpush1.bf16.msra.mxu0 0
        %2006 = vmatprep.subr.bf16.mxu0 0
        %2007 = vmatpush1.bf16.msra.mxu0 0
        %2008 = vmatprep.subr.bf16.mxu0 0
        %2009 = vmatpush1.bf16.msra.mxu0 0
        %2010 = vmatprep.subr.bf16.mxu0 0
        %2011 = vmatpush1.bf16.msra.mxu0 0
        %2012 = vmatprep.subr.bf16.mxu0 0
        %2013 = vmatpush1.bf16.msra.mxu0 0
        %2014 = vmatprep.subr.bf16.mxu0 0
        %2015 = vmatpush1.bf16.msra.mxu0 0
        %2016 = vmatprep.subr.bf16.mxu0 0
        %2017 = vmatpush1.bf16.msra.mxu0 0
        %2018 = vmatprep.subr.bf16.mxu0 0
        %2019 = vmatpush1.bf16.msra.mxu0 0
        %2020 = vmatprep.subr.bf16.mxu0 0
        %2021 = vmatpush1.bf16.msra.mxu0 0
        %2022 = vmatprep.subr.bf16.mxu0 0
        %2023 = vmatpush1.bf16.msra.mxu0 0
        %2024 = vmatprep.mubr.bf16.mxu0 0
        %2025 = vmatmul.mubr.bf16.gmra.mrb[0].mxu0 %v1987
        %v2026 = vpop.f32.mrb[0].mxu0
        %v2027 = vadd.f32 0.0, %v2026
        %v2028 = vpop.f32.mrb[0].mxu0
        %v2029 = vpop.f32.mrb[0].mxu0
        %v2030 = vadd.f32 0.0, %v2029
        %v2031 = vpop.f32.mrb[0].mxu0
        %2032 = vmatprep.mubr.bf16.mxu0 0
        %2033 = vmatmul.mubr.bf16.gmra.mrb[0].mxu0 %v1990
        %v2034 = vpop.f32.mrb[0].mxu0
        %v2035 = vadd.f32 0.0, %v2034
        %v2036 = vpop.f32.mrb[0].mxu0
        %v2037 = vpop.f32.mrb[0].mxu0
        %v2038 = vadd.f32 0.0, %v2037
        %v2039 = vpop.f32.mrb[0].mxu0
        %2040 = vdwg.mxu0
        %2043 = vrot.lane.b32.xlu0 %v1381, 96
        %v2044 = vpop.permute.xlu0 %2043
        %2045 = vrot.lane.b32.xlu0 %v1382, 96
        %v2046 = vpop.permute.xlu0 %2045
        %v2050 = vsel %vm1383, %v1976, 0
        %v2053 = vsel %vm1383, %v1977, 0
        %2055 = vmatprep.subr.bf16.mxu0 0
        %2056 = vmatpush1.bf16.msra.mxu0 %v2044
        %2057 = vmatprep.subr.bf16.mxu0 0
        %2058 = vmatpush1.bf16.msra.mxu0 %v2046
        %2059 = vmatprep.subr.bf16.mxu0 0
        %2060 = vmatpush1.bf16.msra.mxu0 0
        %2061 = vmatprep.subr.bf16.mxu0 0
        %2062 = vmatpush1.bf16.msra.mxu0 0
        %2063 = vmatprep.subr.bf16.mxu0 0
        %2064 = vmatpush1.bf16.msra.mxu0 0
        %2065 = vmatprep.subr.bf16.mxu0 0
        %2066 = vmatpush1.bf16.msra.mxu0 0
        %2067 = vmatprep.subr.bf16.mxu0 0
        %2068 = vmatpush1.bf16.msra.mxu0 0
        %2069 = vmatprep.subr.bf16.mxu0 0
        %2070 = vmatpush1.bf16.msra.mxu0 0
        %2071 = vmatprep.subr.bf16.mxu0 0
        %2072 = vmatpush1.bf16.msra.mxu0 0
        %2073 = vmatprep.subr.bf16.mxu0 0
        %2074 = vmatpush1.bf16.msra.mxu0 0
        %2075 = vmatprep.subr.bf16.mxu0 0
        %2076 = vmatpush1.bf16.msra.mxu0 0
        %2077 = vmatprep.subr.bf16.mxu0 0
        %2078 = vmatpush1.bf16.msra.mxu0 0
        %2079 = vmatprep.subr.bf16.mxu0 0
        %2080 = vmatpush1.bf16.msra.mxu0 0
        %2081 = vmatprep.subr.bf16.mxu0 0
        %2082 = vmatpush1.bf16.msra.mxu0 0
        %2083 = vmatprep.subr.bf16.mxu0 0
        %2084 = vmatpush1.bf16.msra.mxu0 0
        %2085 = vmatprep.subr.bf16.mxu0 0
        %2086 = vmatpush1.bf16.msra.mxu0 0
        %2087 = vmatprep.mubr.bf16.mxu0 0
        %2088 = vmatmul.mubr.bf16.gmra.mrb[0].mxu0 %v2050
        %v2089 = vpop.f32.mrb[0].mxu0
        %v2090 = vadd.f32 0.0, %v2089
        %v2091 = vpop.f32.mrb[0].mxu0
        %v2092 = vpop.f32.mrb[0].mxu0
        %v2093 = vadd.f32 0.0, %v2092
        %v2094 = vpop.f32.mrb[0].mxu0
        %2095 = vmatprep.mubr.bf16.mxu0 0
        %2096 = vmatmul.mubr.bf16.gmra.mrb[0].mxu0 %v2053
        %v2097 = vpop.f32.mrb[0].mxu0
        %v2098 = vadd.f32 0.0, %v2097
        %v2099 = vpop.f32.mrb[0].mxu0
        %v2100 = vpop.f32.mrb[0].mxu0
        %v2101 = vadd.f32 0.0, %v2100
        %v2102 = vpop.f32.mrb[0].mxu0
        %2103 = vdwg.mxu0
        %2104 = vrot.lane.b32.xlu0 %v1371, 64
        %v2105 = vpop.permute.xlu0 %2104
        %2106 = vrot.lane.b32.xlu0 %v1372, 64
        %v2107 = vpop.permute.xlu0 %2106
        %2108 = vrot.lane.b32.xlu0 %v1375, 64
        %v2109 = vpop.permute.xlu0 %2108
        %2110 = vrot.lane.b32.xlu0 %v1376, 64
        %v2111 = vpop.permute.xlu0 %2110
        %v2113 = vsel %vm1383, %v2105, 0
        %v2116 = vsel %vm1383, %v2107, 0
        %v2119 = vsel %vm1383, %v2109, 0
        %v2122 = vsel %vm1383, %v2111, 0
        %2124 = vmatprep.subr.bf16.mxu0 0
        %2125 = vmatpush1.bf16.xpose.msra.mxu0 %v2119
        %2126 = vmatprep.subr.bf16.mxu0 0
        %2127 = vmatpush1.bf16.xpose.msra.mxu0 %v2122
        %2128 = vmatprep.subr.bf16.mxu0 0
        %2129 = vmatpush1.bf16.xpose.msra.mxu0 0
        %2130 = vmatprep.subr.bf16.mxu0 0
        %2131 = vmatpush1.bf16.xpose.msra.mxu0 0
        %2132 = vmatprep.subr.bf16.mxu0 0
        %2133 = vmatpush1.bf16.xpose.msra.mxu0 0
        %2134 = vmatprep.subr.bf16.mxu0 0
        %2135 = vmatpush1.bf16.xpose.msra.mxu0 0
        %2136 = vmatprep.subr.bf16.mxu0 0
        %2137 = vmatpush1.bf16.xpose.msra.mxu0 0
        %2138 = vmatprep.subr.bf16.mxu0 0
        %2139 = vmatpush1.bf16.xpose.msra.mxu0 0
        %2140 = vmatprep.subr.bf16.mxu0 0
        %2141 = vmatpush1.bf16.xpose.msra.mxu0 0
        %2142 = vmatprep.subr.bf16.mxu0 0
        %2143 = vmatpush1.bf16.xpose.msra.mxu0 0
        %2144 = vmatprep.subr.bf16.mxu0 0
        %2145 = vmatpush1.bf16.xpose.msra.mxu0 0
        %2146 = vmatprep.subr.bf16.mxu0 0
        %2147 = vmatpush1.bf16.xpose.msra.mxu0 0
        %2148 = vmatprep.subr.bf16.mxu0 0
        %2149 = vmatpush1.bf16.xpose.msra.mxu0 0
        %2150 = vmatprep.subr.bf16.mxu0 0
        %2151 = vmatpush1.bf16.xpose.msra.mxu0 0
        %2152 = vmatprep.subr.bf16.mxu0 0
        %2153 = vmatpush1.bf16.xpose.msra.mxu0 0
        %2154 = vmatprep.subr.bf16.mxu0 0
        %2155 = vmatpush1.bf16.xpose.msra.mxu0 0
        %2156 = vmatprep.mubr.bf16.mxu0 0
        %2157 = vmatmul.mubr.bf16.gmra.mrb[0].mxu0 %v2113
        %v2158 = vpop.f32.mrb[0].mxu0
        %v2159 = vadd.f32 0.0, %v2158
        %v2160 = vpop.f32.mrb[0].mxu0
        %v2161 = vpop.f32.mrb[0].mxu0
        %v2162 = vadd.f32 0.0, %v2161
        %v2163 = vpop.f32.mrb[0].mxu0
        %2164 = vmatprep.mubr.bf16.mxu0 0
        %2165 = vmatmul.mubr.bf16.gmra.mrb[0].mxu0 %v2116
        %v2166 = vpop.f32.mrb[0].mxu0
        %v2167 = vadd.f32 0.0, %v2166
        %v2168 = vpop.f32.mrb[0].mxu0
        %v2169 = vpop.f32.mrb[0].mxu0
        %v2170 = vadd.f32 0.0, %v2169
        %v2171 = vpop.f32.mrb[0].mxu0
        %2172 = vdwg.mxu0
        %2173 = vrot.lane.b32.xlu0 %v1373, 64
        %v2174 = vpop.permute.xlu0 %2173
        %2175 = vrot.lane.b32.xlu0 %v1374, 64
        %v2176 = vpop.permute.xlu0 %2175
        %2177 = vrot.lane.b32.xlu0 %v1377, 64
        %v2178 = vpop.permute.xlu0 %2177
        %2179 = vrot.lane.b32.xlu0 %v1378, 64
        %v2180 = vpop.permute.xlu0 %2179
        %v2182 = vsel %vm1383, %v2174, 0
        %v2185 = vsel %vm1383, %v2176, 0
        %v2188 = vsel %vm1383, %v2178, 0
        %v2191 = vsel %vm1383, %v2180, 0
        %2193 = vmatprep.subr.bf16.mxu0 0
        %2194 = vmatpush1.bf16.xpose.msra.mxu0 %v2188
        %2195 = vmatprep.subr.bf16.mxu0 0
        %2196 = vmatpush1.bf16.xpose.msra.mxu0 %v2191
        %2197 = vmatprep.subr.bf16.mxu0 0
        %2198 = vmatpush1.bf16.xpose.msra.mxu0 0
        %2199 = vmatprep.subr.bf16.mxu0 0
        %2200 = vmatpush1.bf16.xpose.msra.mxu0 0
        %2201 = vmatprep.subr.bf16.mxu0 0
        %2202 = vmatpush1.bf16.xpose.msra.mxu0 0
        %2203 = vmatprep.subr.bf16.mxu0 0
        %2204 = vmatpush1.bf16.xpose.msra.mxu0 0
        %2205 = vmatprep.subr.bf16.mxu0 0
        %2206 = vmatpush1.bf16.xpose.msra.mxu0 0
        %2207 = vmatprep.subr.bf16.mxu0 0
        %2208 = vmatpush1.bf16.xpose.msra.mxu0 0
        %2209 = vmatprep.subr.bf16.mxu0 0
        %2210 = vmatpush1.bf16.xpose.msra.mxu0 0
        %2211 = vmatprep.subr.bf16.mxu0 0
        %2212 = vmatpush1.bf16.xpose.msra.mxu0 0
        %2213 = vmatprep.subr.bf16.mxu0 0
        %2214 = vmatpush1.bf16.xpose.msra.mxu0 0
        %2215 = vmatprep.subr.bf16.mxu0 0
        %2216 = vmatpush1.bf16.xpose.msra.mxu0 0
        %2217 = vmatprep.subr.bf16.mxu0 0
        %2218 = vmatpush1.bf16.xpose.msra.mxu0 0
        %2219 = vmatprep.subr.bf16.mxu0 0
        %2220 = vmatpush1.bf16.xpose.msra.mxu0 0
        %2221 = vmatprep.subr.bf16.mxu0 0
        %2222 = vmatpush1.bf16.xpose.msra.mxu0 0
        %2223 = vmatprep.subr.bf16.mxu0 0
        %2224 = vmatpush1.bf16.xpose.msra.mxu0 0
        %2225 = vmatprep.mubr.bf16.mxu0 0
        %2226 = vmatmul.mubr.bf16.gmra.mrb[0].mxu0 %v2182
        %v2227 = vpop.f32.mrb[0].mxu0
        %v2228 = vadd.f32 0.0, %v2227
        %v2229 = vpop.f32.mrb[0].mxu0
        %v2230 = vpop.f32.mrb[0].mxu0
        %v2231 = vadd.f32 0.0, %v2230
        %v2232 = vpop.f32.mrb[0].mxu0
        %2233 = vmatprep.mubr.bf16.mxu0 0
        %2234 = vmatmul.mubr.bf16.gmra.mrb[0].mxu0 %v2185
        %v2235 = vpop.f32.mrb[0].mxu0
        %v2236 = vadd.f32 0.0, %v2235
        %v2237 = vpop.f32.mrb[0].mxu0
        %v2238 = vpop.f32.mrb[0].mxu0
        %v2239 = vadd.f32 0.0, %v2238
        %v2240 = vpop.f32.mrb[0].mxu0
        %2241 = vdwg.mxu0
        %v2242 = vmul.f32 %v2159, 0.088388346
        %v2243 = vmul.f32 %v2162, 0.088388346
        %v2244 = vmul.f32 %v2167, 0.088388346
        %v2245 = vmul.f32 %v2170, 0.088388346
        %v2246 = vmul.f32 %v2228, 0.088388346
        %v2247 = vmul.f32 %v2231, 0.088388346
        %v2248 = vmul.f32 %v2236, 0.088388346
        %v2249 = vmul.f32 %v2239, 0.088388346
        %v2250 = vadd.f32 %v2242, %v946
        %v2251 = vadd.f32 %v2243, %v947
        %v2252 = vadd.f32 %v2244, %v948
        %v2253 = vadd.f32 %v2245, %v949
        %v2254 = vadd.f32 %v2246, %v946
        %v2255 = vadd.f32 %v2247, %v947
        %v2256 = vadd.f32 %v2248, %v948
        %v2257 = vadd.f32 %v2249, %v949
        %v2258 = vsel %vm1383, %v2250, -inf
        %2259 = vmax.xlane.f32.xlu0 %v2258
        %v2260 = vpop.xlane.xlu0 %2259
        %v2261 = vsel %vm1383, %v2251, -inf
        %2262 = vmax.xlane.f32.xlu0 %v2261
        %v2263 = vpop.xlane.xlu0 %2262
        %v2264 = vsel %vm1383, %v2252, -inf
        %2265 = vmax.xlane.f32.xlu0 %v2264
        %v2266 = vpop.xlane.xlu0 %2265
        %v2267 = vsel %vm1383, %v2253, -inf
        %2268 = vmax.xlane.f32.xlu0 %v2267
        %v2269 = vpop.xlane.xlu0 %2268
        %v2270 = vsel %vm1383, %v2254, -inf
        %2271 = vmax.xlane.f32.xlu0 %v2270
        %v2272 = vpop.xlane.xlu0 %2271
        %v2273 = vsel %vm1383, %v2255, -inf
        %2274 = vmax.xlane.f32.xlu0 %v2273
        %v2275 = vpop.xlane.xlu0 %2274
        %v2276 = vsel %vm1383, %v2256, -inf
        %2277 = vmax.xlane.f32.xlu0 %v2276
        %v2278 = vpop.xlane.xlu0 %2277
        %v2279 = vsel %vm1383, %v2257, -inf
        %2280 = vmax.xlane.f32.xlu0 %v2279
        %v2281 = vpop.xlane.xlu0 %2280
        %v2282 = vsub.f32 %v2250, %v2260
        %v2283 = vsub.f32 %v2251, %v2263
        %v2284 = vsub.f32 %v2252, %v2266
        %v2285 = vsub.f32 %v2253, %v2269
        %v2286 = vsub.f32 %v2254, %v2272
        %v2287 = vsub.f32 %v2255, %v2275
        %v2288 = vsub.f32 %v2256, %v2278
        %v2289 = vsub.f32 %v2257, %v2281
        %v2290 = vmul.f32 %v2282, 1.442695
        %v2291 = vpow.pop %v2290
        %v2292 = vmul.f32 %v2283, 1.442695
        %v2293 = vpow.pop %v2292
        %v2294 = vmul.f32 %v2284, 1.442695
        %v2295 = vpow.pop %v2294
        %v2296 = vmul.f32 %v2285, 1.442695
        %v2297 = vpow.pop %v2296
        %v2298 = vmul.f32 %v2286, 1.442695
        %v2299 = vpow.pop %v2298
        %v2300 = vmul.f32 %v2287, 1.442695
        %v2301 = vpow.pop %v2300
        %v2302 = vmul.f32 %v2288, 1.442695
        %v2303 = vpow.pop %v2302
        %v2304 = vmul.f32 %v2289, 1.442695
        %v2305 = vpow.pop %v2304
        %v2306 = vsel %vm1383, %v2291, 0.0
        %2307 = vadd.xlane.f32.xlu0 %v2306
        %v2308 = vpop.xlane.xlu0 %2307
        %v2309 = vsel %vm1383, %v2293, 0.0
        %2310 = vadd.xlane.f32.xlu0 %v2309
        %v2311 = vpop.xlane.xlu0 %2310
        %v2312 = vsel %vm1383, %v2295, 0.0
        %2313 = vadd.xlane.f32.xlu0 %v2312
        %v2314 = vpop.xlane.xlu0 %2313
        %v2315 = vsel %vm1383, %v2297, 0.0
        %2316 = vadd.xlane.f32.xlu0 %v2315
        %v2317 = vpop.xlane.xlu0 %2316
        %v2318 = vsel %vm1383, %v2299, 0.0
        %2319 = vadd.xlane.f32.xlu0 %v2318
        %v2320 = vpop.xlane.xlu0 %2319
        %v2321 = vsel %vm1383, %v2301, 0.0
        %2322 = vadd.xlane.f32.xlu0 %v2321
        %v2323 = vpop.xlane.xlu0 %2322
        %v2324 = vsel %vm1383, %v2303, 0.0
        %2325 = vadd.xlane.f32.xlu0 %v2324
        %v2326 = vpop.xlane.xlu0 %2325
        %v2327 = vsel %vm1383, %v2305, 0.0
        %2328 = vadd.xlane.f32.xlu0 %v2327
        %v2329 = vpop.xlane.xlu0 %2328
        %v2330 = vrcp.pop %v2308
        %v2331 = vrcp.pop %v2311
        %v2332 = vrcp.pop %v2314
        %v2333 = vrcp.pop %v2317
        %v2334 = vrcp.pop %v2320
        %v2335 = vrcp.pop %v2323
        %v2336 = vrcp.pop %v2326
        %v2337 = vrcp.pop %v2329
        %v2338 = vmul.f32 %v2291, %v2330
        %v2339 = vmul.f32 %v2293, %v2331
        %v2340 = vmul.f32 %v2295, %v2332
        %v2341 = vmul.f32 %v2297, %v2333
        %v2342 = vmul.f32 %v2299, %v2334
        %v2343 = vmul.f32 %v2301, %v2335
        %v2344 = vmul.f32 %v2303, %v2336
        %v2345 = vmul.f32 %v2305, %v2337
        %v2346 = vpack.c.bf16 %v2339, %v2338
        %v2347 = vpack.c.bf16 %v2341, %v2340
        %v2348 = vpack.c.bf16 %v2343, %v2342
        %v2349 = vpack.c.bf16 %v2345, %v2344
        %2350 = vrot.lane.b32.xlu0 %v1379, 64
        %v2351 = vpop.permute.xlu0 %2350
        %2352 = vrot.lane.b32.xlu0 %v1380, 64
        %v2353 = vpop.permute.xlu0 %2352
        %v2357 = vsel %vm1383, %v2346, 0
        %v2360 = vsel %vm1383, %v2347, 0
        %2362 = vmatprep.subr.bf16.mxu0 0
        %2363 = vmatpush1.bf16.msra.mxu0 %v2351
        %2364 = vmatprep.subr.bf16.mxu0 0
        %2365 = vmatpush1.bf16.msra.mxu0 %v2353
        %2366 = vmatprep.subr.bf16.mxu0 0
        %2367 = vmatpush1.bf16.msra.mxu0 0
        %2368 = vmatprep.subr.bf16.mxu0 0
        %2369 = vmatpush1.bf16.msra.mxu0 0
        %2370 = vmatprep.subr.bf16.mxu0 0
        %2371 = vmatpush1.bf16.msra.mxu0 0
        %2372 = vmatprep.subr.bf16.mxu0 0
        %2373 = vmatpush1.bf16.msra.mxu0 0
        %2374 = vmatprep.subr.bf16.mxu0 0
        %2375 = vmatpush1.bf16.msra.mxu0 0
        %2376 = vmatprep.subr.bf16.mxu0 0
        %2377 = vmatpush1.bf16.msra.mxu0 0
        %2378 = vmatprep.subr.bf16.mxu0 0
        %2379 = vmatpush1.bf16.msra.mxu0 0
        %2380 = vmatprep.subr.bf16.mxu0 0
        %2381 = vmatpush1.bf16.msra.mxu0 0
        %2382 = vmatprep.subr.bf16.mxu0 0
        %2383 = vmatpush1.bf16.msra.mxu0 0
        %2384 = vmatprep.subr.bf16.mxu0 0
        %2385 = vmatpush1.bf16.msra.mxu0 0
        %2386 = vmatprep.subr.bf16.mxu0 0
        %2387 = vmatpush1.bf16.msra.mxu0 0
        %2388 = vmatprep.subr.bf16.mxu0 0
        %2389 = vmatpush1.bf16.msra.mxu0 0
        %2390 = vmatprep.subr.bf16.mxu0 0
        %2391 = vmatpush1.bf16.msra.mxu0 0
        %2392 = vmatprep.subr.bf16.mxu0 0
        %2393 = vmatpush1.bf16.msra.mxu0 0
        %2394 = vmatprep.mubr.bf16.mxu0 0
        %2395 = vmatmul.mubr.bf16.gmra.mrb[0].mxu0 %v2357
        %v2396 = vpop.f32.mrb[0].mxu0
        %v2397 = vadd.f32 0.0, %v2396
        %v2398 = vpop.f32.mrb[0].mxu0
        %v2399 = vpop.f32.mrb[0].mxu0
        %v2400 = vadd.f32 0.0, %v2399
        %v2401 = vpop.f32.mrb[0].mxu0
        %2402 = vmatprep.mubr.bf16.mxu0 0
        %2403 = vmatmul.mubr.bf16.gmra.mrb[0].mxu0 %v2360
        %v2404 = vpop.f32.mrb[0].mxu0
        %v2405 = vadd.f32 0.0, %v2404
        %v2406 = vpop.f32.mrb[0].mxu0
        %v2407 = vpop.f32.mrb[0].mxu0
        %v2408 = vadd.f32 0.0, %v2407
        %v2409 = vpop.f32.mrb[0].mxu0
        %2410 = vdwg.mxu0
        %2411 = vrot.lane.b32.xlu0 %v1381, 64
        %v2412 = vpop.permute.xlu0 %2411
        %2413 = vrot.lane.b32.xlu0 %v1382, 64
        %v2414 = vpop.permute.xlu0 %2413
        %v2418 = vsel %vm1383, %v2348, 0
        %v2421 = vsel %vm1383, %v2349, 0
        %2423 = vmatprep.subr.bf16.mxu0 0
        %2424 = vmatpush1.bf16.msra.mxu0 %v2412
        %2425 = vmatprep.subr.bf16.mxu0 0
        %2426 = vmatpush1.bf16.msra.mxu0 %v2414
        %2427 = vmatprep.subr.bf16.mxu0 0
        %2428 = vmatpush1.bf16.msra.mxu0 0
        %2429 = vmatprep.subr.bf16.mxu0 0
        %2430 = vmatpush1.bf16.msra.mxu0 0
        %2431 = vmatprep.subr.bf16.mxu0 0
        %2432 = vmatpush1.bf16.msra.mxu0 0
        %2433 = vmatprep.subr.bf16.mxu0 0
        %2434 = vmatpush1.bf16.msra.mxu0 0
        %2435 = vmatprep.subr.bf16.mxu0 0
        %2436 = vmatpush1.bf16.msra.mxu0 0
        %2437 = vmatprep.subr.bf16.mxu0 0
        %2438 = vmatpush1.bf16.msra.mxu0 0
        %2439 = vmatprep.subr.bf16.mxu0 0
        %2440 = vmatpush1.bf16.msra.mxu0 0
        %2441 = vmatprep.subr.bf16.mxu0 0
        %2442 = vmatpush1.bf16.msra.mxu0 0
        %2443 = vmatprep.subr.bf16.mxu0 0
        %2444 = vmatpush1.bf16.msra.mxu0 0
        %2445 = vmatprep.subr.bf16.mxu0 0
        %2446 = vmatpush1.bf16.msra.mxu0 0
        %2447 = vmatprep.subr.bf16.mxu0 0
        %2448 = vmatpush1.bf16.msra.mxu0 0
        %2449 = vmatprep.subr.bf16.mxu0 0
        %2450 = vmatpush1.bf16.msra.mxu0 0
        %2451 = vmatprep.subr.bf16.mxu0 0
        %2452 = vmatpush1.bf16.msra.mxu0 0
        %2453 = vmatprep.subr.bf16.mxu0 0
        %2454 = vmatpush1.bf16.msra.mxu0 0
        %2455 = vmatprep.mubr.bf16.mxu0 0
        %2456 = vmatmul.mubr.bf16.gmra.mrb[0].mxu0 %v2418
        %v2457 = vpop.f32.mrb[0].mxu0
        %v2458 = vadd.f32 0.0, %v2457
        %v2459 = vpop.f32.mrb[0].mxu0
        %v2460 = vpop.f32.mrb[0].mxu0
        %v2461 = vadd.f32 0.0, %v2460
        %v2462 = vpop.f32.mrb[0].mxu0
        %2463 = vmatprep.mubr.bf16.mxu0 0
        %2464 = vmatmul.mubr.bf16.gmra.mrb[0].mxu0 %v2421
        %v2465 = vpop.f32.mrb[0].mxu0
        %v2466 = vadd.f32 0.0, %v2465
        %v2467 = vpop.f32.mrb[0].mxu0
        %v2468 = vpop.f32.mrb[0].mxu0
        %v2469 = vadd.f32 0.0, %v2468
        %v2470 = vpop.f32.mrb[0].mxu0
        %2471 = vdwg.mxu0
        %2472 = vrot.lane.b32.xlu0 %v1371, 32
        %v2473 = vpop.permute.xlu0 %2472
        %2474 = vrot.lane.b32.xlu0 %v1372, 32
        %v2475 = vpop.permute.xlu0 %2474
        %2476 = vrot.lane.b32.xlu0 %v1375, 32
        %v2477 = vpop.permute.xlu0 %2476
        %2478 = vrot.lane.b32.xlu0 %v1376, 32
        %v2479 = vpop.permute.xlu0 %2478
        %v2481 = vsel %vm1383, %v2473, 0
        %v2484 = vsel %vm1383, %v2475, 0
        %v2487 = vsel %vm1383, %v2477, 0
        %v2490 = vsel %vm1383, %v2479, 0
        %2492 = vmatprep.subr.bf16.mxu0 0
        %2493 = vmatpush1.bf16.xpose.msra.mxu0 %v2487
        %2494 = vmatprep.subr.bf16.mxu0 0
        %2495 = vmatpush1.bf16.xpose.msra.mxu0 %v2490
        %2496 = vmatprep.subr.bf16.mxu0 0
        %2497 = vmatpush1.bf16.xpose.msra.mxu0 0
        %2498 = vmatprep.subr.bf16.mxu0 0
        %2499 = vmatpush1.bf16.xpose.msra.mxu0 0
        %2500 = vmatprep.subr.bf16.mxu0 0
        %2501 = vmatpush1.bf16.xpose.msra.mxu0 0
        %2502 = vmatprep.subr.bf16.mxu0 0
        %2503 = vmatpush1.bf16.xpose.msra.mxu0 0
        %2504 = vmatprep.subr.bf16.mxu0 0
        %2505 = vmatpush1.bf16.xpose.msra.mxu0 0
        %2506 = vmatprep.subr.bf16.mxu0 0
        %2507 = vmatpush1.bf16.xpose.msra.mxu0 0
        %2508 = vmatprep.subr.bf16.mxu0 0
        %2509 = vmatpush1.bf16.xpose.msra.mxu0 0
        %2510 = vmatprep.subr.bf16.mxu0 0
        %2511 = vmatpush1.bf16.xpose.msra.mxu0 0
        %2512 = vmatprep.subr.bf16.mxu0 0
        %2513 = vmatpush1.bf16.xpose.msra.mxu0 0
        %2514 = vmatprep.subr.bf16.mxu0 0
        %2515 = vmatpush1.bf16.xpose.msra.mxu0 0
        %2516 = vmatprep.subr.bf16.mxu0 0
        %2517 = vmatpush1.bf16.xpose.msra.mxu0 0
        %2518 = vmatprep.subr.bf16.mxu0 0
        %2519 = vmatpush1.bf16.xpose.msra.mxu0 0
        %2520 = vmatprep.subr.bf16.mxu0 0
        %2521 = vmatpush1.bf16.xpose.msra.mxu0 0
        %2522 = vmatprep.subr.bf16.mxu0 0
        %2523 = vmatpush1.bf16.xpose.msra.mxu0 0
        %2524 = vmatprep.mubr.bf16.mxu0 0
        %2525 = vmatmul.mubr.bf16.gmra.mrb[0].mxu0 %v2481
        %v2526 = vpop.f32.mrb[0].mxu0
        %v2527 = vadd.f32 0.0, %v2526
        %v2528 = vpop.f32.mrb[0].mxu0
        %v2529 = vpop.f32.mrb[0].mxu0
        %v2530 = vadd.f32 0.0, %v2529
        %v2531 = vpop.f32.mrb[0].mxu0
        %2532 = vmatprep.mubr.bf16.mxu0 0
        %2533 = vmatmul.mubr.bf16.gmra.mrb[0].mxu0 %v2484
        %v2534 = vpop.f32.mrb[0].mxu0
        %v2535 = vadd.f32 0.0, %v2534
        %v2536 = vpop.f32.mrb[0].mxu0
        %v2537 = vpop.f32.mrb[0].mxu0
        %v2538 = vadd.f32 0.0, %v2537
        %v2539 = vpop.f32.mrb[0].mxu0
        %2540 = vdwg.mxu0
        %2541 = vrot.lane.b32.xlu0 %v1373, 32
        %v2542 = vpop.permute.xlu0 %2541
        %2543 = vrot.lane.b32.xlu0 %v1374, 32
        %v2544 = vpop.permute.xlu0 %2543
        %2545 = vrot.lane.b32.xlu0 %v1377, 32
        %v2546 = vpop.permute.xlu0 %2545
        %2547 = vrot.lane.b32.xlu0 %v1378, 32
        %v2548 = vpop.permute.xlu0 %2547
        %v2550 = vsel %vm1383, %v2542, 0
        %v2553 = vsel %vm1383, %v2544, 0
        %v2556 = vsel %vm1383, %v2546, 0
        %v2559 = vsel %vm1383, %v2548, 0
        %2561 = vmatprep.subr.bf16.mxu0 0
        %2562 = vmatpush1.bf16.xpose.msra.mxu0 %v2556
        %2563 = vmatprep.subr.bf16.mxu0 0
        %2564 = vmatpush1.bf16.xpose.msra.mxu0 %v2559
        %2565 = vmatprep.subr.bf16.mxu0 0
        %2566 = vmatpush1.bf16.xpose.msra.mxu0 0
        %2567 = vmatprep.subr.bf16.mxu0 0
        %2568 = vmatpush1.bf16.xpose.msra.mxu0 0
        %2569 = vmatprep.subr.bf16.mxu0 0
        %2570 = vmatpush1.bf16.xpose.msra.mxu0 0
        %2571 = vmatprep.subr.bf16.mxu0 0
        %2572 = vmatpush1.bf16.xpose.msra.mxu0 0
        %2573 = vmatprep.subr.bf16.mxu0 0
        %2574 = vmatpush1.bf16.xpose.msra.mxu0 0
        %2575 = vmatprep.subr.bf16.mxu0 0
        %2576 = vmatpush1.bf16.xpose.msra.mxu0 0
        %2577 = vmatprep.subr.bf16.mxu0 0
        %2578 = vmatpush1.bf16.xpose.msra.mxu0 0
        %2579 = vmatprep.subr.bf16.mxu0 0
        %2580 = vmatpush1.bf16.xpose.msra.mxu0 0
        %2581 = vmatprep.subr.bf16.mxu0 0
        %2582 = vmatpush1.bf16.xpose.msra.mxu0 0
        %2583 = vmatprep.subr.bf16.mxu0 0
        %2584 = vmatpush1.bf16.xpose.msra.mxu0 0
        %2585 = vmatprep.subr.bf16.mxu0 0
        %2586 = vmatpush1.bf16.xpose.msra.mxu0 0
        %2587 = vmatprep.subr.bf16.mxu0 0
        %2588 = vmatpush1.bf16.xpose.msra.mxu0 0
        %2589 = vmatprep.subr.bf16.mxu0 0
        %2590 = vmatpush1.bf16.xpose.msra.mxu0 0
        %2591 = vmatprep.subr.bf16.mxu0 0
        %2592 = vmatpush1.bf16.xpose.msra.mxu0 0
        %2593 = vmatprep.mubr.bf16.mxu0 0
        %2594 = vmatmul.mubr.bf16.gmra.mrb[0].mxu0 %v2550
        %v2595 = vpop.f32.mrb[0].mxu0
        %v2596 = vadd.f32 0.0, %v2595
        %v2597 = vpop.f32.mrb[0].mxu0
        %v2598 = vpop.f32.mrb[0].mxu0
        %v2599 = vadd.f32 0.0, %v2598
        %v2600 = vpop.f32.mrb[0].mxu0
        %2601 = vmatprep.mubr.bf16.mxu0 0
        %2602 = vmatmul.mubr.bf16.gmra.mrb[0].mxu0 %v2553
        %v2603 = vpop.f32.mrb[0].mxu0
        %v2604 = vadd.f32 0.0, %v2603
        %v2605 = vpop.f32.mrb[0].mxu0
        %v2606 = vpop.f32.mrb[0].mxu0
        %v2607 = vadd.f32 0.0, %v2606
        %v2608 = vpop.f32.mrb[0].mxu0
        %2609 = vdwg.mxu0
        %v2610 = vmul.f32 %v2527, 0.088388346
        %v2611 = vmul.f32 %v2530, 0.088388346
        %v2612 = vmul.f32 %v2535, 0.088388346
        %v2613 = vmul.f32 %v2538, 0.088388346
        %v2614 = vmul.f32 %v2596, 0.088388346
        %v2615 = vmul.f32 %v2599, 0.088388346
        %v2616 = vmul.f32 %v2604, 0.088388346
        %v2617 = vmul.f32 %v2607, 0.088388346
        %v2618 = vadd.f32 %v2610, %v946
        %v2619 = vadd.f32 %v2611, %v947
        %v2620 = vadd.f32 %v2612, %v948
        %v2621 = vadd.f32 %v2613, %v949
        %v2622 = vadd.f32 %v2614, %v946
        %v2623 = vadd.f32 %v2615, %v947
        %v2624 = vadd.f32 %v2616, %v948
        %v2625 = vadd.f32 %v2617, %v949
        %v2626 = vsel %vm1383, %v2618, -inf
        %2627 = vmax.xlane.f32.xlu0 %v2626
        %v2628 = vpop.xlane.xlu0 %2627
        %v2629 = vsel %vm1383, %v2619, -inf
        %2630 = vmax.xlane.f32.xlu0 %v2629
        %v2631 = vpop.xlane.xlu0 %2630
        %v2632 = vsel %vm1383, %v2620, -inf
        %2633 = vmax.xlane.f32.xlu0 %v2632
        %v2634 = vpop.xlane.xlu0 %2633
        %v2635 = vsel %vm1383, %v2621, -inf
        %2636 = vmax.xlane.f32.xlu0 %v2635
        %v2637 = vpop.xlane.xlu0 %2636
        %v2638 = vsel %vm1383, %v2622, -inf
        %2639 = vmax.xlane.f32.xlu0 %v2638
        %v2640 = vpop.xlane.xlu0 %2639
        %v2641 = vsel %vm1383, %v2623, -inf
        %2642 = vmax.xlane.f32.xlu0 %v2641
        %v2643 = vpop.xlane.xlu0 %2642
        %v2644 = vsel %vm1383, %v2624, -inf
        %2645 = vmax.xlane.f32.xlu0 %v2644
        %v2646 = vpop.xlane.xlu0 %2645
        %v2647 = vsel %vm1383, %v2625, -inf
        %2648 = vmax.xlane.f32.xlu0 %v2647
        %v2649 = vpop.xlane.xlu0 %2648
        %v2650 = vsub.f32 %v2618, %v2628
        %v2651 = vsub.f32 %v2619, %v2631
        %v2652 = vsub.f32 %v2620, %v2634
        %v2653 = vsub.f32 %v2621, %v2637
        %v2654 = vsub.f32 %v2622, %v2640
        %v2655 = vsub.f32 %v2623, %v2643
        %v2656 = vsub.f32 %v2624, %v2646
        %v2657 = vsub.f32 %v2625, %v2649
        %v2658 = vmul.f32 %v2650, 1.442695
        %v2659 = vpow.pop %v2658
        %v2660 = vmul.f32 %v2651, 1.442695
        %v2661 = vpow.pop %v2660
        %v2662 = vmul.f32 %v2652, 1.442695
        %v2663 = vpow.pop %v2662
        %v2664 = vmul.f32 %v2653, 1.442695
        %v2665 = vpow.pop %v2664
        %v2666 = vmul.f32 %v2654, 1.442695
        %v2667 = vpow.pop %v2666
        %v2668 = vmul.f32 %v2655, 1.442695
        %v2669 = vpow.pop %v2668
        %v2670 = vmul.f32 %v2656, 1.442695
        %v2671 = vpow.pop %v2670
        %v2672 = vmul.f32 %v2657, 1.442695
        %v2673 = vpow.pop %v2672
        %v2674 = vsel %vm1383, %v2659, 0.0
        %2675 = vadd.xlane.f32.xlu0 %v2674
        %v2676 = vpop.xlane.xlu0 %2675
        %v2677 = vsel %vm1383, %v2661, 0.0
        %2678 = vadd.xlane.f32.xlu0 %v2677
        %v2679 = vpop.xlane.xlu0 %2678
        %v2680 = vsel %vm1383, %v2663, 0.0
        %2681 = vadd.xlane.f32.xlu0 %v2680
        %v2682 = vpop.xlane.xlu0 %2681
        %v2683 = vsel %vm1383, %v2665, 0.0
        %2684 = vadd.xlane.f32.xlu0 %v2683
        %v2685 = vpop.xlane.xlu0 %2684
        %v2686 = vsel %vm1383, %v2667, 0.0
        %2687 = vadd.xlane.f32.xlu0 %v2686
        %v2688 = vpop.xlane.xlu0 %2687
        %v2689 = vsel %vm1383, %v2669, 0.0
        %2690 = vadd.xlane.f32.xlu0 %v2689
        %v2691 = vpop.xlane.xlu0 %2690
        %v2692 = vsel %vm1383, %v2671, 0.0
        %2693 = vadd.xlane.f32.xlu0 %v2692
        %v2694 = vpop.xlane.xlu0 %2693
        %v2695 = vsel %vm1383, %v2673, 0.0
        %2696 = vadd.xlane.f32.xlu0 %v2695
        %v2697 = vpop.xlane.xlu0 %2696
        %v2698 = vrcp.pop %v2676
        %v2699 = vrcp.pop %v2679
        %v2700 = vrcp.pop %v2682
        %v2701 = vrcp.pop %v2685
        %v2702 = vrcp.pop %v2688
        %v2703 = vrcp.pop %v2691
        %v2704 = vrcp.pop %v2694
        %v2705 = vrcp.pop %v2697
        %v2706 = vmul.f32 %v2659, %v2698
        %v2707 = vmul.f32 %v2661, %v2699
        %v2708 = vmul.f32 %v2663, %v2700
        %v2709 = vmul.f32 %v2665, %v2701
        %v2710 = vmul.f32 %v2667, %v2702
        %v2711 = vmul.f32 %v2669, %v2703
        %v2712 = vmul.f32 %v2671, %v2704
        %v2713 = vmul.f32 %v2673, %v2705
        %v2714 = vpack.c.bf16 %v2707, %v2706
        %v2715 = vpack.c.bf16 %v2709, %v2708
        %v2716 = vpack.c.bf16 %v2711, %v2710
        %v2717 = vpack.c.bf16 %v2713, %v2712
        %2718 = vrot.lane.b32.xlu0 %v1379, 32
        %v2719 = vpop.permute.xlu0 %2718
        %2720 = vrot.lane.b32.xlu0 %v1380, 32
        %v2721 = vpop.permute.xlu0 %2720
        %v2725 = vsel %vm1383, %v2714, 0
        %v2728 = vsel %vm1383, %v2715, 0
        %2730 = vmatprep.subr.bf16.mxu0 0
        %2731 = vmatpush1.bf16.msra.mxu0 %v2719
        %2732 = vmatprep.subr.bf16.mxu0 0
        %2733 = vmatpush1.bf16.msra.mxu0 %v2721
        %2734 = vmatprep.subr.bf16.mxu0 0
        %2735 = vmatpush1.bf16.msra.mxu0 0
        %2736 = vmatprep.subr.bf16.mxu0 0
        %2737 = vmatpush1.bf16.msra.mxu0 0
        %2738 = vmatprep.subr.bf16.mxu0 0
        %2739 = vmatpush1.bf16.msra.mxu0 0
        %2740 = vmatprep.subr.bf16.mxu0 0
        %2741 = vmatpush1.bf16.msra.mxu0 0
        %2742 = vmatprep.subr.bf16.mxu0 0
        %2743 = vmatpush1.bf16.msra.mxu0 0
        %2744 = vmatprep.subr.bf16.mxu0 0
        %2745 = vmatpush1.bf16.msra.mxu0 0
        %2746 = vmatprep.subr.bf16.mxu0 0
        %2747 = vmatpush1.bf16.msra.mxu0 0
        %2748 = vmatprep.subr.bf16.mxu0 0
        %2749 = vmatpush1.bf16.msra.mxu0 0
        %2750 = vmatprep.subr.bf16.mxu0 0
        %2751 = vmatpush1.bf16.msra.mxu0 0
        %2752 = vmatprep.subr.bf16.mxu0 0
        %2753 = vmatpush1.bf16.msra.mxu0 0
        %2754 = vmatprep.subr.bf16.mxu0 0
        %2755 = vmatpush1.bf16.msra.mxu0 0
        %2756 = vmatprep.subr.bf16.mxu0 0
        %2757 = vmatpush1.bf16.msra.mxu0 0
        %2758 = vmatprep.subr.bf16.mxu0 0
        %2759 = vmatpush1.bf16.msra.mxu0 0
        %2760 = vmatprep.subr.bf16.mxu0 0
        %2761 = vmatpush1.bf16.msra.mxu0 0
        %2762 = vmatprep.mubr.bf16.mxu0 0
        %2763 = vmatmul.mubr.bf16.gmra.mrb[0].mxu0 %v2725
        %v2764 = vpop.f32.mrb[0].mxu0
        %v2765 = vadd.f32 0.0, %v2764
        %v2766 = vpop.f32.mrb[0].mxu0
        %v2767 = vpop.f32.mrb[0].mxu0
        %v2768 = vadd.f32 0.0, %v2767
        %v2769 = vpop.f32.mrb[0].mxu0
        %2770 = vmatprep.mubr.bf16.mxu0 0
        %2771 = vmatmul.mubr.bf16.gmra.mrb[0].mxu0 %v2728
        %v2772 = vpop.f32.mrb[0].mxu0
        %v2773 = vadd.f32 0.0, %v2772
        %v2774 = vpop.f32.mrb[0].mxu0
        %v2775 = vpop.f32.mrb[0].mxu0
        %v2776 = vadd.f32 0.0, %v2775
        %v2777 = vpop.f32.mrb[0].mxu0
        %2778 = vdwg.mxu0
        %2779 = vrot.lane.b32.xlu0 %v1381, 32
        %v2780 = vpop.permute.xlu0 %2779
        %2781 = vrot.lane.b32.xlu0 %v1382, 32
        %v2782 = vpop.permute.xlu0 %2781
        %v2786 = vsel %vm1383, %v2716, 0
        %v2789 = vsel %vm1383, %v2717, 0
        %2791 = vmatprep.subr.bf16.mxu0 0
        %2792 = vmatpush1.bf16.msra.mxu0 %v2780
        %2793 = vmatprep.subr.bf16.mxu0 0
        %2794 = vmatpush1.bf16.msra.mxu0 %v2782
        %2795 = vmatprep.subr.bf16.mxu0 0
        %2796 = vmatpush1.bf16.msra.mxu0 0
        %2797 = vmatprep.subr.bf16.mxu0 0
        %2798 = vmatpush1.bf16.msra.mxu0 0
        %2799 = vmatprep.subr.bf16.mxu0 0
        %2800 = vmatpush1.bf16.msra.mxu0 0
        %2801 = vmatprep.subr.bf16.mxu0 0
        %2802 = vmatpush1.bf16.msra.mxu0 0
        %2803 = vmatprep.subr.bf16.mxu0 0
        %2804 = vmatpush1.bf16.msra.mxu0 0
        %2805 = vmatprep.subr.bf16.mxu0 0
        %2806 = vmatpush1.bf16.msra.mxu0 0
        %2807 = vmatprep.subr.bf16.mxu0 0
        %2808 = vmatpush1.bf16.msra.mxu0 0
        %2809 = vmatprep.subr.bf16.mxu0 0
        %2810 = vmatpush1.bf16.msra.mxu0 0
        %2811 = vmatprep.subr.bf16.mxu0 0
        %2812 = vmatpush1.bf16.msra.mxu0 0
        %2813 = vmatprep.subr.bf16.mxu0 0
        %2814 = vmatpush1.bf16.msra.mxu0 0
        %2815 = vmatprep.subr.bf16.mxu0 0
        %2816 = vmatpush1.bf16.msra.mxu0 0
        %2817 = vmatprep.subr.bf16.mxu0 0
        %2818 = vmatpush1.bf16.msra.mxu0 0
        %2819 = vmatprep.subr.bf16.mxu0 0
        %2820 = vmatpush1.bf16.msra.mxu0 0
        %2821 = vmatprep.subr.bf16.mxu0 0
        %2822 = vmatpush1.bf16.msra.mxu0 0
        %2823 = vmatprep.mubr.bf16.mxu0 0
        %2824 = vmatmul.mubr.bf16.gmra.mrb[0].mxu0 %v2786
        %v2825 = vpop.f32.mrb[0].mxu0
        %v2826 = vadd.f32 0.0, %v2825
        %v2827 = vpop.f32.mrb[0].mxu0
        %v2828 = vpop.f32.mrb[0].mxu0
        %v2829 = vadd.f32 0.0, %v2828
        %v2830 = vpop.f32.mrb[0].mxu0
        %2831 = vmatprep.mubr.bf16.mxu0 0
        %2832 = vmatmul.mubr.bf16.gmra.mrb[0].mxu0 %v2789
        %v2833 = vpop.f32.mrb[0].mxu0
        %v2834 = vadd.f32 0.0, %v2833
        %v2835 = vpop.f32.mrb[0].mxu0
        %v2836 = vpop.f32.mrb[0].mxu0
        %v2837 = vadd.f32 0.0, %v2836
        %v2838 = vpop.f32.mrb[0].mxu0
        %2839 = vdwg.mxu0
        %2848 = vrot.lane.b32.xlu0 %v2027, 32
        %v2849 = vpop.permute.xlu0 %2848
        %2850 = vrot.lane.b32.xlu0 %v2030, 32
        %v2851 = vpop.permute.xlu0 %2850
        %2852 = vrot.lane.b32.xlu0 %v2035, 32
        %v2853 = vpop.permute.xlu0 %2852
        %2854 = vrot.lane.b32.xlu0 %v2038, 32
        %v2855 = vpop.permute.xlu0 %2854
        %2856 = vrot.lane.b32.xlu0 %v2090, 32
        %v2857 = vpop.permute.xlu0 %2856
        %2858 = vrot.lane.b32.xlu0 %v2093, 32
        %v2859 = vpop.permute.xlu0 %2858
        %2860 = vrot.lane.b32.xlu0 %v2098, 32
        %v2861 = vpop.permute.xlu0 %2860
        %2862 = vrot.lane.b32.xlu0 %v2101, 32
        %v2863 = vpop.permute.xlu0 %2862
        %2880 = vrot.lane.b32.xlu0 %v2397, 64
        %v2881 = vpop.permute.xlu0 %2880
        %2882 = vrot.lane.b32.xlu0 %v2400, 64
        %v2883 = vpop.permute.xlu0 %2882
        %2884 = vrot.lane.b32.xlu0 %v2405, 64
        %v2885 = vpop.permute.xlu0 %2884
        %2886 = vrot.lane.b32.xlu0 %v2408, 64
        %v2887 = vpop.permute.xlu0 %2886
        %2888 = vrot.lane.b32.xlu0 %v2458, 64
        %v2889 = vpop.permute.xlu0 %2888
        %2890 = vrot.lane.b32.xlu0 %v2461, 64
        %v2891 = vpop.permute.xlu0 %2890
        %2892 = vrot.lane.b32.xlu0 %v2466, 64
        %v2893 = vpop.permute.xlu0 %2892
        %2894 = vrot.lane.b32.xlu0 %v2469, 64
        %v2895 = vpop.permute.xlu0 %2894
        %2912 = vrot.lane.b32.xlu0 %v2765, 96
        %v2913 = vpop.permute.xlu0 %2912
        %2914 = vrot.lane.b32.xlu0 %v2768, 96
        %v2915 = vpop.permute.xlu0 %2914
        %2916 = vrot.lane.b32.xlu0 %v2773, 96
        %v2917 = vpop.permute.xlu0 %2916
        %2918 = vrot.lane.b32.xlu0 %v2776, 96
        %v2919 = vpop.permute.xlu0 %2918
        %2920 = vrot.lane.b32.xlu0 %v2826, 96
        %v2921 = vpop.permute.xlu0 %2920
        %2922 = vrot.lane.b32.xlu0 %v2829, 96
        %v2923 = vpop.permute.xlu0 %2922
        %2924 = vrot.lane.b32.xlu0 %v2834, 96
        %v2925 = vpop.permute.xlu0 %2924
        %2926 = vrot.lane.b32.xlu0 %v2837, 96
        %v2927 = vpop.permute.xlu0 %2926
        %v2936 = vsel %vm1383, %v1655, %v2849
        %v2937 = vsel %vm1383, %v1658, %v2851
        %v2938 = vsel %vm1383, %v1663, %v2853
        %v2939 = vsel %vm1383, %v1666, %v2855
        %v2940 = vsel %vm1383, %v1710, %v2857
        %v2941 = vsel %vm1383, %v1713, %v2859
        %v2942 = vsel %vm1383, %v1718, %v2861
        %v2943 = vsel %vm1383, %v1721, %v2863
        %vm2944 = vcmask 523264
        %v2945 = vsel %vm2944, %v2936, %v2881
        %v2946 = vsel %vm2944, %v2937, %v2883
        %v2947 = vsel %vm2944, %v2938, %v2885
        %v2948 = vsel %vm2944, %v2939, %v2887
        %v2949 = vsel %vm2944, %v2940, %v2889
        %v2950 = vsel %vm2944, %v2941, %v2891
        %v2951 = vsel %vm2944, %v2942, %v2893
        %v2952 = vsel %vm2944, %v2943, %v2895
        %vm2953 = vcmask 785408
        %v2954 = vsel %vm2953, %v2945, %v2913
        %v2955 = vsel %vm2953, %v2946, %v2915
        %v2956 = vsel %vm2953, %v2947, %v2917
        %v2957 = vsel %vm2953, %v2948, %v2919
        %v2958 = vsel %vm2953, %v2949, %v2921
        %v2959 = vsel %vm2953, %v2950, %v2923
        %v2960 = vsel %vm2953, %v2951, %v2925
        %v2961 = vsel %vm2953, %v2952, %v2927
        %v2962 = vpack.c.bf16 %v2955, %v2954
        %v2963 = vpack.c.bf16 %v2957, %v2956
        %v2964 = vpack.c.bf16 %v2959, %v2958
        %v2965 = vpack.c.bf16 %v2961, %v2960
        %v2966 = vld [vmem:[%s696] sm:$0xf]
        %v2967 = vld [vmem:[%s696 + $0x4] sm:$0xf]
        %v2968 = vld [vmem:[%s696 + $0x8] sm:$0xf]
        %v2969 = vld [vmem:[%s696 + $0xc] sm:$0xf]
        %v2970 = vld [vmem:[%s696 + $0x10] sm:$0xf]
        %v2971 = vld [vmem:[%s696 + $0x14] sm:$0xf]
        %v2972 = vld [vmem:[%s696 + $0x18] sm:$0xf]
        %v2973 = vld [vmem:[%s696 + $0x1c] sm:$0xf]
        %v2974 = vld [vmem:[%s696 + $0x20] sm:$0xf]
        %v2975 = vld [vmem:[%s696 + $0x24] sm:$0xf]
        %v2976 = vld [vmem:[%s696 + $0x28] sm:$0xf]
        %v2977 = vld [vmem:[%s696 + $0x2c] sm:$0xf]
        %v2978 = vld [vmem:[%s696 + $0x30] sm:$0xf]
        %v2979 = vld [vmem:[%s696 + $0x34] sm:$0xf]
        %v2980 = vld [vmem:[%s696 + $0x38] sm:$0xf]
        %v2981 = vld [vmem:[%s696 + $0x3c] sm:$0xf]
        %v2982 = vld [vmem:[%s699] sm:$0x1]
        %v2984 = vlaneseq
        %v2985 = vshrl.u32 %v2984, 7
        %v2986 = vsub.s32 0, %v2985
        %v2987 = vrot.slane %v2982, %v2986
        %v3005 = vunpack.c.l.b16 %v2966
        %v3006 = vunpack.c.l.b16 %v2967
        %v3007 = vunpack.c.l.b16 %v2968
        %v3008 = vunpack.c.l.b16 %v2969
        %v3009 = vunpack.c.l.b16 %v2970
        %v3010 = vunpack.c.l.b16 %v2971
        %v3011 = vunpack.c.l.b16 %v2972
        %v3012 = vunpack.c.l.b16 %v2973
        %v3013 = vunpack.c.l.b16 %v2974
        %v3014 = vunpack.c.l.b16 %v2975
        %v3015 = vunpack.c.l.b16 %v2976
        %v3016 = vunpack.c.l.b16 %v2977
        %v3017 = vunpack.c.l.b16 %v2978
        %v3018 = vunpack.c.l.b16 %v2979
        %v3019 = vunpack.c.l.b16 %v2980
        %v3020 = vunpack.c.l.b16 %v2981
        %v3021 = vpack.c.b16 %v3006, %v3005
        %v3022 = vpack.c.b16 %v3008, %v3007
        %v3023 = vpack.c.b16 %v3010, %v3009
        %v3024 = vpack.c.b16 %v3012, %v3011
        %v3025 = vpack.c.b16 %v3014, %v3013
        %v3026 = vpack.c.b16 %v3016, %v3015
        %v3027 = vpack.c.b16 %v3018, %v3017
        %v3028 = vpack.c.b16 %v3020, %v3019
        %3037 = vmatprep.subr.bf16.mxu0 0
        %3038 = vmatpush1.bf16.msra.mxu0 %v3021
        %3039 = vmatprep.subr.bf16.mxu0 0
        %3040 = vmatpush1.bf16.msra.mxu0 %v3022
        %3041 = vmatprep.subr.bf16.mxu0 0
        %3042 = vmatpush1.bf16.msra.mxu0 %v3023
        %3043 = vmatprep.subr.bf16.mxu0 0
        %3044 = vmatpush1.bf16.msra.mxu0 %v3024
        %3045 = vmatprep.subr.bf16.mxu0 0
        %3046 = vmatpush1.bf16.msra.mxu0 %v3025
        %3047 = vmatprep.subr.bf16.mxu0 0
        %3048 = vmatpush1.bf16.msra.mxu0 %v3026
        %3049 = vmatprep.subr.bf16.mxu0 0
        %3050 = vmatpush1.bf16.msra.mxu0 %v3027
        %3051 = vmatprep.subr.bf16.mxu0 0
        %3052 = vmatpush1.bf16.msra.mxu0 %v3028
        %3053 = vmatprep.subr.bf16.mxu0 0
        %3054 = vmatpush1.bf16.msra.mxu0 0
        %3055 = vmatprep.subr.bf16.mxu0 0
        %3056 = vmatpush1.bf16.msra.mxu0 0
        %3057 = vmatprep.subr.bf16.mxu0 0
        %3058 = vmatpush1.bf16.msra.mxu0 0
        %3059 = vmatprep.subr.bf16.mxu0 0
        %3060 = vmatpush1.bf16.msra.mxu0 0
        %3061 = vmatprep.subr.bf16.mxu0 0
        %3062 = vmatpush1.bf16.msra.mxu0 0
        %3063 = vmatprep.subr.bf16.mxu0 0
        %3064 = vmatpush1.bf16.msra.mxu0 0
        %3065 = vmatprep.subr.bf16.mxu0 0
        %3066 = vmatpush1.bf16.msra.mxu0 0
        %3067 = vmatprep.subr.bf16.mxu0 0
        %3068 = vmatpush1.bf16.msra.mxu0 0
        %3069 = vmatprep.mubr.bf16.mxu0 0
        %3070 = vmatmul.mubr.bf16.gmra.mrb[0].mxu0 %v2962
        %v3071 = vpop.f32.mrb[0].mxu0
        %v3072 = vadd.f32 %v2987, %v3071
        %v3073 = vpop.f32.mrb[0].mxu0
        %v3074 = vpop.f32.mrb[0].mxu0
        %v3075 = vadd.f32 %v2987, %v3074
        %v3076 = vpop.f32.mrb[0].mxu0
        %3077 = vmatprep.mubr.bf16.mxu0 0
        %3078 = vmatmul.mubr.bf16.gmra.mrb[0].mxu0 %v2963
        %v3079 = vpop.f32.mrb[0].mxu0
        %v3080 = vadd.f32 %v2987, %v3079
        %v3081 = vpop.f32.mrb[0].mxu0
        %v3082 = vpop.f32.mrb[0].mxu0
        %v3083 = vadd.f32 %v2987, %v3082
        %v3084 = vpop.f32.mrb[0].mxu0
        %3085 = vmatprep.mubr.bf16.mxu0 0
        %3086 = vmatmul.mubr.bf16.gmra.mrb[0].mxu0 %v2964
        %v3087 = vpop.f32.mrb[0].mxu0
        %v3088 = vadd.f32 %v2987, %v3087
        %v3089 = vpop.f32.mrb[0].mxu0
        %v3090 = vpop.f32.mrb[0].mxu0
        %v3091 = vadd.f32 %v2987, %v3090
        %v3092 = vpop.f32.mrb[0].mxu0
        %3093 = vmatprep.mubr.bf16.mxu0 0
        %3094 = vmatmul.mubr.bf16.gmra.mrb[0].mxu0 %v2965
        %v3095 = vpop.f32.mrb[0].mxu0
        %v3096 = vadd.f32 %v2987, %v3095
        %v3097 = vpop.f32.mrb[0].mxu0
        %v3098 = vpop.f32.mrb[0].mxu0
        %v3099 = vadd.f32 %v2987, %v3098
        %v3100 = vpop.f32.mrb[0].mxu0
        %3101 = vdwg.mxu0
        %v3102 = vadd.f32 %v927, %v3072
        %v3103 = vadd.f32 %v928, %v3075
        %v3104 = vadd.f32 %v929, %v3080
        %v3105 = vadd.f32 %v930, %v3083
        %v3106 = vadd.f32 %v931, %v3088
        %v3107 = vadd.f32 %v932, %v3091
        %v3108 = vadd.f32 %v933, %v3096
        %v3109 = vadd.f32 %v934, %v3099
        %v3110 = vld [vmem:[%s702] sm:$0x1]
        %v3111 = vld [vmem:[%s705] sm:$0x1]
        %3112 = vadd.xlane.f32.xlu0 %v3102
        %v3113 = vpop.xlane.xlu0 %3112
        %3114 = vadd.xlane.f32.xlu0 %v3103
        %v3115 = vpop.xlane.xlu0 %3114
        %3116 = vadd.xlane.f32.xlu0 %v3104
        %v3117 = vpop.xlane.xlu0 %3116
        %3118 = vadd.xlane.f32.xlu0 %v3105
        %v3119 = vpop.xlane.xlu0 %3118
        %3120 = vadd.xlane.f32.xlu0 %v3106
        %v3121 = vpop.xlane.xlu0 %3120
        %3122 = vadd.xlane.f32.xlu0 %v3107
        %v3123 = vpop.xlane.xlu0 %3122
        %3124 = vadd.xlane.f32.xlu0 %v3108
        %v3125 = vpop.xlane.xlu0 %3124
        %3126 = vadd.xlane.f32.xlu0 %v3109
        %v3127 = vpop.xlane.xlu0 %3126
        %v3128 = vmul.f32 %v3113, %v968
        %v3129 = vmul.f32 %v3115, %v968
        %v3130 = vmul.f32 %v3117, %v968
        %v3131 = vmul.f32 %v3119, %v968
        %v3132 = vmul.f32 %v3121, %v968
        %v3133 = vmul.f32 %v3123, %v968
        %v3134 = vmul.f32 %v3125, %v968
        %v3135 = vmul.f32 %v3127, %v968
        %v3136 = vsub.f32 %v3102, %v3128
        %v3137 = vsub.f32 %v3103, %v3129
        %v3138 = vsub.f32 %v3104, %v3130
        %v3139 = vsub.f32 %v3105, %v3131
        %v3140 = vsub.f32 %v3106, %v3132
        %v3141 = vsub.f32 %v3107, %v3133
        %v3142 = vsub.f32 %v3108, %v3134
        %v3143 = vsub.f32 %v3109, %v3135
        %v3144 = vmul.f32 %v3136, %v3136
        %v3145 = vmul.f32 %v3137, %v3137
        %v3146 = vmul.f32 %v3138, %v3138
        %v3147 = vmul.f32 %v3139, %v3139
        %v3148 = vmul.f32 %v3140, %v3140
        %v3149 = vmul.f32 %v3141, %v3141
        %v3150 = vmul.f32 %v3142, %v3142
        %v3151 = vmul.f32 %v3143, %v3143
        %3152 = vadd.xlane.f32.xlu0 %v3144
        %v3153 = vpop.xlane.xlu0 %3152
        %3154 = vadd.xlane.f32.xlu0 %v3145
        %v3155 = vpop.xlane.xlu0 %3154
        %3156 = vadd.xlane.f32.xlu0 %v3146
        %v3157 = vpop.xlane.xlu0 %3156
        %3158 = vadd.xlane.f32.xlu0 %v3147
        %v3159 = vpop.xlane.xlu0 %3158
        %3160 = vadd.xlane.f32.xlu0 %v3148
        %v3161 = vpop.xlane.xlu0 %3160
        %3162 = vadd.xlane.f32.xlu0 %v3149
        %v3163 = vpop.xlane.xlu0 %3162
        %3164 = vadd.xlane.f32.xlu0 %v3150
        %v3165 = vpop.xlane.xlu0 %3164
        %3166 = vadd.xlane.f32.xlu0 %v3151
        %v3167 = vpop.xlane.xlu0 %3166
        %v3168 = vmul.f32 %v3153, %v968
        %v3169 = vmul.f32 %v3155, %v968
        %v3170 = vmul.f32 %v3157, %v968
        %v3171 = vmul.f32 %v3159, %v968
        %v3172 = vmul.f32 %v3161, %v968
        %v3173 = vmul.f32 %v3163, %v968
        %v3174 = vmul.f32 %v3165, %v968
        %v3175 = vmul.f32 %v3167, %v968
        %v3176 = vadd.f32 %v3168, 1e-05
        %v3177 = vadd.f32 %v3169, 1e-05
        %v3178 = vadd.f32 %v3170, 1e-05
        %v3179 = vadd.f32 %v3171, 1e-05
        %v3180 = vadd.f32 %v3172, 1e-05
        %v3181 = vadd.f32 %v3173, 1e-05
        %v3182 = vadd.f32 %v3174, 1e-05
        %v3183 = vadd.f32 %v3175, 1e-05
        %v3184 = vrsqrt.pop %v3176
        %v3185 = vrsqrt.pop %v3177
        %v3186 = vrsqrt.pop %v3178
        %v3187 = vrsqrt.pop %v3179
        %v3188 = vrsqrt.pop %v3180
        %v3189 = vrsqrt.pop %v3181
        %v3190 = vrsqrt.pop %v3182
        %v3191 = vrsqrt.pop %v3183
        %v3192 = vmul.f32 %v3136, %v3184
        %v3193 = vmul.f32 %v3137, %v3185
        %v3194 = vmul.f32 %v3138, %v3186
        %v3195 = vmul.f32 %v3139, %v3187
        %v3196 = vmul.f32 %v3140, %v3188
        %v3197 = vmul.f32 %v3141, %v3189
        %v3198 = vmul.f32 %v3142, %v3190
        %v3199 = vmul.f32 %v3143, %v3191
        %v3201 = vlaneseq
        %v3202 = vshrl.u32 %v3201, 7
        %v3203 = vsub.s32 0, %v3202
        %v3204 = vrot.slane %v3110, %v3203
        %v3206 = vmul.f32 %v3192, %v3204
        %v3207 = vmul.f32 %v3193, %v3204
        %v3208 = vmul.f32 %v3194, %v3204
        %v3209 = vmul.f32 %v3195, %v3204
        %v3210 = vmul.f32 %v3196, %v3204
        %v3211 = vmul.f32 %v3197, %v3204
        %v3212 = vmul.f32 %v3198, %v3204
        %v3213 = vmul.f32 %v3199, %v3204
        %v3215 = vlaneseq
        %v3216 = vshrl.u32 %v3215, 7
        %v3217 = vsub.s32 0, %v3216
        %v3218 = vrot.slane %v3111, %v3217
        %v3220 = vadd.f32 %v3206, %v3218
        %v3221 = vadd.f32 %v3207, %v3218
        %v3222 = vadd.f32 %v3208, %v3218
        %v3223 = vadd.f32 %v3209, %v3218
        %v3224 = vadd.f32 %v3210, %v3218
        %v3225 = vadd.f32 %v3211, %v3218
        %v3226 = vadd.f32 %v3212, %v3218
        %v3227 = vadd.f32 %v3213, %v3218
        %v3228 = vpack.c.bf16 %v3221, %v3220
        %v3229 = vpack.c.bf16 %v3223, %v3222
        %v3230 = vpack.c.bf16 %v3225, %v3224
        %v3231 = vpack.c.bf16 %v3227, %v3226
        %v3232 = vld [vmem:[%s710] sm:$0xff]
        %v3233 = vld [vmem:[%s710 + $0x8] sm:$0xff]
        %v3234 = vld [vmem:[%s710 + $0x10] sm:$0xff]
        %v3235 = vld [vmem:[%s710 + $0x18] sm:$0xff]
        %v3236 = vld [vmem:[%s710 + $0x20] sm:$0xff]
        %v3237 = vld [vmem:[%s710 + $0x28] sm:$0xff]
        %v3238 = vld [vmem:[%s710 + $0x30] sm:$0xff]
        %v3239 = vld [vmem:[%s710 + $0x38] sm:$0xff]
        %v3240 = vld [vmem:[%s710 + $0x40] sm:$0xff]
        %v3241 = vld [vmem:[%s710 + $0x48] sm:$0xff]
        %v3242 = vld [vmem:[%s710 + $0x50] sm:$0xff]
        %v3243 = vld [vmem:[%s710 + $0x58] sm:$0xff]
        %v3244 = vld [vmem:[%s710 + $0x60] sm:$0xff]
        %v3245 = vld [vmem:[%s710 + $0x68] sm:$0xff]
        %v3246 = vld [vmem:[%s710 + $0x70] sm:$0xff]
        %v3247 = vld [vmem:[%s710 + $0x78] sm:$0xff]
        %v3248 = vld [vmem:[%s710 + $0x80] sm:$0xff]
        %v3249 = vld [vmem:[%s710 + $0x88] sm:$0xff]
        %v3250 = vld [vmem:[%s710 + $0x90] sm:$0xff]
        %v3251 = vld [vmem:[%s710 + $0x98] sm:$0xff]
        %v3252 = vld [vmem:[%s710 + $0xa0] sm:$0xff]
        %v3253 = vld [vmem:[%s710 + $0xa8] sm:$0xff]
        %v3254 = vld [vmem:[%s710 + $0xb0] sm:$0xff]
        %v3255 = vld [vmem:[%s710 + $0xb8] sm:$0xff]
        %v3256 = vld [vmem:[%s710 + $0xc0] sm:$0xff]
        %v3257 = vld [vmem:[%s710 + $0xc8] sm:$0xff]
        %v3258 = vld [vmem:[%s710 + $0xd0] sm:$0xff]
        %v3259 = vld [vmem:[%s710 + $0xd8] sm:$0xff]
        %v3260 = vld [vmem:[%s710 + $0xe0] sm:$0xff]
        %v3261 = vld [vmem:[%s710 + $0xe8] sm:$0xff]
        %v3262 = vld [vmem:[%s710 + $0xf0] sm:$0xff]
        %v3263 = vld [vmem:[%s710 + $0xf8] sm:$0xff]
        %v3264 = vld [vmem:[%s714] sm:$0xf]
        %v3266 = vlaneseq
        %v3267 = vshrl.u32 %v3266, 7
        %v3268 = vsub.s32 0, %v3267
        %v3269 = vrot.slane %v3264, %v3268
        %v3270 = vlaneseq
        %v3271 = vshrl.u32 %v3270, 7
        %v3272 = vsub.s32 1, %v3271
        %v3273 = vrot.slane %v3264, %v3272
        %v3274 = vlaneseq
        %v3275 = vshrl.u32 %v3274, 7
        %v3276 = vsub.s32 2, %v3275
        %v3277 = vrot.slane %v3264, %v3276
        %v3278 = vlaneseq
        %v3279 = vshrl.u32 %v3278, 7
        %v3280 = vsub.s32 3, %v3279
        %v3281 = vrot.slane %v3264, %v3280
        %v3318 = vunpack.c.l.b16 %v3232
        %v3319 = vunpack.c.h.b16 %v3232
        %v3320 = vunpack.c.l.b16 %v3233
        %v3321 = vunpack.c.h.b16 %v3233
        %v3322 = vunpack.c.l.b16 %v3234
        %v3323 = vunpack.c.h.b16 %v3234
        %v3324 = vunpack.c.l.b16 %v3235
        %v3325 = vunpack.c.h.b16 %v3235
        %v3326 = vunpack.c.l.b16 %v3236
        %v3327 = vunpack.c.h.b16 %v3236
        %v3328 = vunpack.c.l.b16 %v3237
        %v3329 = vunpack.c.h.b16 %v3237
        %v3330 = vunpack.c.l.b16 %v3238
        %v3331 = vunpack.c.h.b16 %v3238
        %v3332 = vunpack.c.l.b16 %v3239
        %v3333 = vunpack.c.h.b16 %v3239
        %v3334 = vunpack.c.l.b16 %v3240
        %v3335 = vunpack.c.h.b16 %v3240
        %v3336 = vunpack.c.l.b16 %v3241
        %v3337 = vunpack.c.h.b16 %v3241
        %v3338 = vunpack.c.l.b16 %v3242
        %v3339 = vunpack.c.h.b16 %v3242
        %v3340 = vunpack.c.l.b16 %v3243
        %v3341 = vunpack.c.h.b16 %v3243
        %v3342 = vunpack.c.l.b16 %v3244
        %v3343 = vunpack.c.h.b16 %v3244
        %v3344 = vunpack.c.l.b16 %v3245
        %v3345 = vunpack.c.h.b16 %v3245
        %v3346 = vunpack.c.l.b16 %v3246
        %v3347 = vunpack.c.h.b16 %v3246
        %v3348 = vunpack.c.l.b16 %v3247
        %v3349 = vunpack.c.h.b16 %v3247
        %v3350 = vunpack.c.l.b16 %v3248
        %v3351 = vunpack.c.h.b16 %v3248
        %v3352 = vunpack.c.l.b16 %v3249
        %v3353 = vunpack.c.h.b16 %v3249
        %v3354 = vunpack.c.l.b16 %v3250
        %v3355 = vunpack.c.h.b16 %v3250
        %v3356 = vunpack.c.l.b16 %v3251
        %v3357 = vunpack.c.h.b16 %v3251
        %v3358 = vunpack.c.l.b16 %v3252
        %v3359 = vunpack.c.h.b16 %v3252
        %v3360 = vunpack.c.l.b16 %v3253
        %v3361 = vunpack.c.h.b16 %v3253
        %v3362 = vunpack.c.l.b16 %v3254
        %v3363 = vunpack.c.h.b16 %v3254
        %v3364 = vunpack.c.l.b16 %v3255
        %v3365 = vunpack.c.h.b16 %v3255
        %v3366 = vunpack.c.l.b16 %v3256
        %v3367 = vunpack.c.h.b16 %v3256
        %v3368 = vunpack.c.l.b16 %v3257
        %v3369 = vunpack.c.h.b16 %v3257
        %v3370 = vunpack.c.l.b16 %v3258
        %v3371 = vunpack.c.h.b16 %v3258
        %v3372 = vunpack.c.l.b16 %v3259
        %v3373 = vunpack.c.h.b16 %v3259
        %v3374 = vunpack.c.l.b16 %v3260
        %v3375 = vunpack.c.h.b16 %v3260
        %v3376 = vunpack.c.l.b16 %v3261
        %v3377 = vunpack.c.h.b16 %v3261
        %v3378 = vunpack.c.l.b16 %v3262
        %v3379 = vunpack.c.h.b16 %v3262
        %v3380 = vunpack.c.l.b16 %v3263
        %v3381 = vunpack.c.h.b16 %v3263
        %v3382 = vpack.c.b16 %v3322, %v3318
        %v3383 = vpack.c.b16 %v3323, %v3319
        %v3384 = vpack.c.b16 %v3324, %v3320
        %v3385 = vpack.c.b16 %v3325, %v3321
        %v3386 = vpack.c.b16 %v3330, %v3326
        %v3387 = vpack.c.b16 %v3331, %v3327
        %v3388 = vpack.c.b16 %v3332, %v3328
        %v3389 = vpack.c.b16 %v3333, %v3329
        %v3390 = vpack.c.b16 %v3338, %v3334
        %v3391 = vpack.c.b16 %v3339, %v3335
        %v3392 = vpack.c.b16 %v3340, %v3336
        %v3393 = vpack.c.b16 %v3341, %v3337
        %v3394 = vpack.c.b16 %v3346, %v3342
        %v3395 = vpack.c.b16 %v3347, %v3343
        %v3396 = vpack.c.b16 %v3348, %v3344
        %v3397 = vpack.c.b16 %v3349, %v3345
        %v3398 = vpack.c.b16 %v3354, %v3350
        %v3399 = vpack.c.b16 %v3355, %v3351
        %v3400 = vpack.c.b16 %v3356, %v3352
        %v3401 = vpack.c.b16 %v3357, %v3353
        %v3402 = vpack.c.b16 %v3362, %v3358
        %v3403 = vpack.c.b16 %v3363, %v3359
        %v3404 = vpack.c.b16 %v3364, %v3360
        %v3405 = vpack.c.b16 %v3365, %v3361
        %v3406 = vpack.c.b16 %v3370, %v3366
        %v3407 = vpack.c.b16 %v3371, %v3367
        %v3408 = vpack.c.b16 %v3372, %v3368
        %v3409 = vpack.c.b16 %v3373, %v3369
        %v3410 = vpack.c.b16 %v3378, %v3374
        %v3411 = vpack.c.b16 %v3379, %v3375
        %v3412 = vpack.c.b16 %v3380, %v3376
        %v3413 = vpack.c.b16 %v3381, %v3377
        %3446 = vmatprep.subr.bf16.mxu0 %v3383
        %3447 = vmatpush1.bf16.msra.mxu0 %v3382
        %3448 = vmatprep.subr.bf16.mxu0 %v3387
        %3449 = vmatpush1.bf16.msra.mxu0 %v3386
        %3450 = vmatprep.subr.bf16.mxu0 %v3391
        %3451 = vmatpush1.bf16.msra.mxu0 %v3390
        %3452 = vmatprep.subr.bf16.mxu0 %v3395
        %3453 = vmatpush1.bf16.msra.mxu0 %v3394
        %3454 = vmatprep.subr.bf16.mxu0 %v3399
        %3455 = vmatpush1.bf16.msra.mxu0 %v3398
        %3456 = vmatprep.subr.bf16.mxu0 %v3403
        %3457 = vmatpush1.bf16.msra.mxu0 %v3402
        %3458 = vmatprep.subr.bf16.mxu0 %v3407
        %3459 = vmatpush1.bf16.msra.mxu0 %v3406
        %3460 = vmatprep.subr.bf16.mxu0 %v3411
        %3461 = vmatpush1.bf16.msra.mxu0 %v3410
        %3462 = vmatprep.subr.bf16.mxu0 0
        %3463 = vmatpush1.bf16.msra.mxu0 0
        %3464 = vmatprep.subr.bf16.mxu0 0
        %3465 = vmatpush1.bf16.msra.mxu0 0
        %3466 = vmatprep.subr.bf16.mxu0 0
        %3467 = vmatpush1.bf16.msra.mxu0 0
        %3468 = vmatprep.subr.bf16.mxu0 0
        %3469 = vmatpush1.bf16.msra.mxu0 0
        %3470 = vmatprep.subr.bf16.mxu0 0
        %3471 = vmatpush1.bf16.msra.mxu0 0
        %3472 = vmatprep.subr.bf16.mxu0 0
        %3473 = vmatpush1.bf16.msra.mxu0 0
        %3474 = vmatprep.subr.bf16.mxu0 0
        %3475 = vmatpush1.bf16.msra.mxu0 0
        %3476 = vmatprep.subr.bf16.mxu0 0
        %3477 = vmatpush1.bf16.msra.mxu0 0
        %3478 = vmatprep.mubr.bf16.mxu0 0
        %3479 = vmatmul.mubr.bf16.gmra.mrb[0].mxu0 %v3228
        %v3480 = vpop.f32.mrb[0].mxu0
        %v3481 = vadd.f32 %v3269, %v3480
        %v3482 = vpop.f32.mrb[0].mxu0
        %v3483 = vadd.f32 %v3273, %v3482
        %v3484 = vpop.f32.mrb[0].mxu0
        %v3485 = vadd.f32 %v3269, %v3484
        %v3486 = vpop.f32.mrb[0].mxu0
        %v3487 = vadd.f32 %v3273, %v3486
        %3488 = vmatprep.mubr.bf16.mxu0 0
        %3489 = vmatmul.mubr.bf16.gmra.mrb[0].mxu0 %v3229
        %v3490 = vpop.f32.mrb[0].mxu0
        %v3491 = vadd.f32 %v3269, %v3490
        %v3492 = vpop.f32.mrb[0].mxu0
        %v3493 = vadd.f32 %v3273, %v3492
        %v3494 = vpop.f32.mrb[0].mxu0
        %v3495 = vadd.f32 %v3269, %v3494
        %v3496 = vpop.f32.mrb[0].mxu0
        %v3497 = vadd.f32 %v3273, %v3496
        %3498 = vmatprep.mubr.bf16.mxu0 0
        %3499 = vmatmul.mubr.bf16.gmra.mrb[0].mxu0 %v3230
        %v3500 = vpop.f32.mrb[0].mxu0
        %v3501 = vadd.f32 %v3269, %v3500
        %v3502 = vpop.f32.mrb[0].mxu0
        %v3503 = vadd.f32 %v3273, %v3502
        %v3504 = vpop.f32.mrb[0].mxu0
        %v3505 = vadd.f32 %v3269, %v3504
        %v3506 = vpop.f32.mrb[0].mxu0
        %v3507 = vadd.f32 %v3273, %v3506
        %3508 = vmatprep.mubr.bf16.mxu0 0
        %3509 = vmatmul.mubr.bf16.gmra.mrb[0].mxu0 %v3231
        %v3510 = vpop.f32.mrb[0].mxu0
        %v3511 = vadd.f32 %v3269, %v3510
        %v3512 = vpop.f32.mrb[0].mxu0
        %v3513 = vadd.f32 %v3273, %v3512
        %v3514 = vpop.f32.mrb[0].mxu0
        %v3515 = vadd.f32 %v3269, %v3514
        %v3516 = vpop.f32.mrb[0].mxu0
        %v3517 = vadd.f32 %v3273, %v3516
        %3518 = vdwg.mxu0
        %3519 = vmatprep.subr.bf16.mxu0 %v3385
        %3520 = vmatpush1.bf16.msra.mxu0 %v3384
        %3521 = vmatprep.subr.bf16.mxu0 %v3389
        %3522 = vmatpush1.bf16.msra.mxu0 %v3388
        %3523 = vmatprep.subr.bf16.mxu0 %v3393
        %3524 = vmatpush1.bf16.msra.mxu0 %v3392
        %3525 = vmatprep.subr.bf16.mxu0 %v3397
        %3526 = vmatpush1.bf16.msra.mxu0 %v3396
        %3527 = vmatprep.subr.bf16.mxu0 %v3401
        %3528 = vmatpush1.bf16.msra.mxu0 %v3400
        %3529 = vmatprep.subr.bf16.mxu0 %v3405
        %3530 = vmatpush1.bf16.msra.mxu0 %v3404
        %3531 = vmatprep.subr.bf16.mxu0 %v3409
        %3532 = vmatpush1.bf16.msra.mxu0 %v3408
        %3533 = vmatprep.subr.bf16.mxu0 %v3413
        %3534 = vmatpush1.bf16.msra.mxu0 %v3412
        %3535 = vmatprep.subr.bf16.mxu0 0
        %3536 = vmatpush1.bf16.msra.mxu0 0
        %3537 = vmatprep.subr.bf16.mxu0 0
        %3538 = vmatpush1.bf16.msra.mxu0 0
        %3539 = vmatprep.subr.bf16.mxu0 0
        %3540 = vmatpush1.bf16.msra.mxu0 0
        %3541 = vmatprep.subr.bf16.mxu0 0
        %3542 = vmatpush1.bf16.msra.mxu0 0
        %3543 = vmatprep.subr.bf16.mxu0 0
        %3544 = vmatpush1.bf16.msra.mxu0 0
        %3545 = vmatprep.subr.bf16.mxu0 0
        %3546 = vmatpush1.bf16.msra.mxu0 0
        %3547 = vmatprep.subr.bf16.mxu0 0
        %3548 = vmatpush1.bf16.msra.mxu0 0
        %3549 = vmatprep.subr.bf16.mxu0 0
        %3550 = vmatpush1.bf16.msra.mxu0 0
        %3551 = vmatprep.mubr.bf16.mxu0 0
        %3552 = vmatmul.mubr.bf16.gmra.mrb[0].mxu0 %v3228
        %v3553 = vpop.f32.mrb[0].mxu0
        %v3554 = vadd.f32 %v3277, %v3553
        %v3555 = vpop.f32.mrb[0].mxu0
        %v3556 = vadd.f32 %v3281, %v3555
        %v3557 = vpop.f32.mrb[0].mxu0
        %v3558 = vadd.f32 %v3277, %v3557
        %v3559 = vpop.f32.mrb[0].mxu0
        %v3560 = vadd.f32 %v3281, %v3559
        %3561 = vmatprep.mubr.bf16.mxu0 0
        %3562 = vmatmul.mubr.bf16.gmra.mrb[0].mxu0 %v3229
        %v3563 = vpop.f32.mrb[0].mxu0
        %v3564 = vadd.f32 %v3277, %v3563
        %v3565 = vpop.f32.mrb[0].mxu0
        %v3566 = vadd.f32 %v3281, %v3565
        %v3567 = vpop.f32.mrb[0].mxu0
        %v3568 = vadd.f32 %v3277, %v3567
        %v3569 = vpop.f32.mrb[0].mxu0
        %v3570 = vadd.f32 %v3281, %v3569
        %3571 = vmatprep.mubr.bf16.mxu0 0
        %3572 = vmatmul.mubr.bf16.gmra.mrb[0].mxu0 %v3230
        %v3573 = vpop.f32.mrb[0].mxu0
        %v3574 = vadd.f32 %v3277, %v3573
        %v3575 = vpop.f32.mrb[0].mxu0
        %v3576 = vadd.f32 %v3281, %v3575
        %v3577 = vpop.f32.mrb[0].mxu0
        %v3578 = vadd.f32 %v3277, %v3577
        %v3579 = vpop.f32.mrb[0].mxu0
        %v3580 = vadd.f32 %v3281, %v3579
        %3581 = vmatprep.mubr.bf16.mxu0 0
        %3582 = vmatmul.mubr.bf16.gmra.mrb[0].mxu0 %v3231
        %v3583 = vpop.f32.mrb[0].mxu0
        %v3584 = vadd.f32 %v3277, %v3583
        %v3585 = vpop.f32.mrb[0].mxu0
        %v3586 = vadd.f32 %v3281, %v3585
        %v3587 = vpop.f32.mrb[0].mxu0
        %v3588 = vadd.f32 %v3277, %v3587
        %v3589 = vpop.f32.mrb[0].mxu0
        %v3590 = vadd.f32 %v3281, %v3589
        %3591 = vdwg.mxu0
        %v3592 = vmax.f32 %v3481, 0.0
        %v3593 = vmax.f32 %v3483, 0.0
        %v3594 = vmax.f32 %v3554, 0.0
        %v3595 = vmax.f32 %v3556, 0.0
        %v3596 = vmax.f32 %v3485, 0.0
        %v3597 = vmax.f32 %v3487, 0.0
        %v3598 = vmax.f32 %v3558, 0.0
        %v3599 = vmax.f32 %v3560, 0.0
        %v3600 = vmax.f32 %v3491, 0.0
        %v3601 = vmax.f32 %v3493, 0.0
        %v3602 = vmax.f32 %v3564, 0.0
        %v3603 = vmax.f32 %v3566, 0.0
        %v3604 = vmax.f32 %v3495, 0.0
        %v3605 = vmax.f32 %v3497, 0.0
        %v3606 = vmax.f32 %v3568, 0.0
        %v3607 = vmax.f32 %v3570, 0.0
        %v3608 = vmax.f32 %v3501, 0.0
        %v3609 = vmax.f32 %v3503, 0.0
        %v3610 = vmax.f32 %v3574, 0.0
        %v3611 = vmax.f32 %v3576, 0.0
        %v3612 = vmax.f32 %v3505, 0.0
        %v3613 = vmax.f32 %v3507, 0.0
        %v3614 = vmax.f32 %v3578, 0.0
        %v3615 = vmax.f32 %v3580, 0.0
        %v3616 = vmax.f32 %v3511, 0.0
        %v3617 = vmax.f32 %v3513, 0.0
        %v3618 = vmax.f32 %v3584, 0.0
        %v3619 = vmax.f32 %v3586, 0.0
        %v3620 = vmax.f32 %v3515, 0.0
        %v3621 = vmax.f32 %v3517, 0.0
        %v3622 = vmax.f32 %v3588, 0.0
        %v3623 = vmax.f32 %v3590, 0.0
        %v3624 = vpack.c.bf16 %v3596, %v3592
        %v3625 = vpack.c.bf16 %v3597, %v3593
        %v3626 = vpack.c.bf16 %v3598, %v3594
        %v3627 = vpack.c.bf16 %v3599, %v3595
        %v3628 = vpack.c.bf16 %v3604, %v3600
        %v3629 = vpack.c.bf16 %v3605, %v3601
        %v3630 = vpack.c.bf16 %v3606, %v3602
        %v3631 = vpack.c.bf16 %v3607, %v3603
        %v3632 = vpack.c.bf16 %v3612, %v3608
        %v3633 = vpack.c.bf16 %v3613, %v3609
        %v3634 = vpack.c.bf16 %v3614, %v3610
        %v3635 = vpack.c.bf16 %v3615, %v3611
        %v3636 = vpack.c.bf16 %v3620, %v3616
        %v3637 = vpack.c.bf16 %v3621, %v3617
        %v3638 = vpack.c.bf16 %v3622, %v3618
        %v3639 = vpack.c.bf16 %v3623, %v3619
        %v3640 = vld [vmem:[%s719] sm:$0xf]
        %v3641 = vld [vmem:[%s719 + $0x4] sm:$0xf]
        %v3642 = vld [vmem:[%s719 + $0x8] sm:$0xf]
        %v3643 = vld [vmem:[%s719 + $0xc] sm:$0xf]
        %v3644 = vld [vmem:[%s719 + $0x10] sm:$0xf]
        %v3645 = vld [vmem:[%s719 + $0x14] sm:$0xf]
        %v3646 = vld [vmem:[%s719 + $0x18] sm:$0xf]
        %v3647 = vld [vmem:[%s719 + $0x1c] sm:$0xf]
        %v3648 = vld [vmem:[%s719 + $0x20] sm:$0xf]
        %v3649 = vld [vmem:[%s719 + $0x24] sm:$0xf]
        %v3650 = vld [vmem:[%s719 + $0x28] sm:$0xf]
        %v3651 = vld [vmem:[%s719 + $0x2c] sm:$0xf]
        %v3652 = vld [vmem:[%s719 + $0x30] sm:$0xf]
        %v3653 = vld [vmem:[%s719 + $0x34] sm:$0xf]
        %v3654 = vld [vmem:[%s719 + $0x38] sm:$0xf]
        %v3655 = vld [vmem:[%s719 + $0x3c] sm:$0xf]
        %v3656 = vld [vmem:[%s719 + $0x40] sm:$0xf]
        %v3657 = vld [vmem:[%s719 + $0x44] sm:$0xf]
        %v3658 = vld [vmem:[%s719 + $0x48] sm:$0xf]
        %v3659 = vld [vmem:[%s719 + $0x4c] sm:$0xf]
        %v3660 = vld [vmem:[%s719 + $0x50] sm:$0xf]
        %v3661 = vld [vmem:[%s719 + $0x54] sm:$0xf]
        %v3662 = vld [vmem:[%s719 + $0x58] sm:$0xf]
        %v3663 = vld [vmem:[%s719 + $0x5c] sm:$0xf]
        %v3664 = vld [vmem:[%s719 + $0x60] sm:$0xf]
        %v3665 = vld [vmem:[%s719 + $0x64] sm:$0xf]
        %v3666 = vld [vmem:[%s719 + $0x68] sm:$0xf]
        %v3667 = vld [vmem:[%s719 + $0x6c] sm:$0xf]
        %v3668 = vld [vmem:[%s719 + $0x70] sm:$0xf]
        %v3669 = vld [vmem:[%s719 + $0x74] sm:$0xf]
        %v3670 = vld [vmem:[%s719 + $0x78] sm:$0xf]
        %v3671 = vld [vmem:[%s719 + $0x7c] sm:$0xf]
        %v3672 = vld [vmem:[%s719 + $0x80] sm:$0xf]
        %v3673 = vld [vmem:[%s719 + $0x84] sm:$0xf]
        %v3674 = vld [vmem:[%s719 + $0x88] sm:$0xf]
        %v3675 = vld [vmem:[%s719 + $0x8c] sm:$0xf]
        %v3676 = vld [vmem:[%s719 + $0x90] sm:$0xf]
        %v3677 = vld [vmem:[%s719 + $0x94] sm:$0xf]
        %v3678 = vld [vmem:[%s719 + $0x98] sm:$0xf]
        %v3679 = vld [vmem:[%s719 + $0x9c] sm:$0xf]
        %v3680 = vld [vmem:[%s719 + $0xa0] sm:$0xf]
        %v3681 = vld [vmem:[%s719 + $0xa4] sm:$0xf]
        %v3682 = vld [vmem:[%s719 + $0xa8] sm:$0xf]
        %v3683 = vld [vmem:[%s719 + $0xac] sm:$0xf]
        %v3684 = vld [vmem:[%s719 + $0xb0] sm:$0xf]
        %v3685 = vld [vmem:[%s719 + $0xb4] sm:$0xf]
        %v3686 = vld [vmem:[%s719 + $0xb8] sm:$0xf]
        %v3687 = vld [vmem:[%s719 + $0xbc] sm:$0xf]
        %v3688 = vld [vmem:[%s719 + $0xc0] sm:$0xf]
        %v3689 = vld [vmem:[%s719 + $0xc4] sm:$0xf]
        %v3690 = vld [vmem:[%s719 + $0xc8] sm:$0xf]
        %v3691 = vld [vmem:[%s719 + $0xcc] sm:$0xf]
        %v3692 = vld [vmem:[%s719 + $0xd0] sm:$0xf]
        %v3693 = vld [vmem:[%s719 + $0xd4] sm:$0xf]
        %v3694 = vld [vmem:[%s719 + $0xd8] sm:$0xf]
        %v3695 = vld [vmem:[%s719 + $0xdc] sm:$0xf]
        %v3696 = vld [vmem:[%s719 + $0xe0] sm:$0xf]
        %v3697 = vld [vmem:[%s719 + $0xe4] sm:$0xf]
        %v3698 = vld [vmem:[%s719 + $0xe8] sm:$0xf]
        %v3699 = vld [vmem:[%s719 + $0xec] sm:$0xf]
        %v3700 = vld [vmem:[%s719 + $0xf0] sm:$0xf]
        %v3701 = vld [vmem:[%s719 + $0xf4] sm:$0xf]
        %v3702 = vld [vmem:[%s719 + $0xf8] sm:$0xf]
        %v3703 = vld [vmem:[%s719 + $0xfc] sm:$0xf]
        %v3704 = vld [vmem:[%s722] sm:$0x1]
        %v3706 = vlaneseq
        %v3707 = vshrl.u32 %v3706, 7
        %v3708 = vsub.s32 0, %v3707
        %v3709 = vrot.slane %v3704, %v3708
        %v3775 = vunpack.c.l.b16 %v3640
        %v3776 = vunpack.c.l.b16 %v3641
        %v3777 = vunpack.c.l.b16 %v3642
        %v3778 = vunpack.c.l.b16 %v3643
        %v3779 = vunpack.c.l.b16 %v3644
        %v3780 = vunpack.c.l.b16 %v3645
        %v3781 = vunpack.c.l.b16 %v3646
        %v3782 = vunpack.c.l.b16 %v3647
        %v3783 = vunpack.c.l.b16 %v3648
        %v3784 = vunpack.c.l.b16 %v3649
        %v3785 = vunpack.c.l.b16 %v3650
        %v3786 = vunpack.c.l.b16 %v3651
        %v3787 = vunpack.c.l.b16 %v3652
        %v3788 = vunpack.c.l.b16 %v3653
        %v3789 = vunpack.c.l.b16 %v3654
        %v3790 = vunpack.c.l.b16 %v3655
        %v3791 = vunpack.c.l.b16 %v3656
        %v3792 = vunpack.c.l.b16 %v3657
        %v3793 = vunpack.c.l.b16 %v3658
        %v3794 = vunpack.c.l.b16 %v3659
        %v3795 = vunpack.c.l.b16 %v3660
        %v3796 = vunpack.c.l.b16 %v3661
        %v3797 = vunpack.c.l.b16 %v3662
        %v3798 = vunpack.c.l.b16 %v3663
        %v3799 = vunpack.c.l.b16 %v3664
        %v3800 = vunpack.c.l.b16 %v3665
        %v3801 = vunpack.c.l.b16 %v3666
        %v3802 = vunpack.c.l.b16 %v3667
        %v3803 = vunpack.c.l.b16 %v3668
        %v3804 = vunpack.c.l.b16 %v3669
        %v3805 = vunpack.c.l.b16 %v3670
        %v3806 = vunpack.c.l.b16 %v3671
        %v3807 = vunpack.c.l.b16 %v3672
        %v3808 = vunpack.c.l.b16 %v3673
        %v3809 = vunpack.c.l.b16 %v3674
        %v3810 = vunpack.c.l.b16 %v3675
        %v3811 = vunpack.c.l.b16 %v3676
        %v3812 = vunpack.c.l.b16 %v3677
        %v3813 = vunpack.c.l.b16 %v3678
        %v3814 = vunpack.c.l.b16 %v3679
        %v3815 = vunpack.c.l.b16 %v3680
        %v3816 = vunpack.c.l.b16 %v3681
        %v3817 = vunpack.c.l.b16 %v3682
        %v3818 = vunpack.c.l.b16 %v3683
        %v3819 = vunpack.c.l.b16 %v3684
        %v3820 = vunpack.c.l.b16 %v3685
        %v3821 = vunpack.c.l.b16 %v3686
        %v3822 = vunpack.c.l.b16 %v3687
        %v3823 = vunpack.c.l.b16 %v3688
        %v3824 = vunpack.c.l.b16 %v3689
        %v3825 = vunpack.c.l.b16 %v3690
        %v3826 = vunpack.c.l.b16 %v3691
        %v3827 = vunpack.c.l.b16 %v3692
        %v3828 = vunpack.c.l.b16 %v3693
        %v3829 = vunpack.c.l.b16 %v3694
        %v3830 = vunpack.c.l.b16 %v3695
        %v3831 = vunpack.c.l.b16 %v3696
        %v3832 = vunpack.c.l.b16 %v3697
        %v3833 = vunpack.c.l.b16 %v3698
        %v3834 = vunpack.c.l.b16 %v3699
        %v3835 = vunpack.c.l.b16 %v3700
        %v3836 = vunpack.c.l.b16 %v3701
        %v3837 = vunpack.c.l.b16 %v3702
        %v3838 = vunpack.c.l.b16 %v3703
        %v3839 = vpack.c.b16 %v3776, %v3775
        %v3840 = vpack.c.b16 %v3778, %v3777
        %v3841 = vpack.c.b16 %v3780, %v3779
        %v3842 = vpack.c.b16 %v3782, %v3781
        %v3843 = vpack.c.b16 %v3784, %v3783
        %v3844 = vpack.c.b16 %v3786, %v3785
        %v3845 = vpack.c.b16 %v3788, %v3787
        %v3846 = vpack.c.b16 %v3790, %v3789
        %v3847 = vpack.c.b16 %v3792, %v3791
        %v3848 = vpack.c.b16 %v3794, %v3793
        %v3849 = vpack.c.b16 %v3796, %v3795
        %v3850 = vpack.c.b16 %v3798, %v3797
        %v3851 = vpack.c.b16 %v3800, %v3799
        %v3852 = vpack.c.b16 %v3802, %v3801
        %v3853 = vpack.c.b16 %v3804, %v3803
        %v3854 = vpack.c.b16 %v3806, %v3805
        %v3855 = vpack.c.b16 %v3808, %v3807
        %v3856 = vpack.c.b16 %v3810, %v3809
        %v3857 = vpack.c.b16 %v3812, %v3811
        %v3858 = vpack.c.b16 %v3814, %v3813
        %v3859 = vpack.c.b16 %v3816, %v3815
        %v3860 = vpack.c.b16 %v3818, %v3817
        %v3861 = vpack.c.b16 %v3820, %v3819
        %v3862 = vpack.c.b16 %v3822, %v3821
        %v3863 = vpack.c.b16 %v3824, %v3823
        %v3864 = vpack.c.b16 %v3826, %v3825
        %v3865 = vpack.c.b16 %v3828, %v3827
        %v3866 = vpack.c.b16 %v3830, %v3829
        %v3867 = vpack.c.b16 %v3832, %v3831
        %v3868 = vpack.c.b16 %v3834, %v3833
        %v3869 = vpack.c.b16 %v3836, %v3835
        %v3870 = vpack.c.b16 %v3838, %v3837
        %3903 = vmatprep.subr.bf16.mxu0 0
        %3904 = vmatpush1.bf16.msra.mxu0 %v3839
        %3905 = vmatprep.subr.bf16.mxu0 0
        %3906 = vmatpush1.bf16.msra.mxu0 %v3840
        %3907 = vmatprep.subr.bf16.mxu0 0
        %3908 = vmatpush1.bf16.msra.mxu0 %v3841
        %3909 = vmatprep.subr.bf16.mxu0 0
        %3910 = vmatpush1.bf16.msra.mxu0 %v3842
        %3911 = vmatprep.subr.bf16.mxu0 0
        %3912 = vmatpush1.bf16.msra.mxu0 %v3843
        %3913 = vmatprep.subr.bf16.mxu0 0
        %3914 = vmatpush1.bf16.msra.mxu0 %v3844
        %3915 = vmatprep.subr.bf16.mxu0 0
        %3916 = vmatpush1.bf16.msra.mxu0 %v3845
        %3917 = vmatprep.subr.bf16.mxu0 0
        %3918 = vmatpush1.bf16.msra.mxu0 %v3846
        %3919 = vmatprep.subr.bf16.mxu0 0
        %3920 = vmatpush1.bf16.msra.mxu0 %v3847
        %3921 = vmatprep.subr.bf16.mxu0 0
        %3922 = vmatpush1.bf16.msra.mxu0 %v3848
        %3923 = vmatprep.subr.bf16.mxu0 0
        %3924 = vmatpush1.bf16.msra.mxu0 %v3849
        %3925 = vmatprep.subr.bf16.mxu0 0
        %3926 = vmatpush1.bf16.msra.mxu0 %v3850
        %3927 = vmatprep.subr.bf16.mxu0 0
        %3928 = vmatpush1.bf16.msra.mxu0 %v3851
        %3929 = vmatprep.subr.bf16.mxu0 0
        %3930 = vmatpush1.bf16.msra.mxu0 %v3852
        %3931 = vmatprep.subr.bf16.mxu0 0
        %3932 = vmatpush1.bf16.msra.mxu0 %v3853
        %3933 = vmatprep.subr.bf16.mxu0 0
        %3934 = vmatpush1.bf16.msra.mxu0 %v3854
        %3935 = vmatprep.mubr.bf16.mxu0 %v3625
        %3936 = vmatmul.mubr.bf16.gmra.mrb[0].mxu0 %v3624
        %v3937 = vpop.f32.mrb[0].mxu0
        %v3938 = vadd.f32 %v3709, %v3937
        %v3939 = vpop.f32.mrb[0].mxu0
        %v3940 = vpop.f32.mrb[0].mxu0
        %v3941 = vadd.f32 %v3709, %v3940
        %v3942 = vpop.f32.mrb[0].mxu0
        %3943 = vmatprep.mubr.bf16.mxu0 %v3629
        %3944 = vmatmul.mubr.bf16.gmra.mrb[0].mxu0 %v3628
        %v3945 = vpop.f32.mrb[0].mxu0
        %v3946 = vadd.f32 %v3709, %v3945
        %v3947 = vpop.f32.mrb[0].mxu0
        %v3948 = vpop.f32.mrb[0].mxu0
        %v3949 = vadd.f32 %v3709, %v3948
        %v3950 = vpop.f32.mrb[0].mxu0
        %3951 = vmatprep.mubr.bf16.mxu0 %v3633
        %3952 = vmatmul.mubr.bf16.gmra.mrb[0].mxu0 %v3632
        %v3953 = vpop.f32.mrb[0].mxu0
        %v3954 = vadd.f32 %v3709, %v3953
        %v3955 = vpop.f32.mrb[0].mxu0
        %v3956 = vpop.f32.mrb[0].mxu0
        %v3957 = vadd.f32 %v3709, %v3956
        %v3958 = vpop.f32.mrb[0].mxu0
        %3959 = vmatprep.mubr.bf16.mxu0 %v3637
        %3960 = vmatmul.mubr.bf16.gmra.mrb[0].mxu0 %v3636
        %v3961 = vpop.f32.mrb[0].mxu0
        %v3962 = vadd.f32 %v3709, %v3961
        %v3963 = vpop.f32.mrb[0].mxu0
        %v3964 = vpop.f32.mrb[0].mxu0
        %v3965 = vadd.f32 %v3709, %v3964
        %v3966 = vpop.f32.mrb[0].mxu0
        %3967 = vdwg.mxu0
        %3968 = vmatprep.subr.bf16.mxu0 0
        %3969 = vmatpush1.bf16.msra.mxu0 %v3855
        %3970 = vmatprep.subr.bf16.mxu0 0
        %3971 = vmatpush1.bf16.msra.mxu0 %v3856
        %3972 = vmatprep.subr.bf16.mxu0 0
        %3973 = vmatpush1.bf16.msra.mxu0 %v3857
        %3974 = vmatprep.subr.bf16.mxu0 0
        %3975 = vmatpush1.bf16.msra.mxu0 %v3858
        %3976 = vmatprep.subr.bf16.mxu0 0
        %3977 = vmatpush1.bf16.msra.mxu0 %v3859
        %3978 = vmatprep.subr.bf16.mxu0 0
        %3979 = vmatpush1.bf16.msra.mxu0 %v3860
        %3980 = vmatprep.subr.bf16.mxu0 0
        %3981 = vmatpush1.bf16.msra.mxu0 %v3861
        %3982 = vmatprep.subr.bf16.mxu0 0
        %3983 = vmatpush1.bf16.msra.mxu0 %v3862
        %3984 = vmatprep.subr.bf16.mxu0 0
        %3985 = vmatpush1.bf16.msra.mxu0 %v3863
        %3986 = vmatprep.subr.bf16.mxu0 0
        %3987 = vmatpush1.bf16.msra.mxu0 %v3864
        %3988 = vmatprep.subr.bf16.mxu0 0
        %3989 = vmatpush1.bf16.msra.mxu0 %v3865
        %3990 = vmatprep.subr.bf16.mxu0 0
        %3991 = vmatpush1.bf16.msra.mxu0 %v3866
        %3992 = vmatprep.subr.bf16.mxu0 0
        %3993 = vmatpush1.bf16.msra.mxu0 %v3867
        %3994 = vmatprep.subr.bf16.mxu0 0
        %3995 = vmatpush1.bf16.msra.mxu0 %v3868
        %3996 = vmatprep.subr.bf16.mxu0 0
        %3997 = vmatpush1.bf16.msra.mxu0 %v3869
        %3998 = vmatprep.subr.bf16.mxu0 0
        %3999 = vmatpush1.bf16.msra.mxu0 %v3870
        %4000 = vmatprep.mubr.bf16.mxu0 %v3627
        %4001 = vmatmul.mubr.bf16.gmra.mrb[0].mxu0 %v3626
        %v4002 = vpop.f32.mrb[0].mxu0
        %v4003 = vadd.f32 %v3938, %v4002
        %v4004 = vpop.f32.mrb[0].mxu0
        %v4005 = vpop.f32.mrb[0].mxu0
        %v4006 = vadd.f32 %v3941, %v4005
        %v4007 = vpop.f32.mrb[0].mxu0
        %4008 = vmatprep.mubr.bf16.mxu0 %v3631
        %4009 = vmatmul.mubr.bf16.gmra.mrb[0].mxu0 %v3630
        %v4010 = vpop.f32.mrb[0].mxu0
        %v4011 = vadd.f32 %v3946, %v4010
        %v4012 = vpop.f32.mrb[0].mxu0
        %v4013 = vpop.f32.mrb[0].mxu0
        %v4014 = vadd.f32 %v3949, %v4013
        %v4015 = vpop.f32.mrb[0].mxu0
        %4016 = vmatprep.mubr.bf16.mxu0 %v3635
        %4017 = vmatmul.mubr.bf16.gmra.mrb[0].mxu0 %v3634
        %v4018 = vpop.f32.mrb[0].mxu0
        %v4019 = vadd.f32 %v3954, %v4018
        %v4020 = vpop.f32.mrb[0].mxu0
        %v4021 = vpop.f32.mrb[0].mxu0
        %v4022 = vadd.f32 %v3957, %v4021
        %v4023 = vpop.f32.mrb[0].mxu0
        %4024 = vmatprep.mubr.bf16.mxu0 %v3639
        %4025 = vmatmul.mubr.bf16.gmra.mrb[0].mxu0 %v3638
        %v4026 = vpop.f32.mrb[0].mxu0
        %v4027 = vadd.f32 %v3962, %v4026
        %v4028 = vpop.f32.mrb[0].mxu0
        %v4029 = vpop.f32.mrb[0].mxu0
        %v4030 = vadd.f32 %v3965, %v4029
        %v4031 = vpop.f32.mrb[0].mxu0
        %4032 = vdwg.mxu0
        %v4033 = vadd.f32 %v3102, %v4003
        %v4034 = vadd.f32 %v3103, %v4006
        %v4035 = vadd.f32 %v3104, %v4011
        %v4036 = vadd.f32 %v3105, %v4014
        %v4037 = vadd.f32 %v3106, %v4019
        %v4038 = vadd.f32 %v3107, %v4022
        %v4039 = vadd.f32 %v3108, %v4027
        %v4040 = vadd.f32 %v3109, %v4030
        %4041 = vst [vmem:[#allocation2] sm:$0xff] %v4033
        %4042 = vst [vmem:[#allocation2 + $0x8] sm:$0xff] %v4034
        %4043 = vst [vmem:[#allocation2 + $0x10] sm:$0xff] %v4035
        %4044 = vst [vmem:[#allocation2 + $0x18] sm:$0xff] %v4036
        %4045 = vst [vmem:[#allocation2 + $0x20] sm:$0xff] %v4037
        %4046 = vst [vmem:[#allocation2 + $0x28] sm:$0xff] %v4038
        %4047 = vst [vmem:[#allocation2 + $0x30] sm:$0xff] %v4039
        %4048 = vst [vmem:[#allocation2 + $0x38] sm:$0xff] %v4040
        %p4049 = scmp.eq.s32.totalorder %s30, 3
        // Predicated region
        $region97: #{forward.1} parent=91 // pred_check
          %p4050 = pneg %p4049
        $region98: #{forward.1} parent=91 // pred_check_branch
          %4052 = sbr.rel (%p4050) target = $region100
        $region99: #{forward.1} parent=91 // pred_region
          %v4053 = vld [vmem:[%s14] sm:$0x1]
          %v4054 = vld [vmem:[%s15] sm:$0x1]
          %4055 = vadd.xlane.f32.xlu0 %v4033
          %v4056 = vpop.xlane.xlu0 %4055
          %4057 = vadd.xlane.f32.xlu0 %v4034
          %v4058 = vpop.xlane.xlu0 %4057
          %4059 = vadd.xlane.f32.xlu0 %v4035
          %v4060 = vpop.xlane.xlu0 %4059
          %4061 = vadd.xlane.f32.xlu0 %v4036
          %v4062 = vpop.xlane.xlu0 %4061
          %4063 = vadd.xlane.f32.xlu0 %v4037
          %v4064 = vpop.xlane.xlu0 %4063
          %4065 = vadd.xlane.f32.xlu0 %v4038
          %v4066 = vpop.xlane.xlu0 %4065
          %4067 = vadd.xlane.f32.xlu0 %v4039
          %v4068 = vpop.xlane.xlu0 %4067
          %4069 = vadd.xlane.f32.xlu0 %v4040
          %v4070 = vpop.xlane.xlu0 %4069
          %v4071 = vmul.f32 %v4056, %v968
          %v4072 = vmul.f32 %v4058, %v968
          %v4073 = vmul.f32 %v4060, %v968
          %v4074 = vmul.f32 %v4062, %v968
          %v4075 = vmul.f32 %v4064, %v968
          %v4076 = vmul.f32 %v4066, %v968
          %v4077 = vmul.f32 %v4068, %v968
          %v4078 = vmul.f32 %v4070, %v968
          %v4079 = vsub.f32 %v4033, %v4071
          %v4080 = vsub.f32 %v4034, %v4072
          %v4081 = vsub.f32 %v4035, %v4073
          %v4082 = vsub.f32 %v4036, %v4074
          %v4083 = vsub.f32 %v4037, %v4075
          %v4084 = vsub.f32 %v4038, %v4076
          %v4085 = vsub.f32 %v4039, %v4077
          %v4086 = vsub.f32 %v4040, %v4078
          %v4087 = vmul.f32 %v4079, %v4079
          %v4088 = vmul.f32 %v4080, %v4080
          %v4089 = vmul.f32 %v4081, %v4081
          %v4090 = vmul.f32 %v4082, %v4082
          %v4091 = vmul.f32 %v4083, %v4083
          %v4092 = vmul.f32 %v4084, %v4084
          %v4093 = vmul.f32 %v4085, %v4085
          %v4094 = vmul.f32 %v4086, %v4086
          %4095 = vadd.xlane.f32.xlu0 %v4087
          %v4096 = vpop.xlane.xlu0 %4095
          %4097 = vadd.xlane.f32.xlu0 %v4088
          %v4098 = vpop.xlane.xlu0 %4097
          %4099 = vadd.xlane.f32.xlu0 %v4089
          %v4100 = vpop.xlane.xlu0 %4099
          %4101 = vadd.xlane.f32.xlu0 %v4090
          %v4102 = vpop.xlane.xlu0 %4101
          %4103 = vadd.xlane.f32.xlu0 %v4091
          %v4104 = vpop.xlane.xlu0 %4103
          %4105 = vadd.xlane.f32.xlu0 %v4092
          %v4106 = vpop.xlane.xlu0 %4105
          %4107 = vadd.xlane.f32.xlu0 %v4093
          %v4108 = vpop.xlane.xlu0 %4107
          %4109 = vadd.xlane.f32.xlu0 %v4094
          %v4110 = vpop.xlane.xlu0 %4109
          %v4111 = vmul.f32 %v4096, %v968
          %v4112 = vmul.f32 %v4098, %v968
          %v4113 = vmul.f32 %v4100, %v968
          %v4114 = vmul.f32 %v4102, %v968
          %v4115 = vmul.f32 %v4104, %v968
          %v4116 = vmul.f32 %v4106, %v968
          %v4117 = vmul.f32 %v4108, %v968
          %v4118 = vmul.f32 %v4110, %v968
          %v4119 = vadd.f32 %v4111, 1e-05
          %v4120 = vadd.f32 %v4112, 1e-05
          %v4121 = vadd.f32 %v4113, 1e-05
          %v4122 = vadd.f32 %v4114, 1e-05
          %v4123 = vadd.f32 %v4115, 1e-05
          %v4124 = vadd.f32 %v4116, 1e-05
          %v4125 = vadd.f32 %v4117, 1e-05
          %v4126 = vadd.f32 %v4118, 1e-05
          %v4127 = vrsqrt.pop %v4119
          %v4128 = vrsqrt.pop %v4120
          %v4129 = vrsqrt.pop %v4121
          %v4130 = vrsqrt.pop %v4122
          %v4131 = vrsqrt.pop %v4123
          %v4132 = vrsqrt.pop %v4124
          %v4133 = vrsqrt.pop %v4125
          %v4134 = vrsqrt.pop %v4126
          %v4135 = vmul.f32 %v4079, %v4127
          %v4136 = vmul.f32 %v4080, %v4128
          %v4137 = vmul.f32 %v4081, %v4129
          %v4138 = vmul.f32 %v4082, %v4130
          %v4139 = vmul.f32 %v4083, %v4131
          %v4140 = vmul.f32 %v4084, %v4132
          %v4141 = vmul.f32 %v4085, %v4133
          %v4142 = vmul.f32 %v4086, %v4134
          %v4144 = vlaneseq
          %v4145 = vshrl.u32 %v4144, 7
          %v4146 = vsub.s32 0, %v4145
          %v4147 = vrot.slane %v4053, %v4146
          %v4149 = vmul.f32 %v4135, %v4147
          %v4150 = vmul.f32 %v4136, %v4147
          %v4151 = vmul.f32 %v4137, %v4147
          %v4152 = vmul.f32 %v4138, %v4147
          %v4153 = vmul.f32 %v4139, %v4147
          %v4154 = vmul.f32 %v4140, %v4147
          %v4155 = vmul.f32 %v4141, %v4147
          %v4156 = vmul.f32 %v4142, %v4147
          %v4158 = vlaneseq
          %v4159 = vshrl.u32 %v4158, 7
          %v4160 = vsub.s32 0, %v4159
          %v4161 = vrot.slane %v4054, %v4160
          %v4163 = vadd.f32 %v4149, %v4161
          %v4164 = vadd.f32 %v4150, %v4161
          %v4165 = vadd.f32 %v4151, %v4161
          %v4166 = vadd.f32 %v4152, %v4161
          %v4167 = vadd.f32 %v4153, %v4161
          %v4168 = vadd.f32 %v4154, %v4161
          %v4169 = vadd.f32 %v4155, %v4161
          %v4170 = vadd.f32 %v4156, %v4161
          %v4171 = vpack.c.bf16 %v4164, %v4163
          %v4172 = vpack.c.bf16 %v4166, %v4165
          %v4173 = vpack.c.bf16 %v4168, %v4167
          %v4174 = vpack.c.bf16 %v4170, %v4169
          %v4175 = vld [vmem:[%s16] sm:$0xf]
          %v4176 = vld [vmem:[%s16 + $0x4] sm:$0xf]
          %v4177 = vld [vmem:[%s16 + $0x8] sm:$0xf]
          %v4178 = vld [vmem:[%s16 + $0xc] sm:$0xf]
          %v4179 = vld [vmem:[%s16 + $0x10] sm:$0xf]
          %v4180 = vld [vmem:[%s16 + $0x14] sm:$0xf]
          %v4181 = vld [vmem:[%s16 + $0x18] sm:$0xf]
          %v4182 = vld [vmem:[%s16 + $0x1c] sm:$0xf]
          %v4183 = vld [vmem:[%s16 + $0x20] sm:$0xf]
          %v4184 = vld [vmem:[%s16 + $0x24] sm:$0xf]
          %v4185 = vld [vmem:[%s16 + $0x28] sm:$0xf]
          %v4186 = vld [vmem:[%s16 + $0x2c] sm:$0xf]
          %v4187 = vld [vmem:[%s16 + $0x30] sm:$0xf]
          %v4188 = vld [vmem:[%s16 + $0x34] sm:$0xf]
          %v4189 = vld [vmem:[%s16 + $0x38] sm:$0xf]
          %v4190 = vld [vmem:[%s16 + $0x3c] sm:$0xf]
          %v4191 = vld [vmem:[%s17] sm:$0x1]
          %v4193 = vlaneseq
          %v4194 = vshrl.u32 %v4193, 7
          %v4195 = vsub.s32 0, %v4194
          %v4196 = vrot.slane %v4191, %v4195
          %v4214 = vunpack.c.l.b16 %v4175
          %v4215 = vunpack.c.l.b16 %v4176
          %v4216 = vunpack.c.l.b16 %v4177
          %v4217 = vunpack.c.l.b16 %v4178
          %v4218 = vunpack.c.l.b16 %v4179
          %v4219 = vunpack.c.l.b16 %v4180
          %v4220 = vunpack.c.l.b16 %v4181
          %v4221 = vunpack.c.l.b16 %v4182
          %v4222 = vunpack.c.l.b16 %v4183
          %v4223 = vunpack.c.l.b16 %v4184
          %v4224 = vunpack.c.l.b16 %v4185
          %v4225 = vunpack.c.l.b16 %v4186
          %v4226 = vunpack.c.l.b16 %v4187
          %v4227 = vunpack.c.l.b16 %v4188
          %v4228 = vunpack.c.l.b16 %v4189
          %v4229 = vunpack.c.l.b16 %v4190
          %v4230 = vpack.c.b16 %v4215, %v4214
          %v4231 = vpack.c.b16 %v4217, %v4216
          %v4232 = vpack.c.b16 %v4219, %v4218
          %v4233 = vpack.c.b16 %v4221, %v4220
          %v4234 = vpack.c.b16 %v4223, %v4222
          %v4235 = vpack.c.b16 %v4225, %v4224
          %v4236 = vpack.c.b16 %v4227, %v4226
          %v4237 = vpack.c.b16 %v4229, %v4228
          %4246 = vmatprep.subr.bf16.mxu0 0
          %4247 = vmatpush1.bf16.msra.mxu0 %v4230
          %4248 = vmatprep.subr.bf16.mxu0 0
          %4249 = vmatpush1.bf16.msra.mxu0 %v4231
          %4250 = vmatprep.subr.bf16.mxu0 0
          %4251 = vmatpush1.bf16.msra.mxu0 %v4232
          %4252 = vmatprep.subr.bf16.mxu0 0
          %4253 = vmatpush1.bf16.msra.mxu0 %v4233
          %4254 = vmatprep.subr.bf16.mxu0 0
          %4255 = vmatpush1.bf16.msra.mxu0 %v4234
          %4256 = vmatprep.subr.bf16.mxu0 0
          %4257 = vmatpush1.bf16.msra.mxu0 %v4235
          %4258 = vmatprep.subr.bf16.mxu0 0
          %4259 = vmatpush1.bf16.msra.mxu0 %v4236
          %4260 = vmatprep.subr.bf16.mxu0 0
          %4261 = vmatpush1.bf16.msra.mxu0 %v4237
          %4262 = vmatprep.subr.bf16.mxu0 0
          %4263 = vmatpush1.bf16.msra.mxu0 0
          %4264 = vmatprep.subr.bf16.mxu0 0
          %4265 = vmatpush1.bf16.msra.mxu0 0
          %4266 = vmatprep.subr.bf16.mxu0 0
          %4267 = vmatpush1.bf16.msra.mxu0 0
          %4268 = vmatprep.subr.bf16.mxu0 0
          %4269 = vmatpush1.bf16.msra.mxu0 0
          %4270 = vmatprep.subr.bf16.mxu0 0
          %4271 = vmatpush1.bf16.msra.mxu0 0
          %4272 = vmatprep.subr.bf16.mxu0 0
          %4273 = vmatpush1.bf16.msra.mxu0 0
          %4274 = vmatprep.subr.bf16.mxu0 0
          %4275 = vmatpush1.bf16.msra.mxu0 0
          %4276 = vmatprep.subr.bf16.mxu0 0
          %4277 = vmatpush1.bf16.msra.mxu0 0
          %4278 = vmatprep.mubr.bf16.mxu0 0
          %4279 = vmatmul.mubr.bf16.gmra.mrb[0].mxu0 %v4171
          %v4280 = vpop.f32.mrb[0].mxu0
          %v4281 = vadd.f32 %v4196, %v4280
          %v4282 = vpop.f32.mrb[0].mxu0
          %v4283 = vpop.f32.mrb[0].mxu0
          %v4284 = vadd.f32 %v4196, %v4283
          %v4285 = vpop.f32.mrb[0].mxu0
          %4286 = vmatprep.mubr.bf16.mxu0 0
          %4287 = vmatmul.mubr.bf16.gmra.mrb[0].mxu0 %v4172
          %v4288 = vpop.f32.mrb[0].mxu0
          %v4289 = vadd.f32 %v4196, %v4288
          %v4290 = vpop.f32.mrb[0].mxu0
          %v4291 = vpop.f32.mrb[0].mxu0
          %v4292 = vadd.f32 %v4196, %v4291
          %v4293 = vpop.f32.mrb[0].mxu0
          %4294 = vmatprep.mubr.bf16.mxu0 0
          %4295 = vmatmul.mubr.bf16.gmra.mrb[0].mxu0 %v4173
          %v4296 = vpop.f32.mrb[0].mxu0
          %v4297 = vadd.f32 %v4196, %v4296
          %v4298 = vpop.f32.mrb[0].mxu0
          %v4299 = vpop.f32.mrb[0].mxu0
          %v4300 = vadd.f32 %v4196, %v4299
          %v4301 = vpop.f32.mrb[0].mxu0
          %4302 = vmatprep.mubr.bf16.mxu0 0
          %4303 = vmatmul.mubr.bf16.gmra.mrb[0].mxu0 %v4174
          %v4304 = vpop.f32.mrb[0].mxu0
          %v4305 = vadd.f32 %v4196, %v4304
          %v4306 = vpop.f32.mrb[0].mxu0
          %v4307 = vpop.f32.mrb[0].mxu0
          %v4308 = vadd.f32 %v4196, %v4307
          %v4309 = vpop.f32.mrb[0].mxu0
          %4310 = vdwg.mxu0
          %4311 = vst [vmem:[#allocation3] sm:$0xff] %v4281
          %4312 = vst [vmem:[#allocation3 + $0x8] sm:$0xff] %v4284
          %4313 = vst [vmem:[#allocation3 + $0x10] sm:$0xff] %v4289
          %4314 = vst [vmem:[#allocation3 + $0x18] sm:$0xff] %v4292
          %4315 = vst [vmem:[#allocation3 + $0x20] sm:$0xff] %v4297
          %4316 = vst [vmem:[#allocation3 + $0x28] sm:$0xff] %v4300
          %4317 = vst [vmem:[#allocation3 + $0x30] sm:$0xff] %v4305
          %4318 = vst [vmem:[#allocation3 + $0x38] sm:$0xff] %v4308
        $region100: #{forward.1} parent=91 // pred_fallthru
          _
        // Predicated region
        $region101: #{forward.1} parent=91 // pred_check
          %p4319 = pneg %p476
        $region102: #{forward.1} parent=91 // pred_check_branch
          %4321 = sbr.rel (%p4319) target = $region104
        $region103: #{forward.1} parent=91 // pred_region
          %s4323 = ssub.s32 1024, 1024
          %4324 = vsyncadd [#allocation4], %s4323
          %s4325 = sshll.u32 [#allocation3], 4
          %s4326 = int_to_ptr.vmem [resolvable:$true] %s4325
          %4331 = dma.vmem_to_hbm [thread:$0]  %s4326, 1024, %s18, [#allocation4], 128, 128, 8
        $region104: #{forward.1} parent=91 // pred_fallthru
          _
        // Predicated region
        $region105: #{forward.1} parent=91 // pred_check
          %p4332 = pneg %p476
        $region106: #{forward.1} parent=91 // pred_check_branch
          %4334 = sbr.rel (%p4332) target = $region108
        $region107: #{forward.1} parent=91 // pred_region
          %4335 = dma.done [#allocation4], 1024
        $region108: #{forward.1} parent=91 // pred_fallthru
          _
      $region92: #{forward.1} parent=5 // pred_fallthru
        _
      %p4336 = scmp.le.s32.totalorder 2, %s25
      // Predicated region
      $region109: #{forward.1} parent=5 // pred_check
        %p4337 = pneg %p4336
      $region110: #{forward.1} parent=5 // pred_check_branch
        %4339 = sbr.rel (%p4337) target = $region112
      $region111: #{forward.1} parent=5 // pred_region
        %s4340 = ssub.s32 %s25, 2
      $region112: #{forward.1} parent=5 // pred_fallthru
        _
    $region6: #{forward.1} parent=1 // loop_footer
      %s29 = sadd.s32 1, %s25
    $region7: #{forward.1} parent=1 // loop_footer_branch
      %24 = sbr.rel target = $region3
    $region8: #{forward.1} parent=1 // loop_exit
      _
    %4341 = vsyncpa [#allocation4], 1
    %s4342 = scalar_lea.sflag [#allocation4], 1
    %4343 = vsyncpa %s4342, 1

</llo_original>
